<compile_context>
chip_gen: v7x
topology: tpu7x:2x2x1
jax: 0.10.0
libtpu: 0.0.40
codegen_flags: <defaults>
</compile_context>

<pallas_src>
import functools

import jax
import jax.numpy as jnp
from jax import lax
from jax.experimental import pallas as pl
from jax.experimental.pallas import tpu as pltpu

_PAD = 8  # sublane-aligned column at which the scratch interior starts


def _basic_block_kernel(*refs, H, W, Cin, Cout, stride, TH, has_downsample):
    if has_downsample:
        (x_ref, w1_ref, b1_ref, w2_ref, b2_ref, wds_ref, bds_ref,
         out_ref, xpk_ref, mpk_ref) = refs
    else:
        (x_ref, w1_ref, b1_ref, w2_ref, b2_ref,
         out_ref, xpk_ref, mpk_ref) = refs
        wds_ref = bds_ref = None

    s = stride
    Ho = (H - 1) // s + 1
    Wo = (W - 1) // s + 1
    nh = TH + 2                       # conv1 rows computed (tile + conv2 halo)
    rows_in = s * (TH + 1) + 3        # input rows consumed per grid step
    P = _PAD
    bf16 = jnp.bfloat16

    r = pl.program_id(1)
    r0 = r * TH                       # first output row of this tile
    g0 = s * (r0 - 1) - 1             # global input row held in scratch row 0

    def ds(start, size):              # strided ref-read helper
        return pl.ds(start, size) if s == 1 else pl.ds(start, size, s)

    # ---- stage x into the im2col-packed, width-padded input scratch --------
    # channel block j (= kx tap) holds the input shifted by j-1 columns; the
    # interior starts at the sublane-aligned column P, so the main stores are
    # aligned.  Only the two padding (col, channel-block) slots that are ever
    # read get zeroed.
    xpk_ref[:, P:P + 1, 0:Cin] = jnp.zeros((rows_in, 1, Cin), bf16)
    xpk_ref[:, P + W - 1:P + W, 2 * Cin:3 * Cin] = jnp.zeros(
        (rows_in, 1, Cin), bf16)
    for u in range(rows_in):          # static unroll; rows_in is small
        gu = g0 + u
        src = jnp.clip(gu, 0, H - 1)
        keep = jnp.logical_and(gu >= 0, gu < H).astype(bf16)
        row = x_ref[0, pl.ds(src, 1), :, :] * keep           # (1, W, Cin)
        for j in range(3):
            xpk_ref[u:u + 1, P + 1 - j:P + 1 - j + W,
                    j * Cin:(j + 1) * Cin] = row

    # ---- conv1: 3x3 / stride s, pad 1, over TH+2 rows (halo for conv2) -----
    # 3 matmuls with K = 3*Cin (kx packed into the contraction).
    acc1 = jnp.zeros((nh * Wo, Cout), jnp.float32)
    for ky in range(3):
        blk = xpk_ref[ds(ky, nh), ds(P, Wo), :]              # (nh, Wo, 3*Cin)
        acc1 += jnp.dot(blk.reshape(nh * Wo, 3 * Cin), w1_ref[ky],
                        preferred_element_type=jnp.float32)
    # bn1 bias (scale already folded into w1) + relu
    mid = jnp.maximum(acc1 + b1_ref[...], 0.0)
    mid = mid.reshape(nh, Wo, Cout).astype(bf16)

    # ---- stage mid into the packed scratch for conv2 ------------------------
    mpk_ref[:, P:P + 1, 0:Cout] = jnp.zeros((nh, 1, Cout), bf16)
    mpk_ref[:, P + Wo - 1:P + Wo, 2 * Cout:3 * Cout] = jnp.zeros(
        (nh, 1, Cout), bf16)
    for j in range(3):
        mpk_ref[:, P + 1 - j:P + 1 - j + Wo, j * Cout:(j + 1) * Cout] = mid

    # halo rows outside [0, Ho) are conv2's zero padding -> clear whole rows
    @pl.when(r == 0)
    def _():
        mpk_ref[0:1, :, :] = jnp.zeros((1, Wo + 2 * P, 3 * Cout), bf16)

    @pl.when(r == pl.num_programs(1) - 1)
    def _():
        mpk_ref[nh - 1:nh, :, :] = jnp.zeros((1, Wo + 2 * P, 3 * Cout), bf16)

    # ---- conv2: 3x3 / stride 1, pad 1 -> TH output rows ---------------------
    acc2 = jnp.zeros((TH * Wo, Cout), jnp.float32)
    for ky in range(3):
        blk = mpk_ref[ky:ky + TH, P:P + Wo, :]               # (TH, Wo, 3*Cout)
        acc2 += jnp.dot(blk.reshape(TH * Wo, 3 * Cout), w2_ref[ky],
                        preferred_element_type=jnp.float32)
    out2 = acc2 + b2_ref[...]

    # ---- residual branch: strided read of the unshifted (kx=1) tap ----------
    res_in = xpk_ref[ds(s + 1, TH), ds(P, Wo), Cin:2 * Cin]  # (TH, Wo, Cin)
    if has_downsample:
        ident = jnp.dot(res_in.reshape(TH * Wo, Cin), wds_ref[...],
                        preferred_element_type=jnp.float32) + bds_ref[...]
    else:
        # TODO(synk): residual uses the bf16-cast activations; keep an f32
        # copy if closer parity with the f32 PyTorch reference is required.
        ident = res_in.reshape(TH * Wo, Cout).astype(jnp.float32)

    out = jnp.maximum(out2 + ident, 0.0)
    out_ref[0] = out.reshape(TH, Wo, Cout).astype(out_ref.dtype)


def _fold_bn(gamma, beta, mean, var, eps=1e-5):
    s = gamma / jnp.sqrt(var + eps)
    return s, beta - mean * s


def _vmem_capacity_bytes():
    try:
        return int(pltpu.get_tpu_info().vmem_capacity_bytes)
    except Exception:
        return 64 * 1024 * 1024        # conservative: v7x per-TensorCore VMEM


def _pick_row_tile(Ho, target):
    best = Ho
    for t in range(min(target, Ho), 0, -1):
        if Ho % t == 0:
            best = t
            break
    if best < min(4, Ho):              # avoid pathological tiny tiles
        best = Ho
    return best


def basic_block_forward(x_nchw, params, *, stride=1, row_tile=8):
    """Fused BasicBlock forward. Input/output are NCHW float32."""
    N, Cin, H, W = x_nchw.shape
    Cout = params["w1"].shape[-1]
    has_ds = (stride != 1) or (Cin != Cout)
    Ho = (H - 1) // stride + 1
    Wo = (W - 1) // stride + 1
    TH = _pick_row_tile(Ho, row_tile)
    nrt = Ho // TH
    rows_in = stride * (TH + 1) + 3

    # NHWC + bf16 activations for the MXU.
    x = jnp.transpose(x_nchw, (0, 2, 3, 1)).astype(jnp.bfloat16)

    # Fold BN scale into the conv weights and pack kx into the contraction.
    s1, b1 = _fold_bn(*params["bn1"])
    s2, b2 = _fold_bn(*params["bn2"])
    w1p = (params["w1"] * s1).reshape(3, 3 * Cin, Cout).astype(jnp.bfloat16)
    w2p = (params["w2"] * s2).reshape(3, 3 * Cout, Cout).astype(jnp.bfloat16)
    b1 = b1.reshape(1, Cout).astype(jnp.float32)
    b2 = b2.reshape(1, Cout).astype(jnp.float32)

    def full(shape):
        return pl.BlockSpec(shape, lambda b, r, _n=len(shape): (0,) * _n)

    args = [x, w1p, b1, w2p, b2]
    in_specs = [
        pl.BlockSpec((1, H, W, Cin), lambda b, r: (b, 0, 0, 0)),
        full((3, 3 * Cin, Cout)), full((1, Cout)),
        full((3, 3 * Cout, Cout)), full((1, Cout)),
    ]
    wds_bytes = 0
    if has_ds:
        sds, bds = _fold_bn(*params["bn_ds"])
        wdsp = (params["wds"] * sds).astype(jnp.bfloat16)
        bds = bds.reshape(1, Cout).astype(jnp.float32)
        args += [wdsp, bds]
        in_specs += [full((Cin, Cout)), full((1, Cout))]
        wds_bytes = int(wdsp.size) * 2

    kernel = functools.partial(_basic_block_kernel, H=H, W=W, Cin=Cin,
                               Cout=Cout, stride=stride, TH=TH,
                               has_downsample=has_ds)

    # Generation-aware VMEM budget (64 MiB on v7x vs 128 MiB on v5e/v6e).
    bias_bytes = (3 if has_ds else 2) * Cout * 4
    blk_bytes = 2 * (H * W * Cin * 2                       # x block (2 buffers)
                     + (int(w1p.size) + int(w2p.size)) * 2 + wds_bytes
                     + bias_bytes
                     + TH * Wo * Cout * 4)                 # output block
    scratch_bytes = (rows_in * (W + 2 * _PAD) * 3 * Cin * 2
                     + (TH + 2) * (Wo + 2 * _PAD) * 3 * Cout * 2)
    live_bytes = (TH + 2) * Wo * (3 * Cin + 5 * Cout) * 4  # lhs/mid/acc estimate
    need = blk_bytes + scratch_bytes + live_bytes
    vmem_limit = max(16 * 1024 * 1024,
                     min(int(1.5 * need) + (8 << 20),
                         int(0.85 * _vmem_capacity_bytes())))

    flops = 2 * N * Ho * Wo * (9 * Cin * Cout + 9 * Cout * Cout
                               + (Cin * Cout if has_ds else 0))
    bytes_accessed = (int(x.size) * 2
                      + (int(w1p.size) + int(w2p.size)) * 2 + wds_bytes
                      + N * Ho * Wo * Cout * 4)

    out_nhwc = pl.pallas_call(
        kernel,
        out_shape=jax.ShapeDtypeStruct((N, Ho, Wo, Cout), jnp.float32),
        grid_spec=pltpu.PrefetchScalarGridSpec(
            num_scalar_prefetch=0,
            grid=(N, nrt),
            in_specs=in_specs,
            out_specs=pl.BlockSpec((1, TH, Wo, Cout),
                                   lambda b, r: (b, r, 0, 0)),
            scratch_shapes=[
                pltpu.VMEM((rows_in, W + 2 * _PAD, 3 * Cin), jnp.bfloat16),
                pltpu.VMEM((TH + 2, Wo + 2 * _PAD, 3 * Cout), jnp.bfloat16),
            ],
        ),
        compiler_params=pltpu.CompilerParams(
            dimension_semantics=("parallel", "parallel"),
            vmem_limit_bytes=vmem_limit,
        ),
        cost_estimate=pl.CostEstimate(flops=flops, transcendentals=0,
                                      bytes_accessed=bytes_accessed),
    )(*args)

    return jnp.transpose(out_nhwc, (0, 3, 1, 2))           # back to NCHW


def _reference(x_nchw, params, stride):
    """Pure-JAX reference (eval-mode BN), PyTorch padding semantics."""
    x = jnp.transpose(x_nchw, (0, 2, 3, 1)).astype(jnp.float32)

    def conv3x3(v, w, s):
        return lax.conv_general_dilated(
            v, w, (s, s), ((1, 1), (1, 1)),
            dimension_numbers=("NHWC", "HWIO", "NHWC"))

    def conv1x1(v, w, s):
        return lax.conv_general_dilated(
            v, w, (s, s), ((0, 0), (0, 0)),
            dimension_numbers=("NHWC", "HWIO", "NHWC"))

    def bn(v, gamma, beta, mean, var, eps=1e-5):
        return (v - mean) / jnp.sqrt(var + eps) * gamma + beta

    out = jax.nn.relu(bn(conv3x3(x, params["w1"], stride), *params["bn1"]))
    out = bn(conv3x3(out, params["w2"], 1), *params["bn2"])
    Cin, Cout = x.shape[-1], params["w1"].shape[-1]
    if stride != 1 or Cin != Cout:
        ident = bn(conv1x1(x, params["wds"].reshape(1, 1, Cin, Cout), stride),
                   *params["bn_ds"])
    else:
        ident = x
    return jnp.transpose(jax.nn.relu(out + ident), (0, 3, 1, 2))


def make_params(key, in_channels, out_channels, stride):
    ks = jax.random.split(key, 12)

    def bn_params(k0, k1, k2, k3, c):
        gamma = 0.5 + jax.random.uniform(k0, (c,), jnp.float32)
        beta = 0.1 * jax.random.normal(k1, (c,), jnp.float32)
        mean = 0.1 * jax.random.normal(k2, (c,), jnp.float32)
        var = 0.5 + jax.random.uniform(k3, (c,), jnp.float32)
        return (gamma, beta, mean, var)

    params = {
        # conv weights stored HWIO (kh, kw, in, out)
        "w1": 0.1 * jax.random.normal(ks[0], (3, 3, in_channels, out_channels),
                                      jnp.float32),
        "w2": 0.1 * jax.random.normal(ks[1], (3, 3, out_channels, out_channels),
                                      jnp.float32),
        "bn1": bn_params(ks[2], ks[3], ks[4], ks[5], out_channels),
        "bn2": bn_params(ks[6], ks[7], ks[8], ks[9], out_channels),
    }
    if stride != 1 or in_channels != out_channels:
        params["wds"] = 0.1 * jax.random.normal(
            ks[10], (in_channels, out_channels), jnp.float32)
        params["bn_ds"] = bn_params(ks[11], ks[2], ks[7], ks[4], out_channels)
    return params


if __name__ == "__main__":
    key = jax.random.PRNGKey(0)
    k_x1, k_p1, k_x2, k_p2 = jax.random.split(key, 4)

    # Case 1: Cin != Cout -> 1x1-conv downsample branch exercised.
    N, Cin, H, W = 2, 4, 16, 16
    Cout, stride = 8, 1
    x1 = jax.random.normal(k_x1, (N, Cin, H, W), jnp.float32)
    p1 = make_params(k_p1, Cin, Cout, stride)
    out1 = jax.block_until_ready(basic_block_forward(x1, p1, stride=stride))
    ref1 = jax.block_until_ready(_reference(x1, p1, stride))
    assert out1.shape == ref1.shape
    assert jnp.allclose(out1, ref1, atol=5e-2, rtol=5e-2), \
        "mismatch (downsample case)"

    # Case 2: Cin == Cout, stride=1 -> pure identity residual branch.
    x2 = jax.random.normal(k_x2, (N, Cout, H, W), jnp.float32)
    p2 = make_params(k_p2, Cout, Cout, 1)
    out2 = jax.block_until_ready(basic_block_forward(x2, p2, stride=1))
    ref2 = jax.block_until_ready(_reference(x2, p2, 1))
    assert out2.shape == ref2.shape
    assert jnp.allclose(out2, ref2, atol=5e-2, rtol=5e-2), \
        "mismatch (identity case)"

    print("KERNEL_OK")
</pallas_src>

<mosaic_0001>
module attributes {stable_mosaic.version = 11 : i64} {
  func.func @_basic_block_kernel(%arg0: i32, %arg1: i32, %arg2: memref<1x16x16x4xbf16, #tpu.memory_space<vmem>>, %arg3: memref<3x12x8xbf16, #tpu.memory_space<vmem>>, %arg4: memref<1x8xf32, #tpu.memory_space<vmem>>, %arg5: memref<3x24x8xbf16, #tpu.memory_space<vmem>>, %arg6: memref<1x8xf32, #tpu.memory_space<vmem>>, %arg7: memref<4x8xbf16, #tpu.memory_space<vmem>>, %arg8: memref<1x8xf32, #tpu.memory_space<vmem>>, %arg9: memref<1x8x16x8xf32, #tpu.memory_space<vmem>>, %arg10: memref<12x32x12xbf16, #tpu.memory_space<vmem>>, %arg11: memref<10x32x24xbf16, #tpu.memory_space<vmem>>) attributes {dimension_semantics = [#tpu.dimension_semantics<parallel>, #tpu.dimension_semantics<parallel>], iteration_bounds = array<i64: 2, 2>, scalar_prefetch = 0 : i64, scratch_operands = 2 : i64, tpu.core_type = #tpu.core_type<tc>, window_params = [{transform_indices = @transform_0, window_bounds = array<i64: 1, 16, 16, 4>}, {pipeline_mode = #tpu.pipeline_mode<synchronous>, transform_indices = @transform_1, window_bounds = array<i64: 3, 12, 8>}, {pipeline_mode = #tpu.pipeline_mode<synchronous>, transform_indices = @transform_2, window_bounds = array<i64: 1, 8>}, {pipeline_mode = #tpu.pipeline_mode<synchronous>, transform_indices = @transform_3, window_bounds = array<i64: 3, 24, 8>}, {pipeline_mode = #tpu.pipeline_mode<synchronous>, transform_indices = @transform_4, window_bounds = array<i64: 1, 8>}, {pipeline_mode = #tpu.pipeline_mode<synchronous>, transform_indices = @transform_5, window_bounds = array<i64: 4, 8>}, {pipeline_mode = #tpu.pipeline_mode<synchronous>, transform_indices = @transform_6, window_bounds = array<i64: 1, 8>}, {transform_indices = @transform_7, window_bounds = array<i64: 1, 8, 16, 8>}]} {
    %c8_i32 = arith.constant 8 : i32
    %0 = arith.muli %arg1, %c8_i32 : i32
    %c1_i32 = arith.constant 1 : i32
    %1 = arith.subi %0, %c1_i32 : i32
    %c1_i32_0 = arith.constant 1 : i32
    %2 = arith.muli %c1_i32_0, %1 : i32
    %c1_i32_1 = arith.constant 1 : i32
    %3 = arith.subi %2, %c1_i32_1 : i32
    %cst = arith.constant 0.000000e+00 : bf16
    %4 = vector.broadcast %cst : bf16 to vector<12x1x4xbf16>
    %c0 = arith.constant 0 : index
    %c8 = arith.constant 8 : index
    %c0_2 = arith.constant 0 : index
    %5 = vector.load %arg10[%c0, %c8, %c0_2] : memref<12x32x12xbf16, #tpu.memory_space<vmem>>, vector<12x1x4xbf16>
    tpu.vector_store %arg10[%c0, %c8, %c0_2], %4 {strides = array<i32>} : memref<12x32x12xbf16, #tpu.memory_space<vmem>>, vector<12x1x4xbf16>,
    %cst_3 = arith.constant 0.000000e+00 : bf16
    %6 = vector.broadcast %cst_3 : bf16 to vector<12x1x4xbf16>
    %c0_4 = arith.constant 0 : index
    %c23 = arith.constant 23 : index
    %c8_5 = arith.constant 8 : index
    %7 = vector.load %arg10[%c0_4, %c23, %c8_5] : memref<12x32x12xbf16, #tpu.memory_space<vmem>>, vector<12x1x4xbf16>
    tpu.vector_store %arg10[%c0_4, %c23, %c8_5], %6 {strides = array<i32>} : memref<12x32x12xbf16, #tpu.memory_space<vmem>>, vector<12x1x4xbf16>,
    %c0_i32 = arith.constant 0 : i32
    %8 = arith.addi %3, %c0_i32 : i32
    %c0_i32_6 = arith.constant 0 : i32
    %c15_i32 = arith.constant 15 : i32
    %9 = arith.maxsi %c0_i32_6, %8 : i32
    %10 = arith.minsi %c15_i32, %9 : i32
    %c0_i32_7 = arith.constant 0 : i32
    %11 = arith.cmpi sge, %8, %c0_i32_7 : i32
    %c16_i32 = arith.constant 16 : i32
    %12 = arith.cmpi slt, %8, %c16_i32 : i32
    %13 = arith.andi %11, %12 : i1
    %14 = arith.extui %13 : i1 to i32
    %15 = arith.sitofp %14 : i32 to f32
    %16 = arith.truncf %15 : f32 to bf16
    %c0_8 = arith.constant 0 : index
    %17 = arith.index_cast %10 : i32 to index
    %c0_9 = arith.constant 0 : index
    %c0_10 = arith.constant 0 : index
    %18 = vector.load %arg2[%c0_8, %17, %c0_9, %c0_10] : memref<1x16x16x4xbf16, #tpu.memory_space<vmem>>, vector<1x1x16x4xbf16>
    %19 = vector.shape_cast %18 : vector<1x1x16x4xbf16> to vector<1x16x4xbf16>
    %20 = vector.broadcast %16 : bf16 to vector<1x16x4xbf16>
    %21 = arith.mulf %19, %20 : vector<1x16x4xbf16>
    %c0_11 = arith.constant 0 : index
    %c9 = arith.constant 9 : index
    %c0_12 = arith.constant 0 : index
    %22 = vector.load %arg10[%c0_11, %c9, %c0_12] : memref<12x32x12xbf16, #tpu.memory_space<vmem>>, vector<1x16x4xbf16>
    tpu.vector_store %arg10[%c0_11, %c9, %c0_12], %21 {strides = array<i32>} : memref<12x32x12xbf16, #tpu.memory_space<vmem>>, vector<1x16x4xbf16>,
    %c0_13 = arith.constant 0 : index
    %c8_14 = arith.constant 8 : index
    %c4 = arith.constant 4 : index
    %23 = vector.load %arg10[%c0_13, %c8_14, %c4] : memref<12x32x12xbf16, #tpu.memory_space<vmem>>, vector<1x16x4xbf16>
    tpu.vector_store %arg10[%c0_13, %c8_14, %c4], %21 {strides = array<i32>} : memref<12x32x12xbf16, #tpu.memory_space<vmem>>, vector<1x16x4xbf16>,
    %c0_15 = arith.constant 0 : index
    %c7 = arith.constant 7 : index
    %c8_16 = arith.constant 8 : index
    %24 = vector.load %arg10[%c0_15, %c7, %c8_16] : memref<12x32x12xbf16, #tpu.memory_space<vmem>>, vector<1x16x4xbf16>
    tpu.vector_store %arg10[%c0_15, %c7, %c8_16], %21 {strides = array<i32>} : memref<12x32x12xbf16, #tpu.memory_space<vmem>>, vector<1x16x4xbf16>,
    %c1_i32_17 = arith.constant 1 : i32
    %25 = arith.addi %3, %c1_i32_17 : i32
    %c0_i32_18 = arith.constant 0 : i32
    %c15_i32_19 = arith.constant 15 : i32
    %26 = arith.maxsi %c0_i32_18, %25 : i32
    %27 = arith.minsi %c15_i32_19, %26 : i32
    %c0_i32_20 = arith.constant 0 : i32
    %28 = arith.cmpi sge, %25, %c0_i32_20 : i32
    %c16_i32_21 = arith.constant 16 : i32
    %29 = arith.cmpi slt, %25, %c16_i32_21 : i32
    %30 = arith.andi %28, %29 : i1
    %31 = arith.extui %30 : i1 to i32
    %32 = arith.sitofp %31 : i32 to f32
    %33 = arith.truncf %32 : f32 to bf16
    %c0_22 = arith.constant 0 : index
    %34 = arith.index_cast %27 : i32 to index
    %c0_23 = arith.constant 0 : index
    %c0_24 = arith.constant 0 : index
    %35 = vector.load %arg2[%c0_22, %34, %c0_23, %c0_24] : memref<1x16x16x4xbf16, #tpu.memory_space<vmem>>, vector<1x1x16x4xbf16>
    %36 = vector.shape_cast %35 : vector<1x1x16x4xbf16> to vector<1x16x4xbf16>
    %37 = vector.broadcast %33 : bf16 to vector<1x16x4xbf16>
    %38 = arith.mulf %36, %37 : vector<1x16x4xbf16>
    %c1 = arith.constant 1 : index
    %c9_25 = arith.constant 9 : index
    %c0_26 = arith.constant 0 : index
    %39 = vector.load %arg10[%c1, %c9_25, %c0_26] : memref<12x32x12xbf16, #tpu.memory_space<vmem>>, vector<1x16x4xbf16>
    tpu.vector_store %arg10[%c1, %c9_25, %c0_26], %38 {strides = array<i32>} : memref<12x32x12xbf16, #tpu.memory_space<vmem>>, vector<1x16x4xbf16>,
    %c1_27 = arith.constant 1 : index
    %c8_28 = arith.constant 8 : index
    %c4_29 = arith.constant 4 : index
    %40 = vector.load %arg10[%c1_27, %c8_28, %c4_29] : memref<12x32x12xbf16, #tpu.memory_space<vmem>>, vector<1x16x4xbf16>
    tpu.vector_store %arg10[%c1_27, %c8_28, %c4_29], %38 {strides = array<i32>} : memref<12x32x12xbf16, #tpu.memory_space<vmem>>, vector<1x16x4xbf16>,
    %c1_30 = arith.constant 1 : index
    %c7_31 = arith.constant 7 : index
    %c8_32 = arith.constant 8 : index
    %41 = vector.load %arg10[%c1_30, %c7_31, %c8_32] : memref<12x32x12xbf16, #tpu.memory_space<vmem>>, vector<1x16x4xbf16>
    tpu.vector_store %arg10[%c1_30, %c7_31, %c8_32], %38 {strides = array<i32>} : memref<12x32x12xbf16, #tpu.memory_space<vmem>>, vector<1x16x4xbf16>,
    %c2_i32 = arith.constant 2 : i32
    %42 = arith.addi %3, %c2_i32 : i32
    %c0_i32_33 = arith.constant 0 : i32
    %c15_i32_34 = arith.constant 15 : i32
    %43 = arith.maxsi %c0_i32_33, %42 : i32
    %44 = arith.minsi %c15_i32_34, %43 : i32
    %c0_i32_35 = arith.constant 0 : i32
    %45 = arith.cmpi sge, %42, %c0_i32_35 : i32
    %c16_i32_36 = arith.constant 16 : i32
    %46 = arith.cmpi slt, %42, %c16_i32_36 : i32
    %47 = arith.andi %45, %46 : i1
    %48 = arith.extui %47 : i1 to i32
    %49 = arith.sitofp %48 : i32 to f32
    %50 = arith.truncf %49 : f32 to bf16
    %c0_37 = arith.constant 0 : index
    %51 = arith.index_cast %44 : i32 to index
    %c0_38 = arith.constant 0 : index
    %c0_39 = arith.constant 0 : index
    %52 = vector.load %arg2[%c0_37, %51, %c0_38, %c0_39] : memref<1x16x16x4xbf16, #tpu.memory_space<vmem>>, vector<1x1x16x4xbf16>
    %53 = vector.shape_cast %52 : vector<1x1x16x4xbf16> to vector<1x16x4xbf16>
    %54 = vector.broadcast %50 : bf16 to vector<1x16x4xbf16>
    %55 = arith.mulf %53, %54 : vector<1x16x4xbf16>
    %c2 = arith.constant 2 : index
    %c9_40 = arith.constant 9 : index
    %c0_41 = arith.constant 0 : index
    %56 = vector.load %arg10[%c2, %c9_40, %c0_41] : memref<12x32x12xbf16, #tpu.memory_space<vmem>>, vector<1x16x4xbf16>
    tpu.vector_store %arg10[%c2, %c9_40, %c0_41], %55 {strides = array<i32>} : memref<12x32x12xbf16, #tpu.memory_space<vmem>>, vector<1x16x4xbf16>,
    %c2_42 = arith.constant 2 : index
    %c8_43 = arith.constant 8 : index
    %c4_44 = arith.constant 4 : index
    %57 = vector.load %arg10[%c2_42, %c8_43, %c4_44] : memref<12x32x12xbf16, #tpu.memory_space<vmem>>, vector<1x16x4xbf16>
    tpu.vector_store %arg10[%c2_42, %c8_43, %c4_44], %55 {strides = array<i32>} : memref<12x32x12xbf16, #tpu.memory_space<vmem>>, vector<1x16x4xbf16>,
    %c2_45 = arith.constant 2 : index
    %c7_46 = arith.constant 7 : index
    %c8_47 = arith.constant 8 : index
    %58 = vector.load %arg10[%c2_45, %c7_46, %c8_47] : memref<12x32x12xbf16, #tpu.memory_space<vmem>>, vector<1x16x4xbf16>
    tpu.vector_store %arg10[%c2_45, %c7_46, %c8_47], %55 {strides = array<i32>} : memref<12x32x12xbf16, #tpu.memory_space<vmem>>, vector<1x16x4xbf16>,
    %c3_i32 = arith.constant 3 : i32
    %59 = arith.addi %3, %c3_i32 : i32
    %c0_i32_48 = arith.constant 0 : i32
    %c15_i32_49 = arith.constant 15 : i32
    %60 = arith.maxsi %c0_i32_48, %59 : i32
    %61 = arith.minsi %c15_i32_49, %60 : i32
    %c0_i32_50 = arith.constant 0 : i32
    %62 = arith.cmpi sge, %59, %c0_i32_50 : i32
    %c16_i32_51 = arith.constant 16 : i32
    %63 = arith.cmpi slt, %59, %c16_i32_51 : i32
    %64 = arith.andi %62, %63 : i1
    %65 = arith.extui %64 : i1 to i32
    %66 = arith.sitofp %65 : i32 to f32
    %67 = arith.truncf %66 : f32 to bf16
    %c0_52 = arith.constant 0 : index
    %68 = arith.index_cast %61 : i32 to index
    %c0_53 = arith.constant 0 : index
    %c0_54 = arith.constant 0 : index
    %69 = vector.load %arg2[%c0_52, %68, %c0_53, %c0_54] : memref<1x16x16x4xbf16, #tpu.memory_space<vmem>>, vector<1x1x16x4xbf16>
    %70 = vector.shape_cast %69 : vector<1x1x16x4xbf16> to vector<1x16x4xbf16>
    %71 = vector.broadcast %67 : bf16 to vector<1x16x4xbf16>
    %72 = arith.mulf %70, %71 : vector<1x16x4xbf16>
    %c3 = arith.constant 3 : index
    %c9_55 = arith.constant 9 : index
    %c0_56 = arith.constant 0 : index
    %73 = vector.load %arg10[%c3, %c9_55, %c0_56] : memref<12x32x12xbf16, #tpu.memory_space<vmem>>, vector<1x16x4xbf16>
    tpu.vector_store %arg10[%c3, %c9_55, %c0_56], %72 {strides = array<i32>} : memref<12x32x12xbf16, #tpu.memory_space<vmem>>, vector<1x16x4xbf16>,
    %c3_57 = arith.constant 3 : index
    %c8_58 = arith.constant 8 : index
    %c4_59 = arith.constant 4 : index
    %74 = vector.load %arg10[%c3_57, %c8_58, %c4_59] : memref<12x32x12xbf16, #tpu.memory_space<vmem>>, vector<1x16x4xbf16>
    tpu.vector_store %arg10[%c3_57, %c8_58, %c4_59], %72 {strides = array<i32>} : memref<12x32x12xbf16, #tpu.memory_space<vmem>>, vector<1x16x4xbf16>,
    %c3_60 = arith.constant 3 : index
    %c7_61 = arith.constant 7 : index
    %c8_62 = arith.constant 8 : index
    %75 = vector.load %arg10[%c3_60, %c7_61, %c8_62] : memref<12x32x12xbf16, #tpu.memory_space<vmem>>, vector<1x16x4xbf16>
    tpu.vector_store %arg10[%c3_60, %c7_61, %c8_62], %72 {strides = array<i32>} : memref<12x32x12xbf16, #tpu.memory_space<vmem>>, vector<1x16x4xbf16>,
    %c4_i32 = arith.constant 4 : i32
    %76 = arith.addi %3, %c4_i32 : i32
    %c0_i32_63 = arith.constant 0 : i32
    %c15_i32_64 = arith.constant 15 : i32
    %77 = arith.maxsi %c0_i32_63, %76 : i32
    %78 = arith.minsi %c15_i32_64, %77 : i32
    %c0_i32_65 = arith.constant 0 : i32
    %79 = arith.cmpi sge, %76, %c0_i32_65 : i32
    %c16_i32_66 = arith.constant 16 : i32
    %80 = arith.cmpi slt, %76, %c16_i32_66 : i32
    %81 = arith.andi %79, %80 : i1
    %82 = arith.extui %81 : i1 to i32
    %83 = arith.sitofp %82 : i32 to f32
    %84 = arith.truncf %83 : f32 to bf16
    %c0_67 = arith.constant 0 : index
    %85 = arith.index_cast %78 : i32 to index
    %c0_68 = arith.constant 0 : index
    %c0_69 = arith.constant 0 : index
    %86 = vector.load %arg2[%c0_67, %85, %c0_68, %c0_69] : memref<1x16x16x4xbf16, #tpu.memory_space<vmem>>, vector<1x1x16x4xbf16>
    %87 = vector.shape_cast %86 : vector<1x1x16x4xbf16> to vector<1x16x4xbf16>
    %88 = vector.broadcast %84 : bf16 to vector<1x16x4xbf16>
    %89 = arith.mulf %87, %88 : vector<1x16x4xbf16>
    %c4_70 = arith.constant 4 : index
    %c9_71 = arith.constant 9 : index
    %c0_72 = arith.constant 0 : index
    %90 = vector.load %arg10[%c4_70, %c9_71, %c0_72] : memref<12x32x12xbf16, #tpu.memory_space<vmem>>, vector<1x16x4xbf16>
    tpu.vector_store %arg10[%c4_70, %c9_71, %c0_72], %89 {strides = array<i32>} : memref<12x32x12xbf16, #tpu.memory_space<vmem>>, vector<1x16x4xbf16>,
    %c4_73 = arith.constant 4 : index
    %c8_74 = arith.constant 8 : index
    %c4_75 = arith.constant 4 : index
    %91 = vector.load %arg10[%c4_73, %c8_74, %c4_75] : memref<12x32x12xbf16, #tpu.memory_space<vmem>>, vector<1x16x4xbf16>
    tpu.vector_store %arg10[%c4_73, %c8_74, %c4_75], %89 {strides = array<i32>} : memref<12x32x12xbf16, #tpu.memory_space<vmem>>, vector<1x16x4xbf16>,
    %c4_76 = arith.constant 4 : index
    %c7_77 = arith.constant 7 : index
    %c8_78 = arith.constant 8 : index
    %92 = vector.load %arg10[%c4_76, %c7_77, %c8_78] : memref<12x32x12xbf16, #tpu.memory_space<vmem>>, vector<1x16x4xbf16>
    tpu.vector_store %arg10[%c4_76, %c7_77, %c8_78], %89 {strides = array<i32>} : memref<12x32x12xbf16, #tpu.memory_space<vmem>>, vector<1x16x4xbf16>,
    %c5_i32 = arith.constant 5 : i32
    %93 = arith.addi %3, %c5_i32 : i32
    %c0_i32_79 = arith.constant 0 : i32
    %c15_i32_80 = arith.constant 15 : i32
    %94 = arith.maxsi %c0_i32_79, %93 : i32
    %95 = arith.minsi %c15_i32_80, %94 : i32
    %c0_i32_81 = arith.constant 0 : i32
    %96 = arith.cmpi sge, %93, %c0_i32_81 : i32
    %c16_i32_82 = arith.constant 16 : i32
    %97 = arith.cmpi slt, %93, %c16_i32_82 : i32
    %98 = arith.andi %96, %97 : i1
    %99 = arith.extui %98 : i1 to i32
    %100 = arith.sitofp %99 : i32 to f32
    %101 = arith.truncf %100 : f32 to bf16
    %c0_83 = arith.constant 0 : index
    %102 = arith.index_cast %95 : i32 to index
    %c0_84 = arith.constant 0 : index
    %c0_85 = arith.constant 0 : index
    %103 = vector.load %arg2[%c0_83, %102, %c0_84, %c0_85] : memref<1x16x16x4xbf16, #tpu.memory_space<vmem>>, vector<1x1x16x4xbf16>
    %104 = vector.shape_cast %103 : vector<1x1x16x4xbf16> to vector<1x16x4xbf16>
    %105 = vector.broadcast %101 : bf16 to vector<1x16x4xbf16>
    %106 = arith.mulf %104, %105 : vector<1x16x4xbf16>
    %c5 = arith.constant 5 : index
    %c9_86 = arith.constant 9 : index
    %c0_87 = arith.constant 0 : index
    %107 = vector.load %arg10[%c5, %c9_86, %c0_87] : memref<12x32x12xbf16, #tpu.memory_space<vmem>>, vector<1x16x4xbf16>
    tpu.vector_store %arg10[%c5, %c9_86, %c0_87], %106 {strides = array<i32>} : memref<12x32x12xbf16, #tpu.memory_space<vmem>>, vector<1x16x4xbf16>,
    %c5_88 = arith.constant 5 : index
    %c8_89 = arith.constant 8 : index
    %c4_90 = arith.constant 4 : index
    %108 = vector.load %arg10[%c5_88, %c8_89, %c4_90] : memref<12x32x12xbf16, #tpu.memory_space<vmem>>, vector<1x16x4xbf16>
    tpu.vector_store %arg10[%c5_88, %c8_89, %c4_90], %106 {strides = array<i32>} : memref<12x32x12xbf16, #tpu.memory_space<vmem>>, vector<1x16x4xbf16>,
    %c5_91 = arith.constant 5 : index
    %c7_92 = arith.constant 7 : index
    %c8_93 = arith.constant 8 : index
    %109 = vector.load %arg10[%c5_91, %c7_92, %c8_93] : memref<12x32x12xbf16, #tpu.memory_space<vmem>>, vector<1x16x4xbf16>
    tpu.vector_store %arg10[%c5_91, %c7_92, %c8_93], %106 {strides = array<i32>} : memref<12x32x12xbf16, #tpu.memory_space<vmem>>, vector<1x16x4xbf16>,
    %c6_i32 = arith.constant 6 : i32
    %110 = arith.addi %3, %c6_i32 : i32
    %c0_i32_94 = arith.constant 0 : i32
    %c15_i32_95 = arith.constant 15 : i32
    %111 = arith.maxsi %c0_i32_94, %110 : i32
    %112 = arith.minsi %c15_i32_95, %111 : i32
    %c0_i32_96 = arith.constant 0 : i32
    %113 = arith.cmpi sge, %110, %c0_i32_96 : i32
    %c16_i32_97 = arith.constant 16 : i32
    %114 = arith.cmpi slt, %110, %c16_i32_97 : i32
    %115 = arith.andi %113, %114 : i1
    %116 = arith.extui %115 : i1 to i32
    %117 = arith.sitofp %116 : i32 to f32
    %118 = arith.truncf %117 : f32 to bf16
    %c0_98 = arith.constant 0 : index
    %119 = arith.index_cast %112 : i32 to index
    %c0_99 = arith.constant 0 : index
    %c0_100 = arith.constant 0 : index
    %120 = vector.load %arg2[%c0_98, %119, %c0_99, %c0_100] : memref<1x16x16x4xbf16, #tpu.memory_space<vmem>>, vector<1x1x16x4xbf16>
    %121 = vector.shape_cast %120 : vector<1x1x16x4xbf16> to vector<1x16x4xbf16>
    %122 = vector.broadcast %118 : bf16 to vector<1x16x4xbf16>
    %123 = arith.mulf %121, %122 : vector<1x16x4xbf16>
    %c6 = arith.constant 6 : index
    %c9_101 = arith.constant 9 : index
    %c0_102 = arith.constant 0 : index
    %124 = vector.load %arg10[%c6, %c9_101, %c0_102] : memref<12x32x12xbf16, #tpu.memory_space<vmem>>, vector<1x16x4xbf16>
    tpu.vector_store %arg10[%c6, %c9_101, %c0_102], %123 {strides = array<i32>} : memref<12x32x12xbf16, #tpu.memory_space<vmem>>, vector<1x16x4xbf16>,
    %c6_103 = arith.constant 6 : index
    %c8_104 = arith.constant 8 : index
    %c4_105 = arith.constant 4 : index
    %125 = vector.load %arg10[%c6_103, %c8_104, %c4_105] : memref<12x32x12xbf16, #tpu.memory_space<vmem>>, vector<1x16x4xbf16>
    tpu.vector_store %arg10[%c6_103, %c8_104, %c4_105], %123 {strides = array<i32>} : memref<12x32x12xbf16, #tpu.memory_space<vmem>>, vector<1x16x4xbf16>,
    %c6_106 = arith.constant 6 : index
    %c7_107 = arith.constant 7 : index
    %c8_108 = arith.constant 8 : index
    %126 = vector.load %arg10[%c6_106, %c7_107, %c8_108] : memref<12x32x12xbf16, #tpu.memory_space<vmem>>, vector<1x16x4xbf16>
    tpu.vector_store %arg10[%c6_106, %c7_107, %c8_108], %123 {strides = array<i32>} : memref<12x32x12xbf16, #tpu.memory_space<vmem>>, vector<1x16x4xbf16>,
    %c7_i32 = arith.constant 7 : i32
    %127 = arith.addi %3, %c7_i32 : i32
    %c0_i32_109 = arith.constant 0 : i32
    %c15_i32_110 = arith.constant 15 : i32
    %128 = arith.maxsi %c0_i32_109, %127 : i32
    %129 = arith.minsi %c15_i32_110, %128 : i32
    %c0_i32_111 = arith.constant 0 : i32
    %130 = arith.cmpi sge, %127, %c0_i32_111 : i32
    %c16_i32_112 = arith.constant 16 : i32
    %131 = arith.cmpi slt, %127, %c16_i32_112 : i32
    %132 = arith.andi %130, %131 : i1
    %133 = arith.extui %132 : i1 to i32
    %134 = arith.sitofp %133 : i32 to f32
    %135 = arith.truncf %134 : f32 to bf16
    %c0_113 = arith.constant 0 : index
    %136 = arith.index_cast %129 : i32 to index
    %c0_114 = arith.constant 0 : index
    %c0_115 = arith.constant 0 : index
    %137 = vector.load %arg2[%c0_113, %136, %c0_114, %c0_115] : memref<1x16x16x4xbf16, #tpu.memory_space<vmem>>, vector<1x1x16x4xbf16>
    %138 = vector.shape_cast %137 : vector<1x1x16x4xbf16> to vector<1x16x4xbf16>
    %139 = vector.broadcast %135 : bf16 to vector<1x16x4xbf16>
    %140 = arith.mulf %138, %139 : vector<1x16x4xbf16>
    %c7_116 = arith.constant 7 : index
    %c9_117 = arith.constant 9 : index
    %c0_118 = arith.constant 0 : index
    %141 = vector.load %arg10[%c7_116, %c9_117, %c0_118] : memref<12x32x12xbf16, #tpu.memory_space<vmem>>, vector<1x16x4xbf16>
    tpu.vector_store %arg10[%c7_116, %c9_117, %c0_118], %140 {strides = array<i32>} : memref<12x32x12xbf16, #tpu.memory_space<vmem>>, vector<1x16x4xbf16>,
    %c7_119 = arith.constant 7 : index
    %c8_120 = arith.constant 8 : index
    %c4_121 = arith.constant 4 : index
    %142 = vector.load %arg10[%c7_119, %c8_120, %c4_121] : memref<12x32x12xbf16, #tpu.memory_space<vmem>>, vector<1x16x4xbf16>
    tpu.vector_store %arg10[%c7_119, %c8_120, %c4_121], %140 {strides = array<i32>} : memref<12x32x12xbf16, #tpu.memory_space<vmem>>, vector<1x16x4xbf16>,
    %c7_122 = arith.constant 7 : index
    %c7_123 = arith.constant 7 : index
    %c8_124 = arith.constant 8 : index
    %143 = vector.load %arg10[%c7_122, %c7_123, %c8_124] : memref<12x32x12xbf16, #tpu.memory_space<vmem>>, vector<1x16x4xbf16>
    tpu.vector_store %arg10[%c7_122, %c7_123, %c8_124], %140 {strides = array<i32>} : memref<12x32x12xbf16, #tpu.memory_space<vmem>>, vector<1x16x4xbf16>,
    %c8_i32_125 = arith.constant 8 : i32
    %144 = arith.addi %3, %c8_i32_125 : i32
    %c0_i32_126 = arith.constant 0 : i32
    %c15_i32_127 = arith.constant 15 : i32
    %145 = arith.maxsi %c0_i32_126, %144 : i32
    %146 = arith.minsi %c15_i32_127, %145 : i32
    %c0_i32_128 = arith.constant 0 : i32
    %147 = arith.cmpi sge, %144, %c0_i32_128 : i32
    %c16_i32_129 = arith.constant 16 : i32
    %148 = arith.cmpi slt, %144, %c16_i32_129 : i32
    %149 = arith.andi %147, %148 : i1
    %150 = arith.extui %149 : i1 to i32
    %151 = arith.sitofp %150 : i32 to f32
    %152 = arith.truncf %151 : f32 to bf16
    %c0_130 = arith.constant 0 : index
    %153 = arith.index_cast %146 : i32 to index
    %c0_131 = arith.constant 0 : index
    %c0_132 = arith.constant 0 : index
    %154 = vector.load %arg2[%c0_130, %153, %c0_131, %c0_132] : memref<1x16x16x4xbf16, #tpu.memory_space<vmem>>, vector<1x1x16x4xbf16>
    %155 = vector.shape_cast %154 : vector<1x1x16x4xbf16> to vector<1x16x4xbf16>
    %156 = vector.broadcast %152 : bf16 to vector<1x16x4xbf16>
    %157 = arith.mulf %155, %156 : vector<1x16x4xbf16>
    %c8_133 = arith.constant 8 : index
    %c9_134 = arith.constant 9 : index
    %c0_135 = arith.constant 0 : index
    %158 = vector.load %arg10[%c8_133, %c9_134, %c0_135] : memref<12x32x12xbf16, #tpu.memory_space<vmem>>, vector<1x16x4xbf16>
    tpu.vector_store %arg10[%c8_133, %c9_134, %c0_135], %157 {strides = array<i32>} : memref<12x32x12xbf16, #tpu.memory_space<vmem>>, vector<1x16x4xbf16>,
    %c8_136 = arith.constant 8 : index
    %c8_137 = arith.constant 8 : index
    %c4_138 = arith.constant 4 : index
    %159 = vector.load %arg10[%c8_136, %c8_137, %c4_138] : memref<12x32x12xbf16, #tpu.memory_space<vmem>>, vector<1x16x4xbf16>
    tpu.vector_store %arg10[%c8_136, %c8_137, %c4_138], %157 {strides = array<i32>} : memref<12x32x12xbf16, #tpu.memory_space<vmem>>, vector<1x16x4xbf16>,
    %c8_139 = arith.constant 8 : index
    %c7_140 = arith.constant 7 : index
    %c8_141 = arith.constant 8 : index
    %160 = vector.load %arg10[%c8_139, %c7_140, %c8_141] : memref<12x32x12xbf16, #tpu.memory_space<vmem>>, vector<1x16x4xbf16>
    tpu.vector_store %arg10[%c8_139, %c7_140, %c8_141], %157 {strides = array<i32>} : memref<12x32x12xbf16, #tpu.memory_space<vmem>>, vector<1x16x4xbf16>,
    %c9_i32 = arith.constant 9 : i32
    %161 = arith.addi %3, %c9_i32 : i32
    %c0_i32_142 = arith.constant 0 : i32
    %c15_i32_143 = arith.constant 15 : i32
    %162 = arith.maxsi %c0_i32_142, %161 : i32
    %163 = arith.minsi %c15_i32_143, %162 : i32
    %c0_i32_144 = arith.constant 0 : i32
    %164 = arith.cmpi sge, %161, %c0_i32_144 : i32
    %c16_i32_145 = arith.constant 16 : i32
    %165 = arith.cmpi slt, %161, %c16_i32_145 : i32
    %166 = arith.andi %164, %165 : i1
    %167 = arith.extui %166 : i1 to i32
    %168 = arith.sitofp %167 : i32 to f32
    %169 = arith.truncf %168 : f32 to bf16
    %c0_146 = arith.constant 0 : index
    %170 = arith.index_cast %163 : i32 to index
    %c0_147 = arith.constant 0 : index
    %c0_148 = arith.constant 0 : index
    %171 = vector.load %arg2[%c0_146, %170, %c0_147, %c0_148] : memref<1x16x16x4xbf16, #tpu.memory_space<vmem>>, vector<1x1x16x4xbf16>
    %172 = vector.shape_cast %171 : vector<1x1x16x4xbf16> to vector<1x16x4xbf16>
    %173 = vector.broadcast %169 : bf16 to vector<1x16x4xbf16>
    %174 = arith.mulf %172, %173 : vector<1x16x4xbf16>
    %c9_149 = arith.constant 9 : index
    %c9_150 = arith.constant 9 : index
    %c0_151 = arith.constant 0 : index
    %175 = vector.load %arg10[%c9_149, %c9_150, %c0_151] : memref<12x32x12xbf16, #tpu.memory_space<vmem>>, vector<1x16x4xbf16>
    tpu.vector_store %arg10[%c9_149, %c9_150, %c0_151], %174 {strides = array<i32>} : memref<12x32x12xbf16, #tpu.memory_space<vmem>>, vector<1x16x4xbf16>,
    %c9_152 = arith.constant 9 : index
    %c8_153 = arith.constant 8 : index
    %c4_154 = arith.constant 4 : index
    %176 = vector.load %arg10[%c9_152, %c8_153, %c4_154] : memref<12x32x12xbf16, #tpu.memory_space<vmem>>, vector<1x16x4xbf16>
    tpu.vector_store %arg10[%c9_152, %c8_153, %c4_154], %174 {strides = array<i32>} : memref<12x32x12xbf16, #tpu.memory_space<vmem>>, vector<1x16x4xbf16>,
    %c9_155 = arith.constant 9 : index
    %c7_156 = arith.constant 7 : index
    %c8_157 = arith.constant 8 : index
    %177 = vector.load %arg10[%c9_155, %c7_156, %c8_157] : memref<12x32x12xbf16, #tpu.memory_space<vmem>>, vector<1x16x4xbf16>
    tpu.vector_store %arg10[%c9_155, %c7_156, %c8_157], %174 {strides = array<i32>} : memref<12x32x12xbf16, #tpu.memory_space<vmem>>, vector<1x16x4xbf16>,
    %c10_i32 = arith.constant 10 : i32
    %178 = arith.addi %3, %c10_i32 : i32
    %c0_i32_158 = arith.constant 0 : i32
    %c15_i32_159 = arith.constant 15 : i32
    %179 = arith.maxsi %c0_i32_158, %178 : i32
    %180 = arith.minsi %c15_i32_159, %179 : i32
    %c0_i32_160 = arith.constant 0 : i32
    %181 = arith.cmpi sge, %178, %c0_i32_160 : i32
    %c16_i32_161 = arith.constant 16 : i32
    %182 = arith.cmpi slt, %178, %c16_i32_161 : i32
    %183 = arith.andi %181, %182 : i1
    %184 = arith.extui %183 : i1 to i32
    %185 = arith.sitofp %184 : i32 to f32
    %186 = arith.truncf %185 : f32 to bf16
    %c0_162 = arith.constant 0 : index
    %187 = arith.index_cast %180 : i32 to index
    %c0_163 = arith.constant 0 : index
    %c0_164 = arith.constant 0 : index
    %188 = vector.load %arg2[%c0_162, %187, %c0_163, %c0_164] : memref<1x16x16x4xbf16, #tpu.memory_space<vmem>>, vector<1x1x16x4xbf16>
    %189 = vector.shape_cast %188 : vector<1x1x16x4xbf16> to vector<1x16x4xbf16>
    %190 = vector.broadcast %186 : bf16 to vector<1x16x4xbf16>
    %191 = arith.mulf %189, %190 : vector<1x16x4xbf16>
    %c10 = arith.constant 10 : index
    %c9_165 = arith.constant 9 : index
    %c0_166 = arith.constant 0 : index
    %192 = vector.load %arg10[%c10, %c9_165, %c0_166] : memref<12x32x12xbf16, #tpu.memory_space<vmem>>, vector<1x16x4xbf16>
    tpu.vector_store %arg10[%c10, %c9_165, %c0_166], %191 {strides = array<i32>} : memref<12x32x12xbf16, #tpu.memory_space<vmem>>, vector<1x16x4xbf16>,
    %c10_167 = arith.constant 10 : index
    %c8_168 = arith.constant 8 : index
    %c4_169 = arith.constant 4 : index
    %193 = vector.load %arg10[%c10_167, %c8_168, %c4_169] : memref<12x32x12xbf16, #tpu.memory_space<vmem>>, vector<1x16x4xbf16>
    tpu.vector_store %arg10[%c10_167, %c8_168, %c4_169], %191 {strides = array<i32>} : memref<12x32x12xbf16, #tpu.memory_space<vmem>>, vector<1x16x4xbf16>,
    %c10_170 = arith.constant 10 : index
    %c7_171 = arith.constant 7 : index
    %c8_172 = arith.constant 8 : index
    %194 = vector.load %arg10[%c10_170, %c7_171, %c8_172] : memref<12x32x12xbf16, #tpu.memory_space<vmem>>, vector<1x16x4xbf16>
    tpu.vector_store %arg10[%c10_170, %c7_171, %c8_172], %191 {strides = array<i32>} : memref<12x32x12xbf16, #tpu.memory_space<vmem>>, vector<1x16x4xbf16>,
    %c11_i32 = arith.constant 11 : i32
    %195 = arith.addi %3, %c11_i32 : i32
    %c0_i32_173 = arith.constant 0 : i32
    %c15_i32_174 = arith.constant 15 : i32
    %196 = arith.maxsi %c0_i32_173, %195 : i32
    %197 = arith.minsi %c15_i32_174, %196 : i32
    %c0_i32_175 = arith.constant 0 : i32
    %198 = arith.cmpi sge, %195, %c0_i32_175 : i32
    %c16_i32_176 = arith.constant 16 : i32
    %199 = arith.cmpi slt, %195, %c16_i32_176 : i32
    %200 = arith.andi %198, %199 : i1
    %201 = arith.extui %200 : i1 to i32
    %202 = arith.sitofp %201 : i32 to f32
    %203 = arith.truncf %202 : f32 to bf16
    %c0_177 = arith.constant 0 : index
    %204 = arith.index_cast %197 : i32 to index
    %c0_178 = arith.constant 0 : index
    %c0_179 = arith.constant 0 : index
    %205 = vector.load %arg2[%c0_177, %204, %c0_178, %c0_179] : memref<1x16x16x4xbf16, #tpu.memory_space<vmem>>, vector<1x1x16x4xbf16>
    %206 = vector.shape_cast %205 : vector<1x1x16x4xbf16> to vector<1x16x4xbf16>
    %207 = vector.broadcast %203 : bf16 to vector<1x16x4xbf16>
    %208 = arith.mulf %206, %207 : vector<1x16x4xbf16>
    %c11 = arith.constant 11 : index
    %c9_180 = arith.constant 9 : index
    %c0_181 = arith.constant 0 : index
    %209 = vector.load %arg10[%c11, %c9_180, %c0_181] : memref<12x32x12xbf16, #tpu.memory_space<vmem>>, vector<1x16x4xbf16>
    tpu.vector_store %arg10[%c11, %c9_180, %c0_181], %208 {strides = array<i32>} : memref<12x32x12xbf16, #tpu.memory_space<vmem>>, vector<1x16x4xbf16>,
    %c11_182 = arith.constant 11 : index
    %c8_183 = arith.constant 8 : index
    %c4_184 = arith.constant 4 : index
    %210 = vector.load %arg10[%c11_182, %c8_183, %c4_184] : memref<12x32x12xbf16, #tpu.memory_space<vmem>>, vector<1x16x4xbf16>
    tpu.vector_store %arg10[%c11_182, %c8_183, %c4_184], %208 {strides = array<i32>} : memref<12x32x12xbf16, #tpu.memory_space<vmem>>, vector<1x16x4xbf16>,
    %c11_185 = arith.constant 11 : index
    %c7_186 = arith.constant 7 : index
    %c8_187 = arith.constant 8 : index
    %211 = vector.load %arg10[%c11_185, %c7_186, %c8_187] : memref<12x32x12xbf16, #tpu.memory_space<vmem>>, vector<1x16x4xbf16>
    tpu.vector_store %arg10[%c11_185, %c7_186, %c8_187], %208 {strides = array<i32>} : memref<12x32x12xbf16, #tpu.memory_space<vmem>>, vector<1x16x4xbf16>,
    %cst_188 = arith.constant 0.000000e+00 : f32
    %212 = vector.broadcast %cst_188 : f32 to vector<160x8xf32>
    %c0_189 = arith.constant 0 : index
    %c8_190 = arith.constant 8 : index
    %c0_191 = arith.constant 0 : index
    %213 = vector.load %arg10[%c0_189, %c8_190, %c0_191] : memref<12x32x12xbf16, #tpu.memory_space<vmem>>, vector<10x16x12xbf16>
    %214 = vector.shape_cast %213 : vector<10x16x12xbf16> to vector<160x12xbf16>
    %c0_192 = arith.constant 0 : index
    %c0_193 = arith.constant 0 : index
    %c0_194 = arith.constant 0 : index
    %215 = vector.load %arg3[%c0_192, %c0_193, %c0_194] : memref<3x12x8xbf16, #tpu.memory_space<vmem>>, vector<1x12x8xbf16>
    %216 = vector.shape_cast %215 : vector<1x12x8xbf16> to vector<12x8xbf16>
    %cst_195 = arith.constant dense<0.000000e+00> : vector<160x8xf32>
    %217 = tpu.matmul %214, %216, %cst_195 {dimension_numbers = #tpu.dot_dimension_numbers<[1], [0], [0], [1], [0, 0, 1, 1], [], []>} : vector<160x12xbf16>, vector<12x8xbf16>, vector<160x8xf32> -> vector<160x8xf32>
    %218 = arith.addf %212, %217 : vector<160x8xf32>
    %c1_196 = arith.constant 1 : index
    %c8_197 = arith.constant 8 : index
    %c0_198 = arith.constant 0 : index
    %219 = vector.load %arg10[%c1_196, %c8_197, %c0_198] : memref<12x32x12xbf16, #tpu.memory_space<vmem>>, vector<10x16x12xbf16>
    %220 = vector.shape_cast %219 : vector<10x16x12xbf16> to vector<160x12xbf16>
    %c1_199 = arith.constant 1 : index
    %c0_200 = arith.constant 0 : index
    %c0_201 = arith.constant 0 : index
    %221 = vector.load %arg3[%c1_199, %c0_200, %c0_201] : memref<3x12x8xbf16, #tpu.memory_space<vmem>>, vector<1x12x8xbf16>
    %222 = vector.shape_cast %221 : vector<1x12x8xbf16> to vector<12x8xbf16>
    %cst_202 = arith.constant dense<0.000000e+00> : vector<160x8xf32>
    %223 = tpu.matmul %220, %222, %cst_202 {dimension_numbers = #tpu.dot_dimension_numbers<[1], [0], [0], [1], [0, 0, 1, 1], [], []>} : vector<160x12xbf16>, vector<12x8xbf16>, vector<160x8xf32> -> vector<160x8xf32>
    %224 = arith.addf %218, %223 : vector<160x8xf32>
    %c2_203 = arith.constant 2 : index
    %c8_204 = arith.constant 8 : index
    %c0_205 = arith.constant 0 : index
    %225 = vector.load %arg10[%c2_203, %c8_204, %c0_205] : memref<12x32x12xbf16, #tpu.memory_space<vmem>>, vector<10x16x12xbf16>
    %226 = vector.shape_cast %225 : vector<10x16x12xbf16> to vector<160x12xbf16>
    %c2_206 = arith.constant 2 : index
    %c0_207 = arith.constant 0 : index
    %c0_208 = arith.constant 0 : index
    %227 = vector.load %arg3[%c2_206, %c0_207, %c0_208] : memref<3x12x8xbf16, #tpu.memory_space<vmem>>, vector<1x12x8xbf16>
    %228 = vector.shape_cast %227 : vector<1x12x8xbf16> to vector<12x8xbf16>
    %cst_209 = arith.constant dense<0.000000e+00> : vector<160x8xf32>
    %229 = tpu.matmul %226, %228, %cst_209 {dimension_numbers = #tpu.dot_dimension_numbers<[1], [0], [0], [1], [0, 0, 1, 1], [], []>} : vector<160x12xbf16>, vector<12x8xbf16>, vector<160x8xf32> -> vector<160x8xf32>
    %230 = arith.addf %224, %229 : vector<160x8xf32>
    %c0_210 = arith.constant 0 : index
    %c0_211 = arith.constant 0 : index
    %231 = vector.load %arg4[%c0_210, %c0_211] : memref<1x8xf32, #tpu.memory_space<vmem>>, vector<1x8xf32>
    %232 = vector.broadcast %231 : vector<1x8xf32> to vector<160x8xf32>
    %233 = arith.addf %230, %232 : vector<160x8xf32>
    %cst_212 = arith.constant 0.000000e+00 : f32
    %234 = vector.broadcast %cst_212 : f32 to vector<160x8xf32>
    %235 = arith.maximumf %233, %234 : vector<160x8xf32>
    %236 = vector.shape_cast %235 : vector<160x8xf32> to vector<10x16x8xf32>
    %237 = arith.truncf %236 : vector<10x16x8xf32> to vector<10x16x8xbf16>
    %cst_213 = arith.constant 0.000000e+00 : bf16
    %238 = vector.broadcast %cst_213 : bf16 to vector<10x1x8xbf16>
    %c0_214 = arith.constant 0 : index
    %c8_215 = arith.constant 8 : index
    %c0_216 = arith.constant 0 : index
    %239 = vector.load %arg11[%c0_214, %c8_215, %c0_216] : memref<10x32x24xbf16, #tpu.memory_space<vmem>>, vector<10x1x8xbf16>
    tpu.vector_store %arg11[%c0_214, %c8_215, %c0_216], %238 {strides = array<i32>} : memref<10x32x24xbf16, #tpu.memory_space<vmem>>, vector<10x1x8xbf16>,
    %cst_217 = arith.constant 0.000000e+00 : bf16
    %240 = vector.broadcast %cst_217 : bf16 to vector<10x1x8xbf16>
    %c0_218 = arith.constant 0 : index
    %c23_219 = arith.constant 23 : index
    %c16 = arith.constant 16 : index
    %241 = vector.load %arg11[%c0_218, %c23_219, %c16] : memref<10x32x24xbf16, #tpu.memory_space<vmem>>, vector<10x1x8xbf16>
    tpu.vector_store %arg11[%c0_218, %c23_219, %c16], %240 {strides = array<i32>} : memref<10x32x24xbf16, #tpu.memory_space<vmem>>, vector<10x1x8xbf16>,
    %c0_220 = arith.constant 0 : index
    %c9_221 = arith.constant 9 : index
    %c0_222 = arith.constant 0 : index
    %242 = vector.load %arg11[%c0_220, %c9_221, %c0_222] : memref<10x32x24xbf16, #tpu.memory_space<vmem>>, vector<10x16x8xbf16>
    tpu.vector_store %arg11[%c0_220, %c9_221, %c0_222], %237 {strides = array<i32>} : memref<10x32x24xbf16, #tpu.memory_space<vmem>>, vector<10x16x8xbf16>,
    %c0_223 = arith.constant 0 : index
    %c8_224 = arith.constant 8 : index
    %c8_225 = arith.constant 8 : index
    %243 = vector.load %arg11[%c0_223, %c8_224, %c8_225] : memref<10x32x24xbf16, #tpu.memory_space<vmem>>, vector<10x16x8xbf16>
    tpu.vector_store %arg11[%c0_223, %c8_224, %c8_225], %237 {strides = array<i32>} : memref<10x32x24xbf16, #tpu.memory_space<vmem>>, vector<10x16x8xbf16>,
    %c0_226 = arith.constant 0 : index
    %c7_227 = arith.constant 7 : index
    %c16_228 = arith.constant 16 : index
    %244 = vector.load %arg11[%c0_226, %c7_227, %c16_228] : memref<10x32x24xbf16, #tpu.memory_space<vmem>>, vector<10x16x8xbf16>
    tpu.vector_store %arg11[%c0_226, %c7_227, %c16_228], %237 {strides = array<i32>} : memref<10x32x24xbf16, #tpu.memory_space<vmem>>, vector<10x16x8xbf16>,
    %c0_i32_229 = arith.constant 0 : i32
    %245 = arith.cmpi eq, %arg1, %c0_i32_229 : i32
    %246 = arith.extui %245 : i1 to i32
    %c0_i32_230 = arith.constant 0 : i32
    %247 = arith.cmpi ne, %246, %c0_i32_230 : i32
    scf.if %247 {
      %cst_270 = arith.constant 0.000000e+00 : bf16
      %287 = vector.broadcast %cst_270 : bf16 to vector<1x32x24xbf16>
      %c0_271 = arith.constant 0 : index
      %c0_272 = arith.constant 0 : index
      %c0_273 = arith.constant 0 : index
      %288 = vector.load %arg11[%c0_271, %c0_272, %c0_273] : memref<10x32x24xbf16, #tpu.memory_space<vmem>>, vector<1x32x24xbf16>
      tpu.vector_store %arg11[%c0_271, %c0_272, %c0_273], %287 {strides = array<i32>} : memref<10x32x24xbf16, #tpu.memory_space<vmem>>, vector<1x32x24xbf16>,
    } else {
    }
    %c1_i32_231 = arith.constant 1 : i32
    %248 = arith.cmpi eq, %arg1, %c1_i32_231 : i32
    %249 = arith.extui %248 : i1 to i32
    %c0_i32_232 = arith.constant 0 : i32
    %250 = arith.cmpi ne, %249, %c0_i32_232 : i32
    scf.if %250 {
      %cst_270 = arith.constant 0.000000e+00 : bf16
      %287 = vector.broadcast %cst_270 : bf16 to vector<1x32x24xbf16>
      %c9_271 = arith.constant 9 : index
      %c0_272 = arith.constant 0 : index
      %c0_273 = arith.constant 0 : index
      %288 = vector.load %arg11[%c9_271, %c0_272, %c0_273] : memref<10x32x24xbf16, #tpu.memory_space<vmem>>, vector<1x32x24xbf16>
      tpu.vector_store %arg11[%c9_271, %c0_272, %c0_273], %287 {strides = array<i32>} : memref<10x32x24xbf16, #tpu.memory_space<vmem>>, vector<1x32x24xbf16>,
    } else {
    }
    %cst_233 = arith.constant 0.000000e+00 : f32
    %251 = vector.broadcast %cst_233 : f32 to vector<128x8xf32>
    %c0_234 = arith.constant 0 : index
    %c8_235 = arith.constant 8 : index
    %c0_236 = arith.constant 0 : index
    %252 = vector.load %arg11[%c0_234, %c8_235, %c0_236] : memref<10x32x24xbf16, #tpu.memory_space<vmem>>, vector<8x16x24xbf16>
    %253 = vector.shape_cast %252 : vector<8x16x24xbf16> to vector<128x24xbf16>
    %c0_237 = arith.constant 0 : index
    %c0_238 = arith.constant 0 : index
    %c0_239 = arith.constant 0 : index
    %254 = vector.load %arg5[%c0_237, %c0_238, %c0_239] : memref<3x24x8xbf16, #tpu.memory_space<vmem>>, vector<1x24x8xbf16>
    %255 = vector.shape_cast %254 : vector<1x24x8xbf16> to vector<24x8xbf16>
    %cst_240 = arith.constant dense<0.000000e+00> : vector<128x8xf32>
    %256 = tpu.matmul %253, %255, %cst_240 {dimension_numbers = #tpu.dot_dimension_numbers<[1], [0], [0], [1], [0, 0, 1, 1], [], []>} : vector<128x24xbf16>, vector<24x8xbf16>, vector<128x8xf32> -> vector<128x8xf32>
    %257 = arith.addf %251, %256 : vector<128x8xf32>
    %c1_241 = arith.constant 1 : index
    %c8_242 = arith.constant 8 : index
    %c0_243 = arith.constant 0 : index
    %258 = vector.load %arg11[%c1_241, %c8_242, %c0_243] : memref<10x32x24xbf16, #tpu.memory_space<vmem>>, vector<8x16x24xbf16>
    %259 = vector.shape_cast %258 : vector<8x16x24xbf16> to vector<128x24xbf16>
    %c1_244 = arith.constant 1 : index
    %c0_245 = arith.constant 0 : index
    %c0_246 = arith.constant 0 : index
    %260 = vector.load %arg5[%c1_244, %c0_245, %c0_246] : memref<3x24x8xbf16, #tpu.memory_space<vmem>>, vector<1x24x8xbf16>
    %261 = vector.shape_cast %260 : vector<1x24x8xbf16> to vector<24x8xbf16>
    %cst_247 = arith.constant dense<0.000000e+00> : vector<128x8xf32>
    %262 = tpu.matmul %259, %261, %cst_247 {dimension_numbers = #tpu.dot_dimension_numbers<[1], [0], [0], [1], [0, 0, 1, 1], [], []>} : vector<128x24xbf16>, vector<24x8xbf16>, vector<128x8xf32> -> vector<128x8xf32>
    %263 = arith.addf %257, %262 : vector<128x8xf32>
    %c2_248 = arith.constant 2 : index
    %c8_249 = arith.constant 8 : index
    %c0_250 = arith.constant 0 : index
    %264 = vector.load %arg11[%c2_248, %c8_249, %c0_250] : memref<10x32x24xbf16, #tpu.memory_space<vmem>>, vector<8x16x24xbf16>
    %265 = vector.shape_cast %264 : vector<8x16x24xbf16> to vector<128x24xbf16>
    %c2_251 = arith.constant 2 : index
    %c0_252 = arith.constant 0 : index
    %c0_253 = arith.constant 0 : index
    %266 = vector.load %arg5[%c2_251, %c0_252, %c0_253] : memref<3x24x8xbf16, #tpu.memory_space<vmem>>, vector<1x24x8xbf16>
    %267 = vector.shape_cast %266 : vector<1x24x8xbf16> to vector<24x8xbf16>
    %cst_254 = arith.constant dense<0.000000e+00> : vector<128x8xf32>
    %268 = tpu.matmul %265, %267, %cst_254 {dimension_numbers = #tpu.dot_dimension_numbers<[1], [0], [0], [1], [0, 0, 1, 1], [], []>} : vector<128x24xbf16>, vector<24x8xbf16>, vector<128x8xf32> -> vector<128x8xf32>
    %269 = arith.addf %263, %268 : vector<128x8xf32>
    %c0_255 = arith.constant 0 : index
    %c0_256 = arith.constant 0 : index
    %270 = vector.load %arg6[%c0_255, %c0_256] : memref<1x8xf32, #tpu.memory_space<vmem>>, vector<1x8xf32>
    %271 = vector.broadcast %270 : vector<1x8xf32> to vector<128x8xf32>
    %272 = arith.addf %269, %271 : vector<128x8xf32>
    %c2_257 = arith.constant 2 : index
    %c8_258 = arith.constant 8 : index
    %c4_259 = arith.constant 4 : index
    %273 = vector.load %arg10[%c2_257, %c8_258, %c4_259] : memref<12x32x12xbf16, #tpu.memory_space<vmem>>, vector<8x16x4xbf16>
    %274 = vector.shape_cast %273 : vector<8x16x4xbf16> to vector<128x4xbf16>
    %c0_260 = arith.constant 0 : index
    %c0_261 = arith.constant 0 : index
    %275 = vector.load %arg7[%c0_260, %c0_261] : memref<4x8xbf16, #tpu.memory_space<vmem>>, vector<4x8xbf16>
    %cst_262 = arith.constant dense<0.000000e+00> : vector<128x8xf32>
    %276 = tpu.matmul %274, %275, %cst_262 {dimension_numbers = #tpu.dot_dimension_numbers<[1], [0], [0], [1], [0, 0, 1, 1], [], []>} : vector<128x4xbf16>, vector<4x8xbf16>, vector<128x8xf32> -> vector<128x8xf32>
    %c0_263 = arith.constant 0 : index
    %c0_264 = arith.constant 0 : index
    %277 = vector.load %arg8[%c0_263, %c0_264] : memref<1x8xf32, #tpu.memory_space<vmem>>, vector<1x8xf32>
    %278 = vector.broadcast %277 : vector<1x8xf32> to vector<128x8xf32>
    %279 = arith.addf %276, %278 : vector<128x8xf32>
    %280 = arith.addf %272, %279 : vector<128x8xf32>
    %cst_265 = arith.constant 0.000000e+00 : f32
    %281 = vector.broadcast %cst_265 : f32 to vector<128x8xf32>
    %282 = arith.maximumf %280, %281 : vector<128x8xf32>
    %283 = vector.shape_cast %282 : vector<128x8xf32> to vector<8x16x8xf32>
    %c0_266 = arith.constant 0 : index
    %c0_267 = arith.constant 0 : index
    %c0_268 = arith.constant 0 : index
    %c0_269 = arith.constant 0 : index
    %284 = vector.load %arg9[%c0_266, %c0_267, %c0_268, %c0_269] : memref<1x8x16x8xf32, #tpu.memory_space<vmem>>, vector<1x8x16x8xf32>
    %285 = vector.shape_cast %284 : vector<1x8x16x8xf32> to vector<8x16x8xf32>
    %286 = vector.shape_cast %283 : vector<8x16x8xf32> to vector<1x8x16x8xf32>
    tpu.vector_store %arg9[%c0_266, %c0_267, %c0_268, %c0_269], %286 {strides = array<i32>} : memref<1x8x16x8xf32, #tpu.memory_space<vmem>>, vector<1x8x16x8xf32>,
    return
  }
  func.func @transform_0(%arg0: i32, %arg1: i32) -> (i32, i32, i32, i32) {
    %c0_i32 = arith.constant 0 : i32
    %c0_i32_0 = arith.constant 0 : i32
    %c0_i32_1 = arith.constant 0 : i32
    %c0_i32_2 = arith.constant 0 : i32
    return %arg0, %c0_i32, %c0_i32_0, %c0_i32_1 : i32, i32, i32, i32
  }
  func.func @transform_1(%arg0: i32, %arg1: i32) -> (i32, i32, i32) {
    %c0_i32 = arith.constant 0 : i32
    %c0_i32_0 = arith.constant 0 : i32
    %c0_i32_1 = arith.constant 0 : i32
    %c0_i32_2 = arith.constant 0 : i32
    return %c0_i32, %c0_i32_0, %c0_i32_1 : i32, i32, i32
  }
  func.func @transform_2(%arg0: i32, %arg1: i32) -> (i32, i32) {
    %c0_i32 = arith.constant 0 : i32
    %c0_i32_0 = arith.constant 0 : i32
    %c0_i32_1 = arith.constant 0 : i32
    return %c0_i32, %c0_i32_0 : i32, i32
  }
  func.func @transform_3(%arg0: i32, %arg1: i32) -> (i32, i32, i32) {
    %c0_i32 = arith.constant 0 : i32
    %c0_i32_0 = arith.constant 0 : i32
    %c0_i32_1 = arith.constant 0 : i32
    %c0_i32_2 = arith.constant 0 : i32
    return %c0_i32, %c0_i32_0, %c0_i32_1 : i32, i32, i32
  }
  func.func @transform_4(%arg0: i32, %arg1: i32) -> (i32, i32) {
    %c0_i32 = arith.constant 0 : i32
    %c0_i32_0 = arith.constant 0 : i32
    %c0_i32_1 = arith.constant 0 : i32
    return %c0_i32, %c0_i32_0 : i32, i32
  }
  func.func @transform_5(%arg0: i32, %arg1: i32) -> (i32, i32) {
    %c0_i32 = arith.constant 0 : i32
    %c0_i32_0 = arith.constant 0 : i32
    %c0_i32_1 = arith.constant 0 : i32
    return %c0_i32, %c0_i32_0 : i32, i32
  }
  func.func @transform_6(%arg0: i32, %arg1: i32) -> (i32, i32) {
    %c0_i32 = arith.constant 0 : i32
    %c0_i32_0 = arith.constant 0 : i32
    %c0_i32_1 = arith.constant 0 : i32
    return %c0_i32, %c0_i32_0 : i32, i32
  }
  func.func @transform_7(%arg0: i32, %arg1: i32) -> (i32, i32, i32, i32) {
    %c0_i32 = arith.constant 0 : i32
    %c0_i32_0 = arith.constant 0 : i32
    %c0_i32_1 = arith.constant 0 : i32
    return %arg0, %arg1, %c0_i32, %c0_i32_0 : i32, i32, i32, i32
  }
}

</mosaic_0001>

<llo_original>
// kernel: tpu_custom_call.1
$region0: #{tpu_custom_call.1}
  #allocation0 [shape = 'u32[]', space=smem, size = 0x4, offset = 0x4, fixed_abs, tag = 'smem constant byte address 0x4 - core index']
  #allocation1 [shape = 'u32[144,128]{1,0:T(1,128)}', space=vmem, size = 0x12000, scoped, tag = 'internal scratch']
  #allocation2 [shape = 'bf16[12,32,12]{2,1,0:T(16,128)(2,1)}', space=vmem, size = 0x18000, scoped, tag = 'scratch operand']
  #allocation3 [shape = 'bf16[10,32,24]{2,1,0:T(16,128)(2,1)}', space=vmem, size = 0x14000, scoped, tag = 'scratch operand']
  %s0 = inlined_call_operand.vmem [shape: bf16[2,16,16,4], index: 0, kind: input, shape index: {}]
  %s1 = inlined_call_operand.vmem [shape: bf16[3,12,8], index: 1, kind: input, shape index: {}]
  %s2 = inlined_call_operand.vmem [shape: f32[1,8], index: 2, kind: input, shape index: {}]
  %s3 = inlined_call_operand.vmem [shape: bf16[3,24,8], index: 3, kind: input, shape index: {}]
  %s4 = inlined_call_operand.vmem [shape: f32[1,8], index: 4, kind: input, shape index: {}]
  %s5 = inlined_call_operand.vmem [shape: bf16[4,8], index: 5, kind: input, shape index: {}]
  %s6 = inlined_call_operand.vmem [shape: f32[1,8], index: 6, kind: input, shape index: {}]
  %s7 = inlined_call_operand.vmem [shape: f32[2,16,16,8], index: 7, kind: output, shape index: {}]
  %s8 = sld [smem:[#allocation0]]
  $region69: #{tpu_custom_call.1} parent=0
    _
  %s10 = ssub.s32 1, %s8
  %s11 = scalar_select 0, %s10, %s8
  loop: start=0, step=1, limit=6
  $region2: #{tpu_custom_call.1} parent=0 // loop_pre_header
    _
  $region3: #{tpu_custom_call.1} parent=0 // loop_header
    %s13 = sphi 0, %s17
    %p14 = scmp.ge.s32.totalorder %s13, 6
    %s20 = sphi 0, %s32
    %s21 = sphi 0, %s28
    %s22 = sphi 0, %s20
    %s23 = sphi 0, %s21
    %s24 = sphi 0, %s22
    %s25 = sphi 0, %s23
    %s35 = sphi 0, %s37
    %s38 = sphi 0, %s35
    %s39 = sphi 0, %s38
    %s55 = sphi 0, %s39
    %s59 = sphi 0, %s59
    %s61 = sphi 0, %s59
    %s62 = sphi 0, %s61
    %s76 = sphi 0, %s62
    %s80 = sphi 0, %s80
    %s82 = sphi 0, %s80
    %s83 = sphi 0, %s82
    %s97 = sphi 0, %s83
    %s101 = sphi 0, %s101
    %s103 = sphi 0, %s101
    %s104 = sphi 0, %s103
    %s118 = sphi 0, %s104
    %s122 = sphi 0, %s122
    %s124 = sphi 0, %s122
    %s125 = sphi 0, %s124
    %s139 = sphi 0, %s125
    %s143 = sphi 0, %s143
    %s145 = sphi 0, %s143
    %s146 = sphi 0, %s145
    %s160 = sphi 0, %s146
    %s164 = sphi 0, %s164
    %s166 = sphi 0, %s164
    %s167 = sphi 0, %s166
    %s181 = sphi 0, %s167
    %s189 = sphi 0, %s191
    %s192 = sphi 0, %s189
    %s193 = sphi 0, %s192
    %s209 = sphi 0, %s193
  $region4: #{tpu_custom_call.1} parent=0 // loop_header_branch
    %16 = sbr.rel (%p14) target = $region8
  $region5: #{tpu_custom_call.1} parent=0 // loop_body
    %s18 = ssub.s32 %s13, 1
    %s19 = ssub.s32 %s13, 2
    %s26 = sadd.s32 1, %s21
    %p27 = scmp.ge.s32.totalorder %s26, 2
    %s28 = scalar_select %p27, 0, %s26
    %s29 = sadd.s32 1, %s20
    %s30 = scalar_select %p27, %s29, %s20
    %p31 = scmp.ge.s32.totalorder %s30, 2
    %s32 = scalar_select %p31, 0, %s30
    %s33 = ssub.s32 %s20, %s32
    %p34 = scmp.eq.s32.totalorder %s33, 0
    %s36 = sadd.s32 %s35, 1
    %s37 = scalar_select %p34, %s35, %s36
    %p40 = pneg %p34
    %p41 = scmp.eq.s32.totalorder %s13, 3
    %p42 = por %p40, %p41
    %p43 = scmp.ne.s32.totalorder %s35, %s38
    %p44 = scmp.eq.s32.totalorder %s13, 0
    %p45 = por %p43, %p44
    %p46 = scmp.ne.s32.totalorder %s35, %s38
    %p47 = scmp.eq.s32.totalorder %s18, 3
    %p48 = por %p46, %p47
    %p49 = scmp.ne.s32.totalorder %s38, %s39
    %p50 = scmp.eq.s32.totalorder %s18, 0
    %p51 = por %p49, %p50
    %p52 = scmp.ne.s32.totalorder %s38, %s39
    %p53 = scmp.eq.s32.totalorder %s19, 3
    %p54 = por %p52, %p53
    %p56 = scmp.ne.s32.totalorder %s39, %s55
    %p57 = scmp.eq.s32.totalorder %s19, 0
    %p58 = por %p56, %p57
    %s60 = sadd.s32 %s59, 1
    %p63 = scmp.eq.s32.totalorder %s13, 3
    %p64 = scmp.ne.s32.totalorder %s59, %s61
    %p65 = scmp.eq.s32.totalorder %s13, 0
    %p66 = por %p64, %p65
    %p67 = scmp.ne.s32.totalorder %s59, %s61
    %p68 = scmp.eq.s32.totalorder %s18, 3
    %p69 = por %p67, %p68
    %p70 = scmp.ne.s32.totalorder %s61, %s62
    %p71 = scmp.eq.s32.totalorder %s18, 0
    %p72 = por %p70, %p71
    %p73 = scmp.ne.s32.totalorder %s61, %s62
    %p74 = scmp.eq.s32.totalorder %s19, 3
    %p75 = por %p73, %p74
    %p77 = scmp.ne.s32.totalorder %s62, %s76
    %p78 = scmp.eq.s32.totalorder %s19, 0
    %p79 = por %p77, %p78
    %s81 = sadd.s32 %s80, 1
    %p84 = scmp.eq.s32.totalorder %s13, 3
    %p85 = scmp.ne.s32.totalorder %s80, %s82
    %p86 = scmp.eq.s32.totalorder %s13, 0
    %p87 = por %p85, %p86
    %p88 = scmp.ne.s32.totalorder %s80, %s82
    %p89 = scmp.eq.s32.totalorder %s18, 3
    %p90 = por %p88, %p89
    %p91 = scmp.ne.s32.totalorder %s82, %s83
    %p92 = scmp.eq.s32.totalorder %s18, 0
    %p93 = por %p91, %p92
    %p94 = scmp.ne.s32.totalorder %s82, %s83
    %p95 = scmp.eq.s32.totalorder %s19, 3
    %p96 = por %p94, %p95
    %p98 = scmp.ne.s32.totalorder %s83, %s97
    %p99 = scmp.eq.s32.totalorder %s19, 0
    %p100 = por %p98, %p99
    %s102 = sadd.s32 %s101, 1
    %p105 = scmp.eq.s32.totalorder %s13, 3
    %p106 = scmp.ne.s32.totalorder %s101, %s103
    %p107 = scmp.eq.s32.totalorder %s13, 0
    %p108 = por %p106, %p107
    %p109 = scmp.ne.s32.totalorder %s101, %s103
    %p110 = scmp.eq.s32.totalorder %s18, 3
    %p111 = por %p109, %p110
    %p112 = scmp.ne.s32.totalorder %s103, %s104
    %p113 = scmp.eq.s32.totalorder %s18, 0
    %p114 = por %p112, %p113
    %p115 = scmp.ne.s32.totalorder %s103, %s104
    %p116 = scmp.eq.s32.totalorder %s19, 3
    %p117 = por %p115, %p116
    %p119 = scmp.ne.s32.totalorder %s104, %s118
    %p120 = scmp.eq.s32.totalorder %s19, 0
    %p121 = por %p119, %p120
    %s123 = sadd.s32 %s122, 1
    %p126 = scmp.eq.s32.totalorder %s13, 3
    %p127 = scmp.ne.s32.totalorder %s122, %s124
    %p128 = scmp.eq.s32.totalorder %s13, 0
    %p129 = por %p127, %p128
    %p130 = scmp.ne.s32.totalorder %s122, %s124
    %p131 = scmp.eq.s32.totalorder %s18, 3
    %p132 = por %p130, %p131
    %p133 = scmp.ne.s32.totalorder %s124, %s125
    %p134 = scmp.eq.s32.totalorder %s18, 0
    %p135 = por %p133, %p134
    %p136 = scmp.ne.s32.totalorder %s124, %s125
    %p137 = scmp.eq.s32.totalorder %s19, 3
    %p138 = por %p136, %p137
    %p140 = scmp.ne.s32.totalorder %s125, %s139
    %p141 = scmp.eq.s32.totalorder %s19, 0
    %p142 = por %p140, %p141
    %s144 = sadd.s32 %s143, 1
    %p147 = scmp.eq.s32.totalorder %s13, 3
    %p148 = scmp.ne.s32.totalorder %s143, %s145
    %p149 = scmp.eq.s32.totalorder %s13, 0
    %p150 = por %p148, %p149
    %p151 = scmp.ne.s32.totalorder %s143, %s145
    %p152 = scmp.eq.s32.totalorder %s18, 3
    %p153 = por %p151, %p152
    %p154 = scmp.ne.s32.totalorder %s145, %s146
    %p155 = scmp.eq.s32.totalorder %s18, 0
    %p156 = por %p154, %p155
    %p157 = scmp.ne.s32.totalorder %s145, %s146
    %p158 = scmp.eq.s32.totalorder %s19, 3
    %p159 = por %p157, %p158
    %p161 = scmp.ne.s32.totalorder %s146, %s160
    %p162 = scmp.eq.s32.totalorder %s19, 0
    %p163 = por %p161, %p162
    %s165 = sadd.s32 %s164, 1
    %p168 = scmp.eq.s32.totalorder %s13, 3
    %p169 = scmp.ne.s32.totalorder %s164, %s166
    %p170 = scmp.eq.s32.totalorder %s13, 0
    %p171 = por %p169, %p170
    %p172 = scmp.ne.s32.totalorder %s164, %s166
    %p173 = scmp.eq.s32.totalorder %s18, 3
    %p174 = por %p172, %p173
    %p175 = scmp.ne.s32.totalorder %s166, %s167
    %p176 = scmp.eq.s32.totalorder %s18, 0
    %p177 = por %p175, %p176
    %p178 = scmp.ne.s32.totalorder %s166, %s167
    %p179 = scmp.eq.s32.totalorder %s19, 3
    %p180 = por %p178, %p179
    %p182 = scmp.ne.s32.totalorder %s167, %s181
    %p183 = scmp.eq.s32.totalorder %s19, 0
    %p184 = por %p182, %p183
    %s185 = ssub.s32 %s20, %s32
    %s186 = ssub.s32 %s21, %s28
    %s187 = sor.u32 %s185, %s186
    %p188 = scmp.eq.s32.totalorder %s187, 0
    %s190 = sadd.s32 %s189, 1
    %s191 = scalar_select %p188, %s189, %s190
    %p194 = pneg %p188
    %p195 = scmp.eq.s32.totalorder %s13, 3
    %p196 = por %p194, %p195
    %p197 = scmp.ne.s32.totalorder %s189, %s192
    %p198 = scmp.eq.s32.totalorder %s13, 0
    %p199 = por %p197, %p198
    %p200 = scmp.ne.s32.totalorder %s189, %s192
    %p201 = scmp.eq.s32.totalorder %s18, 3
    %p202 = por %p200, %p201
    %p203 = scmp.ne.s32.totalorder %s192, %s193
    %p204 = scmp.eq.s32.totalorder %s18, 0
    %p205 = por %p203, %p204
    %p206 = scmp.ne.s32.totalorder %s192, %s193
    %p207 = scmp.eq.s32.totalorder %s19, 3
    %p208 = por %p206, %p207
    %p210 = scmp.ne.s32.totalorder %s193, %s209
    %p211 = scmp.eq.s32.totalorder %s19, 0
    %p212 = por %p210, %p211
    %p213 = scmp.le.s32.totalorder 1, %s13
    %p214 = scmp.lt.s32.totalorder %s13, 5
    %p215 = pnand %p213, %p214
    %p216 = pneg %p215
    // Predicated region
    $region9: #{tpu_custom_call.1} parent=5 // pred_check
      _
    $region10: #{tpu_custom_call.1} parent=5 // pred_check_branch
      %218 = sbr.rel (%p215) target = $region12
    $region11: #{tpu_custom_call.1} parent=5 // pred_region
      %s219 = ssub.s32 %s13, 1
      // Predicated region
      $region13: #{tpu_custom_call.1} parent=11 // pred_check
        %p220 = pneg %p72
      $region14: #{tpu_custom_call.1} parent=11 // pred_check_branch
        %222 = sbr.rel (%p220) target = $region16
      $region15: #{tpu_custom_call.1} parent=11 // pred_region
        _
      $region16: #{tpu_custom_call.1} parent=11 // pred_fallthru
        _
      // Predicated region
      $region17: #{tpu_custom_call.1} parent=11 // pred_check
        %p223 = pneg %p93
      $region18: #{tpu_custom_call.1} parent=11 // pred_check_branch
        %225 = sbr.rel (%p223) target = $region20
      $region19: #{tpu_custom_call.1} parent=11 // pred_region
        _
      $region20: #{tpu_custom_call.1} parent=11 // pred_fallthru
        _
      // Predicated region
      $region21: #{tpu_custom_call.1} parent=11 // pred_check
        %p226 = pneg %p114
      $region22: #{tpu_custom_call.1} parent=11 // pred_check_branch
        %228 = sbr.rel (%p226) target = $region24
      $region23: #{tpu_custom_call.1} parent=11 // pred_region
        _
      $region24: #{tpu_custom_call.1} parent=11 // pred_fallthru
        _
      // Predicated region
      $region25: #{tpu_custom_call.1} parent=11 // pred_check
        %p229 = pneg %p135
      $region26: #{tpu_custom_call.1} parent=11 // pred_check_branch
        %231 = sbr.rel (%p229) target = $region28
      $region27: #{tpu_custom_call.1} parent=11 // pred_region
        _
      $region28: #{tpu_custom_call.1} parent=11 // pred_fallthru
        _
      // Predicated region
      $region29: #{tpu_custom_call.1} parent=11 // pred_check
        %p232 = pneg %p156
      $region30: #{tpu_custom_call.1} parent=11 // pred_check_branch
        %234 = sbr.rel (%p232) target = $region32
      $region31: #{tpu_custom_call.1} parent=11 // pred_region
        _
      $region32: #{tpu_custom_call.1} parent=11 // pred_fallthru
        _
      // Predicated region
      $region33: #{tpu_custom_call.1} parent=11 // pred_check
        %p235 = pneg %p177
      $region34: #{tpu_custom_call.1} parent=11 // pred_check_branch
        %237 = sbr.rel (%p235) target = $region36
      $region35: #{tpu_custom_call.1} parent=11 // pred_region
        _
      $region36: #{tpu_custom_call.1} parent=11 // pred_fallthru
        _
    $region12: #{tpu_custom_call.1} parent=5 // pred_fallthru
      _
    %p238 = scmp.lt.s32.totalorder %s13, 4
    // Predicated region
    $region37: #{tpu_custom_call.1} parent=5 // pred_check
      %p239 = pneg %p238
    $region38: #{tpu_custom_call.1} parent=5 // pred_check_branch
      %241 = sbr.rel (%p239) target = $region40
    $region39: #{tpu_custom_call.1} parent=5 // pred_region
      // Predicated region
      $region41: #{tpu_custom_call.1} parent=39 // pred_check
        %p242 = pneg %p45
      $region42: #{tpu_custom_call.1} parent=39 // pred_check_branch
        %244 = sbr.rel (%p242) target = $region44
      $region43: #{tpu_custom_call.1} parent=39 // pred_region
        %p245 = scmp.lt.s32.totalorder %s20, 1
        %s246 = scalar_select %p245, %s20, 1
        %s247 = smul.addr %s246, 32
        %s248 = smul.addr %s247, 4
        %s249 = scalar_lea.vmem %s0, %s248
      $region44: #{tpu_custom_call.1} parent=39 // pred_fallthru
        _
    $region40: #{tpu_custom_call.1} parent=5 // pred_fallthru
      _
    %p250 = scmp.le.s32.totalorder 1, %s13
    %p251 = scmp.lt.s32.totalorder %s13, 5
    %p252 = pnand %p250, %p251
    %p253 = pneg %p252
    // Predicated region
    $region45: #{tpu_custom_call.1} parent=5 // pred_check
      _
    $region46: #{tpu_custom_call.1} parent=5 // pred_check_branch
      %255 = sbr.rel (%p252) target = $region48
    $region47: #{tpu_custom_call.1} parent=5 // pred_region
      %s256 = ssub.s32 %s13, 1
      %p257 = scmp.lt.s32.totalorder %s22, 1
      %s258 = scalar_select %p257, %s22, 1
      %s259 = smul.addr %s258, 32
      %s260 = smul.addr %s259, 4
      %s261 = scalar_lea.vmem %s0, %s260
      %p262 = pneg %p51
      %p263 = pneg %p48
      %p264 = pneg %p72
      %p265 = pneg %p69
      %p266 = pneg %p93
      %p267 = pneg %p90
      %p268 = pneg %p114
      %p269 = pneg %p111
      %p270 = pneg %p135
      %p271 = pneg %p132
      %p272 = pneg %p156
      %p273 = pneg %p153
      %p274 = pneg %p177
      %p275 = pneg %p174
      %p276 = pneg %p205
      %p277 = pneg %p202
      %s278 = smul.u32 8, %s23
      %p279 = scmp.lt.s32.totalorder %s22, 1
      %s280 = scalar_select %p279, %s22, 1
      %p281 = scmp.lt.s32.totalorder %s278, 15
      %s282 = scalar_select %p281, %s278, 15
      %s283 = smul.addr %s282, 2
      %s284 = smul.addr %s280, 32
      %s285 = sadd.s32 %s283, %s284
      %s286 = smul.addr %s285, 8
      %s287 = scalar_lea.vmem %s7, %s286
      %p288 = scmp.lt.s32.totalorder %s22, 1
      %s289 = scalar_select %p288, %s22, 1
      %s290 = smul.addr %s289, 32
      %s291 = smul.addr %s290, 4
      %s292 = scalar_lea.vmem %s0, %s291
      %s293 = smul.u32 8, %s23
      %p294 = scmp.lt.s32.totalorder %s22, 1
      %s295 = scalar_select %p294, %s22, 1
      %p296 = scmp.lt.s32.totalorder %s293, 15
      %s297 = scalar_select %p296, %s293, 15
      %s298 = smul.addr %s297, 2
      %s299 = smul.addr %s295, 32
      %s300 = sadd.s32 %s298, %s299
      %s301 = smul.addr %s300, 8
      %s302 = scalar_lea.vmem %s7, %s301
      %s303 = smul.u32 8, %s23
      %s305 = smul.u32 %s23, 8
      %s306 = ssub.s32 %s305, 1
      %s307 = ssub.s32 %s305, 2
      %vm308 = vcmask 28676
      %vm309 = vsmask.f32 4352
      %vm310 = vmand %vm308, %vm309
      %v311 = vld [vmem:[#allocation2] sm:$0x10]
      %v312 = vsel %vm310, 0, %v311
      %313 = vst [vmem:[#allocation2] sm:$0x10] %v312
      %v314 = vld [vmem:[#allocation2 + $0x10] sm:$0x10]
      %v315 = vsel %vm310, 0, %v314
      %316 = vst [vmem:[#allocation2 + $0x10] sm:$0x10] %v315
      %v317 = vld [vmem:[#allocation2 + $0x20] sm:$0x10]
      %v318 = vsel %vm310, 0, %v317
      %319 = vst [vmem:[#allocation2 + $0x20] sm:$0x10] %v318
      %v320 = vld [vmem:[#allocation2 + $0x30] sm:$0x10]
      %v321 = vsel %vm310, 0, %v320
      %322 = vst [vmem:[#allocation2 + $0x30] sm:$0x10] %v321
      %v323 = vld [vmem:[#allocation2 + $0x40] sm:$0x10]
      %v324 = vsel %vm310, 0, %v323
      %325 = vst [vmem:[#allocation2 + $0x40] sm:$0x10] %v324
      %v326 = vld [vmem:[#allocation2 + $0x50] sm:$0x10]
      %v327 = vsel %vm310, 0, %v326
      %328 = vst [vmem:[#allocation2 + $0x50] sm:$0x10] %v327
      %v329 = vld [vmem:[#allocation2 + $0x60] sm:$0x10]
      %v330 = vsel %vm310, 0, %v329
      %331 = vst [vmem:[#allocation2 + $0x60] sm:$0x10] %v330
      %v332 = vld [vmem:[#allocation2 + $0x70] sm:$0x10]
      %v333 = vsel %vm310, 0, %v332
      %334 = vst [vmem:[#allocation2 + $0x70] sm:$0x10] %v333
      %v335 = vld [vmem:[#allocation2 + $0x80] sm:$0x10]
      %v336 = vsel %vm310, 0, %v335
      %337 = vst [vmem:[#allocation2 + $0x80] sm:$0x10] %v336
      %v338 = vld [vmem:[#allocation2 + $0x90] sm:$0x10]
      %v339 = vsel %vm310, 0, %v338
      %340 = vst [vmem:[#allocation2 + $0x90] sm:$0x10] %v339
      %v341 = vld [vmem:[#allocation2 + $0xa0] sm:$0x10]
      %v342 = vsel %vm310, 0, %v341
      %343 = vst [vmem:[#allocation2 + $0xa0] sm:$0x10] %v342
      %v344 = vld [vmem:[#allocation2 + $0xb0] sm:$0x10]
      %v345 = vsel %vm310, 0, %v344
      %346 = vst [vmem:[#allocation2 + $0xb0] sm:$0x10] %v345
      %vm347 = vcmask 93251
      %vm348 = vsmask.f32 7950
      %vm349 = vmand %vm347, %vm348
      %v350 = vld [vmem:[#allocation2 + $0x8] sm:$0x8]
      %v351 = vsel %vm349, 0, %v350
      %352 = vst [vmem:[#allocation2 + $0x8] sm:$0x8] %v351
      %v353 = vld [vmem:[#allocation2 + $0x18] sm:$0x8]
      %v354 = vsel %vm349, 0, %v353
      %355 = vst [vmem:[#allocation2 + $0x18] sm:$0x8] %v354
      %v356 = vld [vmem:[#allocation2 + $0x28] sm:$0x8]
      %v357 = vsel %vm349, 0, %v356
      %358 = vst [vmem:[#allocation2 + $0x28] sm:$0x8] %v357
      %v359 = vld [vmem:[#allocation2 + $0x38] sm:$0x8]
      %v360 = vsel %vm349, 0, %v359
      %361 = vst [vmem:[#allocation2 + $0x38] sm:$0x8] %v360
      %v362 = vld [vmem:[#allocation2 + $0x48] sm:$0x8]
      %v363 = vsel %vm349, 0, %v362
      %364 = vst [vmem:[#allocation2 + $0x48] sm:$0x8] %v363
      %v365 = vld [vmem:[#allocation2 + $0x58] sm:$0x8]
      %v366 = vsel %vm349, 0, %v365
      %367 = vst [vmem:[#allocation2 + $0x58] sm:$0x8] %v366
      %v368 = vld [vmem:[#allocation2 + $0x68] sm:$0x8]
      %v369 = vsel %vm349, 0, %v368
      %370 = vst [vmem:[#allocation2 + $0x68] sm:$0x8] %v369
      %v371 = vld [vmem:[#allocation2 + $0x78] sm:$0x8]
      %v372 = vsel %vm349, 0, %v371
      %373 = vst [vmem:[#allocation2 + $0x78] sm:$0x8] %v372
      %v374 = vld [vmem:[#allocation2 + $0x88] sm:$0x8]
      %v375 = vsel %vm349, 0, %v374
      %376 = vst [vmem:[#allocation2 + $0x88] sm:$0x8] %v375
      %v377 = vld [vmem:[#allocation2 + $0x98] sm:$0x8]
      %v378 = vsel %vm349, 0, %v377
      %379 = vst [vmem:[#allocation2 + $0x98] sm:$0x8] %v378
      %v380 = vld [vmem:[#allocation2 + $0xa8] sm:$0x8]
      %v381 = vsel %vm349, 0, %v380
      %382 = vst [vmem:[#allocation2 + $0xa8] sm:$0x8] %v381
      %v383 = vld [vmem:[#allocation2 + $0xb8] sm:$0x8]
      %v384 = vsel %vm349, 0, %v383
      %385 = vst [vmem:[#allocation2 + $0xb8] sm:$0x8] %v384
      %p386 = scmp.gt.s32.totalorder %s307, 0
      %s387 = scalar_select %p386, %s307, 0
      %p388 = scmp.lt.s32.totalorder %s387, 15
      %s389 = scalar_select %p388, %s387, 15
      %p390 = scmp.ge.s32.totalorder %s307, 0
      %p391 = scmp.lt.s32.totalorder %s307, 16
      %p392 = pnand %p390, %p391
      %p393 = pneg %p392
      %s394 = scalar_select %p393, 1, 0
      %s395 = scvt.s32.f32 %s394
      %p397 = scmp.ne.f32.partialorder %s395, %s395
      %s398 = sshrl.u32 %s395, 16
      %s399 = sand.u32 %s398, 1
      %s400 = sadd.s32 32767, %s399
      %s401 = sadd.s32 %s395, %s400
      %s402 = sand.u32 %s401, 4294901760
      %s403 = scalar_select %p397, 2143289344, %s402
      %s405 = sshrl.u32 %s403, 16
      %s406 = smul.u32 %s389, 2
      %s407 = smul.addr %s406, 4
      %s408 = scalar_lea.vmem %s292, %s407
      %v409 = vld [vmem:[%s408] sm:$0xf]
      %v410 = vld [vmem:[%s408 + $0x4] sm:$0xf]
      %s411 = sshll.u32 %s405, 16
      %s412 = sor.u32 %s405, %s411
      %v413 = vstv %s412
      %v415 = vmul.bf16 %v409, %v413
      %v416 = vmul.bf16 %v410, %v413
      %v419 = vunpack.c.l.b16 %v415
      %v420 = vunpack.c.l.b16 %v416
      %v421 = vpack.c.b16 %v420, %v419
      %v423 = vshrl.u32 %v421, 16
      %v425 = vrot.slane %v423, 3
      %v426 = vshll.u32 %v421, 16
      %v428 = vrot.slane %v426, 4
      %v429 = vor.u32 %v425, %v428
      %vm431 = vcmask 31748
      %vm432 = vsmask.f32 7954
      %vm433 = vmand %vm431, %vm432
      %v434 = vld [vmem:[#allocation2] sm:$0xf0]
      %v435 = vsel %vm433, %v429, %v434
      %436 = vst [vmem:[#allocation2] sm:$0xf0] %v435
      %vm437 = vcmask 28672
      %vm438 = vmand %vm437, %vm309
      %v439 = vld [vmem:[#allocation2 + $0x8] sm:$0x1f]
      %v440 = vsel %vm438, %v429, %v439
      %441 = vst [vmem:[#allocation2 + $0x8] sm:$0x1f] %v440
      %v442 = vpack.c.b16 %v419, %v419
      %v443 = vpack.c.b16 %v420, %v420
      %444 = vrot.lane.b32.xlu0 %v442, 4
      %v445 = vpop.permute.xlu0 %444
      %446 = vrot.lane.b32.xlu0 %v443, 4
      %v447 = vpop.permute.xlu0 %446
      %vm450 = vcmask 64548
      %451 = vst.msk [vmem:[#allocation2] sm:$0xf0] %vm450, %v445
      %vm452 = vcmask 60448
      %453 = vst.msk [vmem:[#allocation2 + $0x8] sm:$0xf] %vm452, %v447
      %v454 = vrot.slane %v423, 4
      %v455 = vrot.slane %v426, 5
      %v456 = vor.u32 %v454, %v455
      %457 = vrot.lane.b32.xlu0 %v456, 8
      %v458 = vpop.permute.xlu0 %457
      %vm460 = vcmask 97347
      %vm461 = vmand %vm460, %vm348
      %v462 = vld [vmem:[#allocation2] sm:$0xf8]
      %v463 = vsel %vm461, %v458, %v462
      %464 = vst [vmem:[#allocation2] sm:$0xf8] %v463
      %vm465 = vcmask 93248
      %vm466 = vsmask.f32 3328
      %vm467 = vmand %vm465, %vm466
      %v468 = vld [vmem:[#allocation2 + $0x8] sm:$0xf]
      %v469 = vsel %vm467, %v458, %v468
      %470 = vst [vmem:[#allocation2 + $0x8] sm:$0xf] %v469
      %p471 = scmp.gt.s32.totalorder %s306, 0
      %s472 = scalar_select %p471, %s306, 0
      %p473 = scmp.lt.s32.totalorder %s472, 15
      %s474 = scalar_select %p473, %s472, 15
      %p475 = scmp.ge.s32.totalorder %s306, 0
      %p476 = scmp.lt.s32.totalorder %s306, 16
      %p477 = pnand %p475, %p476
      %p478 = pneg %p477
      %s479 = scalar_select %p478, 1, 0
      %s480 = scvt.s32.f32 %s479
      %p482 = scmp.ne.f32.partialorder %s480, %s480
      %s483 = sshrl.u32 %s480, 16
      %s484 = sand.u32 %s483, 1
      %s485 = sadd.s32 32767, %s484
      %s486 = sadd.s32 %s480, %s485
      %s487 = sand.u32 %s486, 4294901760
      %s488 = scalar_select %p482, 2143289344, %s487
      %s490 = sshrl.u32 %s488, 16
      %s491 = smul.u32 %s474, 2
      %s492 = smul.addr %s491, 4
      %s493 = scalar_lea.vmem %s292, %s492
      %v494 = vld [vmem:[%s493] sm:$0xf]
      %v495 = vld [vmem:[%s493 + $0x4] sm:$0xf]
      %s496 = sshll.u32 %s490, 16
      %s497 = sor.u32 %s490, %s496
      %v498 = vstv %s497
      %v500 = vmul.bf16 %v494, %v498
      %v501 = vmul.bf16 %v495, %v498
      %v504 = vunpack.c.l.b16 %v500
      %v505 = vunpack.c.l.b16 %v501
      %v506 = vpack.c.b16 %v505, %v504
      %v508 = vshrl.u32 %v506, 16
      %v510 = vrot.slane %v508, 3
      %v511 = vshll.u32 %v506, 16
      %v513 = vrot.slane %v511, 4
      %v514 = vor.u32 %v510, %v513
      %s516 = scalar_lea.vmem [#allocation2], 16
      %v517 = vld [vmem:[%s516] sm:$0xf0]
      %v518 = vsel %vm433, %v514, %v517
      %519 = vst [vmem:[%s516] sm:$0xf0] %v518
      %v520 = vld [vmem:[%s516 + $0x8] sm:$0x1f]
      %v521 = vsel %vm438, %v514, %v520
      %522 = vst [vmem:[%s516 + $0x8] sm:$0x1f] %v521
      %v523 = vpack.c.b16 %v504, %v504
      %v524 = vpack.c.b16 %v505, %v505
      %525 = vrot.lane.b32.xlu0 %v523, 4
      %v526 = vpop.permute.xlu0 %525
      %527 = vrot.lane.b32.xlu0 %v524, 4
      %v528 = vpop.permute.xlu0 %527
      %531 = vst.msk [vmem:[%s516] sm:$0xf0] %vm450, %v526
      %532 = vst.msk [vmem:[%s516 + $0x8] sm:$0xf] %vm452, %v528
      %v533 = vrot.slane %v508, 4
      %v534 = vrot.slane %v511, 5
      %v535 = vor.u32 %v533, %v534
      %536 = vrot.lane.b32.xlu0 %v535, 8
      %v537 = vpop.permute.xlu0 %536
      %v539 = vld [vmem:[%s516] sm:$0xf8]
      %v540 = vsel %vm461, %v537, %v539
      %541 = vst [vmem:[%s516] sm:$0xf8] %v540
      %v542 = vld [vmem:[%s516 + $0x8] sm:$0xf]
      %v543 = vsel %vm467, %v537, %v542
      %544 = vst [vmem:[%s516 + $0x8] sm:$0xf] %v543
      %p545 = scmp.gt.s32.totalorder %s305, 0
      %s546 = scalar_select %p545, %s305, 0
      %p547 = scmp.lt.s32.totalorder %s546, 15
      %s548 = scalar_select %p547, %s546, 15
      %p549 = scmp.ge.s32.totalorder %s305, 0
      %p550 = scmp.lt.s32.totalorder %s305, 16
      %p551 = pnand %p549, %p550
      %p552 = pneg %p551
      %s553 = scalar_select %p552, 1, 0
      %s554 = scvt.s32.f32 %s553
      %p556 = scmp.ne.f32.partialorder %s554, %s554
      %s557 = sshrl.u32 %s554, 16
      %s558 = sand.u32 %s557, 1
      %s559 = sadd.s32 32767, %s558
      %s560 = sadd.s32 %s554, %s559
      %s561 = sand.u32 %s560, 4294901760
      %s562 = scalar_select %p556, 2143289344, %s561
      %s564 = sshrl.u32 %s562, 16
      %s565 = smul.u32 %s548, 2
      %s566 = smul.addr %s565, 4
      %s567 = scalar_lea.vmem %s292, %s566
      %v568 = vld [vmem:[%s567] sm:$0xf]
      %v569 = vld [vmem:[%s567 + $0x4] sm:$0xf]
      %s570 = sshll.u32 %s564, 16
      %s571 = sor.u32 %s564, %s570
      %v572 = vstv %s571
      %v574 = vmul.bf16 %v568, %v572
      %v575 = vmul.bf16 %v569, %v572
      %v578 = vunpack.c.l.b16 %v574
      %v579 = vunpack.c.l.b16 %v575
      %v580 = vpack.c.b16 %v579, %v578
      %v582 = vshrl.u32 %v580, 16
      %v584 = vrot.slane %v582, 3
      %v585 = vshll.u32 %v580, 16
      %v587 = vrot.slane %v585, 4
      %v588 = vor.u32 %v584, %v587
      %s590 = scalar_lea.vmem [#allocation2], 32
      %v591 = vld [vmem:[%s590] sm:$0xf0]
      %v592 = vsel %vm433, %v588, %v591
      %593 = vst [vmem:[%s590] sm:$0xf0] %v592
      %v594 = vld [vmem:[%s590 + $0x8] sm:$0x1f]
      %v595 = vsel %vm438, %v588, %v594
      %596 = vst [vmem:[%s590 + $0x8] sm:$0x1f] %v595
      %v597 = vpack.c.b16 %v578, %v578
      %v598 = vpack.c.b16 %v579, %v579
      %599 = vrot.lane.b32.xlu0 %v597, 4
      %v600 = vpop.permute.xlu0 %599
      %601 = vrot.lane.b32.xlu0 %v598, 4
      %v602 = vpop.permute.xlu0 %601
      %605 = vst.msk [vmem:[%s590] sm:$0xf0] %vm450, %v600
      %606 = vst.msk [vmem:[%s590 + $0x8] sm:$0xf] %vm452, %v602
      %v607 = vrot.slane %v582, 4
      %v608 = vrot.slane %v585, 5
      %v609 = vor.u32 %v607, %v608
      %610 = vrot.lane.b32.xlu0 %v609, 8
      %v611 = vpop.permute.xlu0 %610
      %v613 = vld [vmem:[%s590] sm:$0xf8]
      %v614 = vsel %vm461, %v611, %v613
      %615 = vst [vmem:[%s590] sm:$0xf8] %v614
      %v616 = vld [vmem:[%s590 + $0x8] sm:$0xf]
      %v617 = vsel %vm467, %v611, %v616
      %618 = vst [vmem:[%s590 + $0x8] sm:$0xf] %v617
      %s619 = sadd.s32 %s305, 1
      %p620 = scmp.gt.s32.totalorder %s619, 0
      %s621 = scalar_select %p620, %s619, 0
      %p622 = scmp.lt.s32.totalorder %s621, 15
      %s623 = scalar_select %p622, %s621, 15
      %p624 = scmp.ge.s32.totalorder %s619, 0
      %p625 = scmp.lt.s32.totalorder %s619, 16
      %p626 = pnand %p624, %p625
      %p627 = pneg %p626
      %s628 = scalar_select %p627, 1, 0
      %s629 = scvt.s32.f32 %s628
      %p631 = scmp.ne.f32.partialorder %s629, %s629
      %s632 = sshrl.u32 %s629, 16
      %s633 = sand.u32 %s632, 1
      %s634 = sadd.s32 32767, %s633
      %s635 = sadd.s32 %s629, %s634
      %s636 = sand.u32 %s635, 4294901760
      %s637 = scalar_select %p631, 2143289344, %s636
      %s639 = sshrl.u32 %s637, 16
      %s640 = smul.u32 %s623, 2
      %s641 = smul.addr %s640, 4
      %s642 = scalar_lea.vmem %s292, %s641
      %v643 = vld [vmem:[%s642] sm:$0xf]
      %v644 = vld [vmem:[%s642 + $0x4] sm:$0xf]
      %s645 = sshll.u32 %s639, 16
      %s646 = sor.u32 %s639, %s645
      %v647 = vstv %s646
      %v649 = vmul.bf16 %v643, %v647
      %v650 = vmul.bf16 %v644, %v647
      %v653 = vunpack.c.l.b16 %v649
      %v654 = vunpack.c.l.b16 %v650
      %v655 = vpack.c.b16 %v654, %v653
      %v657 = vshrl.u32 %v655, 16
      %v659 = vrot.slane %v657, 3
      %v660 = vshll.u32 %v655, 16
      %v662 = vrot.slane %v660, 4
      %v663 = vor.u32 %v659, %v662
      %s665 = scalar_lea.vmem [#allocation2], 48
      %v666 = vld [vmem:[%s665] sm:$0xf0]
      %v667 = vsel %vm433, %v663, %v666
      %668 = vst [vmem:[%s665] sm:$0xf0] %v667
      %v669 = vld [vmem:[%s665 + $0x8] sm:$0x1f]
      %v670 = vsel %vm438, %v663, %v669
      %671 = vst [vmem:[%s665 + $0x8] sm:$0x1f] %v670
      %v672 = vpack.c.b16 %v653, %v653
      %v673 = vpack.c.b16 %v654, %v654
      %674 = vrot.lane.b32.xlu0 %v672, 4
      %v675 = vpop.permute.xlu0 %674
      %676 = vrot.lane.b32.xlu0 %v673, 4
      %v677 = vpop.permute.xlu0 %676
      %680 = vst.msk [vmem:[%s665] sm:$0xf0] %vm450, %v675
      %681 = vst.msk [vmem:[%s665 + $0x8] sm:$0xf] %vm452, %v677
      %v682 = vrot.slane %v657, 4
      %v683 = vrot.slane %v660, 5
      %v684 = vor.u32 %v682, %v683
      %685 = vrot.lane.b32.xlu0 %v684, 8
      %v686 = vpop.permute.xlu0 %685
      %v688 = vld [vmem:[%s665] sm:$0xf8]
      %v689 = vsel %vm461, %v686, %v688
      %690 = vst [vmem:[%s665] sm:$0xf8] %v689
      %v691 = vld [vmem:[%s665 + $0x8] sm:$0xf]
      %v692 = vsel %vm467, %v686, %v691
      %693 = vst [vmem:[%s665 + $0x8] sm:$0xf] %v692
      %s694 = sadd.s32 %s305, 2
      %p695 = scmp.gt.s32.totalorder %s694, 0
      %s696 = scalar_select %p695, %s694, 0
      %p697 = scmp.lt.s32.totalorder %s696, 15
      %s698 = scalar_select %p697, %s696, 15
      %p699 = scmp.ge.s32.totalorder %s694, 0
      %p700 = scmp.lt.s32.totalorder %s694, 16
      %p701 = pnand %p699, %p700
      %p702 = pneg %p701
      %s703 = scalar_select %p702, 1, 0
      %s704 = scvt.s32.f32 %s703
      %p706 = scmp.ne.f32.partialorder %s704, %s704
      %s707 = sshrl.u32 %s704, 16
      %s708 = sand.u32 %s707, 1
      %s709 = sadd.s32 32767, %s708
      %s710 = sadd.s32 %s704, %s709
      %s711 = sand.u32 %s710, 4294901760
      %s712 = scalar_select %p706, 2143289344, %s711
      %s714 = sshrl.u32 %s712, 16
      %s715 = smul.u32 %s698, 2
      %s716 = smul.addr %s715, 4
      %s717 = scalar_lea.vmem %s292, %s716
      %v718 = vld [vmem:[%s717] sm:$0xf]
      %v719 = vld [vmem:[%s717 + $0x4] sm:$0xf]
      %s720 = sshll.u32 %s714, 16
      %s721 = sor.u32 %s714, %s720
      %v722 = vstv %s721
      %v724 = vmul.bf16 %v718, %v722
      %v725 = vmul.bf16 %v719, %v722
      %v728 = vunpack.c.l.b16 %v724
      %v729 = vunpack.c.l.b16 %v725
      %v730 = vpack.c.b16 %v729, %v728
      %v732 = vshrl.u32 %v730, 16
      %v734 = vrot.slane %v732, 3
      %v735 = vshll.u32 %v730, 16
      %v737 = vrot.slane %v735, 4
      %v738 = vor.u32 %v734, %v737
      %s740 = scalar_lea.vmem [#allocation2], 64
      %v741 = vld [vmem:[%s740] sm:$0xf0]
      %v742 = vsel %vm433, %v738, %v741
      %743 = vst [vmem:[%s740] sm:$0xf0] %v742
      %v744 = vld [vmem:[%s740 + $0x8] sm:$0x1f]
      %v745 = vsel %vm438, %v738, %v744
      %746 = vst [vmem:[%s740 + $0x8] sm:$0x1f] %v745
      %v747 = vpack.c.b16 %v728, %v728
      %v748 = vpack.c.b16 %v729, %v729
      %749 = vrot.lane.b32.xlu0 %v747, 4
      %v750 = vpop.permute.xlu0 %749
      %751 = vrot.lane.b32.xlu0 %v748, 4
      %v752 = vpop.permute.xlu0 %751
      %755 = vst.msk [vmem:[%s740] sm:$0xf0] %vm450, %v750
      %756 = vst.msk [vmem:[%s740 + $0x8] sm:$0xf] %vm452, %v752
      %v757 = vrot.slane %v732, 4
      %v758 = vrot.slane %v735, 5
      %v759 = vor.u32 %v757, %v758
      %760 = vrot.lane.b32.xlu0 %v759, 8
      %v761 = vpop.permute.xlu0 %760
      %v763 = vld [vmem:[%s740] sm:$0xf8]
      %v764 = vsel %vm461, %v761, %v763
      %765 = vst [vmem:[%s740] sm:$0xf8] %v764
      %v766 = vld [vmem:[%s740 + $0x8] sm:$0xf]
      %v767 = vsel %vm467, %v761, %v766
      %768 = vst [vmem:[%s740 + $0x8] sm:$0xf] %v767
      %s769 = sadd.s32 %s305, 3
      %p770 = scmp.gt.s32.totalorder %s769, 0
      %s771 = scalar_select %p770, %s769, 0
      %p772 = scmp.lt.s32.totalorder %s771, 15
      %s773 = scalar_select %p772, %s771, 15
      %p774 = scmp.ge.s32.totalorder %s769, 0
      %p775 = scmp.lt.s32.totalorder %s769, 16
      %p776 = pnand %p774, %p775
      %p777 = pneg %p776
      %s778 = scalar_select %p777, 1, 0
      %s779 = scvt.s32.f32 %s778
      %p781 = scmp.ne.f32.partialorder %s779, %s779
      %s782 = sshrl.u32 %s779, 16
      %s783 = sand.u32 %s782, 1
      %s784 = sadd.s32 32767, %s783
      %s785 = sadd.s32 %s779, %s784
      %s786 = sand.u32 %s785, 4294901760
      %s787 = scalar_select %p781, 2143289344, %s786
      %s789 = sshrl.u32 %s787, 16
      %s790 = smul.u32 %s773, 2
      %s791 = smul.addr %s790, 4
      %s792 = scalar_lea.vmem %s292, %s791
      %v793 = vld [vmem:[%s792] sm:$0xf]
      %v794 = vld [vmem:[%s792 + $0x4] sm:$0xf]
      %s795 = sshll.u32 %s789, 16
      %s796 = sor.u32 %s789, %s795
      %v797 = vstv %s796
      %v799 = vmul.bf16 %v793, %v797
      %v800 = vmul.bf16 %v794, %v797
      %v803 = vunpack.c.l.b16 %v799
      %v804 = vunpack.c.l.b16 %v800
      %v805 = vpack.c.b16 %v804, %v803
      %v807 = vshrl.u32 %v805, 16
      %v809 = vrot.slane %v807, 3
      %v810 = vshll.u32 %v805, 16
      %v812 = vrot.slane %v810, 4
      %v813 = vor.u32 %v809, %v812
      %s815 = scalar_lea.vmem [#allocation2], 80
      %v816 = vld [vmem:[%s815] sm:$0xf0]
      %v817 = vsel %vm433, %v813, %v816
      %818 = vst [vmem:[%s815] sm:$0xf0] %v817
      %v819 = vld [vmem:[%s815 + $0x8] sm:$0x1f]
      %v820 = vsel %vm438, %v813, %v819
      %821 = vst [vmem:[%s815 + $0x8] sm:$0x1f] %v820
      %v822 = vpack.c.b16 %v803, %v803
      %v823 = vpack.c.b16 %v804, %v804
      %824 = vrot.lane.b32.xlu0 %v822, 4
      %v825 = vpop.permute.xlu0 %824
      %826 = vrot.lane.b32.xlu0 %v823, 4
      %v827 = vpop.permute.xlu0 %826
      %830 = vst.msk [vmem:[%s815] sm:$0xf0] %vm450, %v825
      %831 = vst.msk [vmem:[%s815 + $0x8] sm:$0xf] %vm452, %v827
      %v832 = vrot.slane %v807, 4
      %v833 = vrot.slane %v810, 5
      %v834 = vor.u32 %v832, %v833
      %835 = vrot.lane.b32.xlu0 %v834, 8
      %v836 = vpop.permute.xlu0 %835
      %v838 = vld [vmem:[%s815] sm:$0xf8]
      %v839 = vsel %vm461, %v836, %v838
      %840 = vst [vmem:[%s815] sm:$0xf8] %v839
      %v841 = vld [vmem:[%s815 + $0x8] sm:$0xf]
      %v842 = vsel %vm467, %v836, %v841
      %843 = vst [vmem:[%s815 + $0x8] sm:$0xf] %v842
      %s844 = sadd.s32 %s305, 4
      %p845 = scmp.gt.s32.totalorder %s844, 0
      %s846 = scalar_select %p845, %s844, 0
      %p847 = scmp.lt.s32.totalorder %s846, 15
      %s848 = scalar_select %p847, %s846, 15
      %p849 = scmp.ge.s32.totalorder %s844, 0
      %p850 = scmp.lt.s32.totalorder %s844, 16
      %p851 = pnand %p849, %p850
      %p852 = pneg %p851
      %s853 = scalar_select %p852, 1, 0
      %s854 = scvt.s32.f32 %s853
      %p856 = scmp.ne.f32.partialorder %s854, %s854
      %s857 = sshrl.u32 %s854, 16
      %s858 = sand.u32 %s857, 1
      %s859 = sadd.s32 32767, %s858
      %s860 = sadd.s32 %s854, %s859
      %s861 = sand.u32 %s860, 4294901760
      %s862 = scalar_select %p856, 2143289344, %s861
      %s864 = sshrl.u32 %s862, 16
      %s865 = smul.u32 %s848, 2
      %s866 = smul.addr %s865, 4
      %s867 = scalar_lea.vmem %s292, %s866
      %v868 = vld [vmem:[%s867] sm:$0xf]
      %v869 = vld [vmem:[%s867 + $0x4] sm:$0xf]
      %s870 = sshll.u32 %s864, 16
      %s871 = sor.u32 %s864, %s870
      %v872 = vstv %s871
      %v874 = vmul.bf16 %v868, %v872
      %v875 = vmul.bf16 %v869, %v872
      %v878 = vunpack.c.l.b16 %v874
      %v879 = vunpack.c.l.b16 %v875
      %v880 = vpack.c.b16 %v879, %v878
      %v882 = vshrl.u32 %v880, 16
      %v884 = vrot.slane %v882, 3
      %v885 = vshll.u32 %v880, 16
      %v887 = vrot.slane %v885, 4
      %v888 = vor.u32 %v884, %v887
      %s890 = scalar_lea.vmem [#allocation2], 96
      %v891 = vld [vmem:[%s890] sm:$0xf0]
      %v892 = vsel %vm433, %v888, %v891
      %893 = vst [vmem:[%s890] sm:$0xf0] %v892
      %v894 = vld [vmem:[%s890 + $0x8] sm:$0x1f]
      %v895 = vsel %vm438, %v888, %v894
      %896 = vst [vmem:[%s890 + $0x8] sm:$0x1f] %v895
      %v897 = vpack.c.b16 %v878, %v878
      %v898 = vpack.c.b16 %v879, %v879
      %899 = vrot.lane.b32.xlu0 %v897, 4
      %v900 = vpop.permute.xlu0 %899
      %901 = vrot.lane.b32.xlu0 %v898, 4
      %v902 = vpop.permute.xlu0 %901
      %905 = vst.msk [vmem:[%s890] sm:$0xf0] %vm450, %v900
      %906 = vst.msk [vmem:[%s890 + $0x8] sm:$0xf] %vm452, %v902
      %v907 = vrot.slane %v882, 4
      %v908 = vrot.slane %v885, 5
      %v909 = vor.u32 %v907, %v908
      %910 = vrot.lane.b32.xlu0 %v909, 8
      %v911 = vpop.permute.xlu0 %910
      %v913 = vld [vmem:[%s890] sm:$0xf8]
      %v914 = vsel %vm461, %v911, %v913
      %915 = vst [vmem:[%s890] sm:$0xf8] %v914
      %v916 = vld [vmem:[%s890 + $0x8] sm:$0xf]
      %v917 = vsel %vm467, %v911, %v916
      %918 = vst [vmem:[%s890 + $0x8] sm:$0xf] %v917
      %s919 = sadd.s32 %s305, 5
      %p920 = scmp.gt.s32.totalorder %s919, 0
      %s921 = scalar_select %p920, %s919, 0
      %p922 = scmp.lt.s32.totalorder %s921, 15
      %s923 = scalar_select %p922, %s921, 15
      %p924 = scmp.ge.s32.totalorder %s919, 0
      %p925 = scmp.lt.s32.totalorder %s919, 16
      %p926 = pnand %p924, %p925
      %p927 = pneg %p926
      %s928 = scalar_select %p927, 1, 0
      %s929 = scvt.s32.f32 %s928
      %p931 = scmp.ne.f32.partialorder %s929, %s929
      %s932 = sshrl.u32 %s929, 16
      %s933 = sand.u32 %s932, 1
      %s934 = sadd.s32 32767, %s933
      %s935 = sadd.s32 %s929, %s934
      %s936 = sand.u32 %s935, 4294901760
      %s937 = scalar_select %p931, 2143289344, %s936
      %s939 = sshrl.u32 %s937, 16
      %s940 = smul.u32 %s923, 2
      %s941 = smul.addr %s940, 4
      %s942 = scalar_lea.vmem %s292, %s941
      %v943 = vld [vmem:[%s942] sm:$0xf]
      %v944 = vld [vmem:[%s942 + $0x4] sm:$0xf]
      %s945 = sshll.u32 %s939, 16
      %s946 = sor.u32 %s939, %s945
      %v947 = vstv %s946
      %v949 = vmul.bf16 %v943, %v947
      %v950 = vmul.bf16 %v944, %v947
      %v953 = vunpack.c.l.b16 %v949
      %v954 = vunpack.c.l.b16 %v950
      %v955 = vpack.c.b16 %v954, %v953
      %v957 = vshrl.u32 %v955, 16
      %v959 = vrot.slane %v957, 3
      %v960 = vshll.u32 %v955, 16
      %v962 = vrot.slane %v960, 4
      %v963 = vor.u32 %v959, %v962
      %s965 = scalar_lea.vmem [#allocation2], 112
      %v966 = vld [vmem:[%s965] sm:$0xf0]
      %v967 = vsel %vm433, %v963, %v966
      %968 = vst [vmem:[%s965] sm:$0xf0] %v967
      %v969 = vld [vmem:[%s965 + $0x8] sm:$0x1f]
      %v970 = vsel %vm438, %v963, %v969
      %971 = vst [vmem:[%s965 + $0x8] sm:$0x1f] %v970
      %v972 = vpack.c.b16 %v953, %v953
      %v973 = vpack.c.b16 %v954, %v954
      %974 = vrot.lane.b32.xlu0 %v972, 4
      %v975 = vpop.permute.xlu0 %974
      %976 = vrot.lane.b32.xlu0 %v973, 4
      %v977 = vpop.permute.xlu0 %976
      %980 = vst.msk [vmem:[%s965] sm:$0xf0] %vm450, %v975
      %981 = vst.msk [vmem:[%s965 + $0x8] sm:$0xf] %vm452, %v977
      %v982 = vrot.slane %v957, 4
      %v983 = vrot.slane %v960, 5
      %v984 = vor.u32 %v982, %v983
      %985 = vrot.lane.b32.xlu0 %v984, 8
      %v986 = vpop.permute.xlu0 %985
      %v988 = vld [vmem:[%s965] sm:$0xf8]
      %v989 = vsel %vm461, %v986, %v988
      %990 = vst [vmem:[%s965] sm:$0xf8] %v989
      %v991 = vld [vmem:[%s965 + $0x8] sm:$0xf]
      %v992 = vsel %vm467, %v986, %v991
      %993 = vst [vmem:[%s965 + $0x8] sm:$0xf] %v992
      %s994 = sadd.s32 %s305, 6
      %p995 = scmp.gt.s32.totalorder %s994, 0
      %s996 = scalar_select %p995, %s994, 0
      %p997 = scmp.lt.s32.totalorder %s996, 15
      %s998 = scalar_select %p997, %s996, 15
      %p999 = scmp.ge.s32.totalorder %s994, 0
      %p1000 = scmp.lt.s32.totalorder %s994, 16
      %p1001 = pnand %p999, %p1000
      %p1002 = pneg %p1001
      %s1003 = scalar_select %p1002, 1, 0
      %s1004 = scvt.s32.f32 %s1003
      %p1006 = scmp.ne.f32.partialorder %s1004, %s1004
      %s1007 = sshrl.u32 %s1004, 16
      %s1008 = sand.u32 %s1007, 1
      %s1009 = sadd.s32 32767, %s1008
      %s1010 = sadd.s32 %s1004, %s1009
      %s1011 = sand.u32 %s1010, 4294901760
      %s1012 = scalar_select %p1006, 2143289344, %s1011
      %s1014 = sshrl.u32 %s1012, 16
      %s1015 = smul.u32 %s998, 2
      %s1016 = smul.addr %s1015, 4
      %s1017 = scalar_lea.vmem %s292, %s1016
      %v1018 = vld [vmem:[%s1017] sm:$0xf]
      %v1019 = vld [vmem:[%s1017 + $0x4] sm:$0xf]
      %s1020 = sshll.u32 %s1014, 16
      %s1021 = sor.u32 %s1014, %s1020
      %v1022 = vstv %s1021
      %v1024 = vmul.bf16 %v1018, %v1022
      %v1025 = vmul.bf16 %v1019, %v1022
      %v1028 = vunpack.c.l.b16 %v1024
      %v1029 = vunpack.c.l.b16 %v1025
      %v1030 = vpack.c.b16 %v1029, %v1028
      %v1032 = vshrl.u32 %v1030, 16
      %v1034 = vrot.slane %v1032, 3
      %v1035 = vshll.u32 %v1030, 16
      %v1037 = vrot.slane %v1035, 4
      %v1038 = vor.u32 %v1034, %v1037
      %s1040 = scalar_lea.vmem [#allocation2], 128
      %v1041 = vld [vmem:[%s1040] sm:$0xf0]
      %v1042 = vsel %vm433, %v1038, %v1041
      %1043 = vst [vmem:[%s1040] sm:$0xf0] %v1042
      %v1044 = vld [vmem:[%s1040 + $0x8] sm:$0x1f]
      %v1045 = vsel %vm438, %v1038, %v1044
      %1046 = vst [vmem:[%s1040 + $0x8] sm:$0x1f] %v1045
      %v1047 = vpack.c.b16 %v1028, %v1028
      %v1048 = vpack.c.b16 %v1029, %v1029
      %1049 = vrot.lane.b32.xlu0 %v1047, 4
      %v1050 = vpop.permute.xlu0 %1049
      %1051 = vrot.lane.b32.xlu0 %v1048, 4
      %v1052 = vpop.permute.xlu0 %1051
      %1055 = vst.msk [vmem:[%s1040] sm:$0xf0] %vm450, %v1050
      %1056 = vst.msk [vmem:[%s1040 + $0x8] sm:$0xf] %vm452, %v1052
      %v1057 = vrot.slane %v1032, 4
      %v1058 = vrot.slane %v1035, 5
      %v1059 = vor.u32 %v1057, %v1058
      %1060 = vrot.lane.b32.xlu0 %v1059, 8
      %v1061 = vpop.permute.xlu0 %1060
      %v1063 = vld [vmem:[%s1040] sm:$0xf8]
      %v1064 = vsel %vm461, %v1061, %v1063
      %1065 = vst [vmem:[%s1040] sm:$0xf8] %v1064
      %v1066 = vld [vmem:[%s1040 + $0x8] sm:$0xf]
      %v1067 = vsel %vm467, %v1061, %v1066
      %1068 = vst [vmem:[%s1040 + $0x8] sm:$0xf] %v1067
      %s1069 = sadd.s32 %s305, 7
      %p1070 = scmp.gt.s32.totalorder %s1069, 0
      %s1071 = scalar_select %p1070, %s1069, 0
      %p1072 = scmp.lt.s32.totalorder %s1071, 15
      %s1073 = scalar_select %p1072, %s1071, 15
      %p1074 = scmp.ge.s32.totalorder %s1069, 0
      %p1075 = scmp.lt.s32.totalorder %s1069, 16
      %p1076 = pnand %p1074, %p1075
      %p1077 = pneg %p1076
      %s1078 = scalar_select %p1077, 1, 0
      %s1079 = scvt.s32.f32 %s1078
      %p1081 = scmp.ne.f32.partialorder %s1079, %s1079
      %s1082 = sshrl.u32 %s1079, 16
      %s1083 = sand.u32 %s1082, 1
      %s1084 = sadd.s32 32767, %s1083
      %s1085 = sadd.s32 %s1079, %s1084
      %s1086 = sand.u32 %s1085, 4294901760
      %s1087 = scalar_select %p1081, 2143289344, %s1086
      %s1089 = sshrl.u32 %s1087, 16
      %s1090 = smul.u32 %s1073, 2
      %s1091 = smul.addr %s1090, 4
      %s1092 = scalar_lea.vmem %s292, %s1091
      %v1093 = vld [vmem:[%s1092] sm:$0xf]
      %v1094 = vld [vmem:[%s1092 + $0x4] sm:$0xf]
      %s1095 = sshll.u32 %s1089, 16
      %s1096 = sor.u32 %s1089, %s1095
      %v1097 = vstv %s1096
      %v1099 = vmul.bf16 %v1093, %v1097
      %v1100 = vmul.bf16 %v1094, %v1097
      %v1103 = vunpack.c.l.b16 %v1099
      %v1104 = vunpack.c.l.b16 %v1100
      %v1105 = vpack.c.b16 %v1104, %v1103
      %v1107 = vshrl.u32 %v1105, 16
      %v1109 = vrot.slane %v1107, 3
      %v1110 = vshll.u32 %v1105, 16
      %v1112 = vrot.slane %v1110, 4
      %v1113 = vor.u32 %v1109, %v1112
      %s1115 = scalar_lea.vmem [#allocation2], 144
      %v1116 = vld [vmem:[%s1115] sm:$0xf0]
      %v1117 = vsel %vm433, %v1113, %v1116
      %1118 = vst [vmem:[%s1115] sm:$0xf0] %v1117
      %v1119 = vld [vmem:[%s1115 + $0x8] sm:$0x1f]
      %v1120 = vsel %vm438, %v1113, %v1119
      %1121 = vst [vmem:[%s1115 + $0x8] sm:$0x1f] %v1120
      %v1122 = vpack.c.b16 %v1103, %v1103
      %v1123 = vpack.c.b16 %v1104, %v1104
      %1124 = vrot.lane.b32.xlu0 %v1122, 4
      %v1125 = vpop.permute.xlu0 %1124
      %1126 = vrot.lane.b32.xlu0 %v1123, 4
      %v1127 = vpop.permute.xlu0 %1126
      %1130 = vst.msk [vmem:[%s1115] sm:$0xf0] %vm450, %v1125
      %1131 = vst.msk [vmem:[%s1115 + $0x8] sm:$0xf] %vm452, %v1127
      %v1132 = vrot.slane %v1107, 4
      %v1133 = vrot.slane %v1110, 5
      %v1134 = vor.u32 %v1132, %v1133
      %1135 = vrot.lane.b32.xlu0 %v1134, 8
      %v1136 = vpop.permute.xlu0 %1135
      %v1138 = vld [vmem:[%s1115] sm:$0xf8]
      %v1139 = vsel %vm461, %v1136, %v1138
      %1140 = vst [vmem:[%s1115] sm:$0xf8] %v1139
      %v1141 = vld [vmem:[%s1115 + $0x8] sm:$0xf]
      %v1142 = vsel %vm467, %v1136, %v1141
      %1143 = vst [vmem:[%s1115 + $0x8] sm:$0xf] %v1142
      %s1144 = sadd.s32 %s305, 8
      %p1145 = scmp.gt.s32.totalorder %s1144, 0
      %s1146 = scalar_select %p1145, %s1144, 0
      %p1147 = scmp.lt.s32.totalorder %s1146, 15
      %s1148 = scalar_select %p1147, %s1146, 15
      %p1149 = scmp.ge.s32.totalorder %s1144, 0
      %p1150 = scmp.lt.s32.totalorder %s1144, 16
      %p1151 = pnand %p1149, %p1150
      %p1152 = pneg %p1151
      %s1153 = scalar_select %p1152, 1, 0
      %s1154 = scvt.s32.f32 %s1153
      %p1156 = scmp.ne.f32.partialorder %s1154, %s1154
      %s1157 = sshrl.u32 %s1154, 16
      %s1158 = sand.u32 %s1157, 1
      %s1159 = sadd.s32 32767, %s1158
      %s1160 = sadd.s32 %s1154, %s1159
      %s1161 = sand.u32 %s1160, 4294901760
      %s1162 = scalar_select %p1156, 2143289344, %s1161
      %s1164 = sshrl.u32 %s1162, 16
      %s1165 = smul.u32 %s1148, 2
      %s1166 = smul.addr %s1165, 4
      %s1167 = scalar_lea.vmem %s292, %s1166
      %v1168 = vld [vmem:[%s1167] sm:$0xf]
      %v1169 = vld [vmem:[%s1167 + $0x4] sm:$0xf]
      %s1170 = sshll.u32 %s1164, 16
      %s1171 = sor.u32 %s1164, %s1170
      %v1172 = vstv %s1171
      %v1174 = vmul.bf16 %v1168, %v1172
      %v1175 = vmul.bf16 %v1169, %v1172
      %v1178 = vunpack.c.l.b16 %v1174
      %v1179 = vunpack.c.l.b16 %v1175
      %v1180 = vpack.c.b16 %v1179, %v1178
      %v1182 = vshrl.u32 %v1180, 16
      %v1184 = vrot.slane %v1182, 3
      %v1185 = vshll.u32 %v1180, 16
      %v1187 = vrot.slane %v1185, 4
      %v1188 = vor.u32 %v1184, %v1187
      %s1190 = scalar_lea.vmem [#allocation2], 160
      %v1191 = vld [vmem:[%s1190] sm:$0xf0]
      %v1192 = vsel %vm433, %v1188, %v1191
      %1193 = vst [vmem:[%s1190] sm:$0xf0] %v1192
      %v1194 = vld [vmem:[%s1190 + $0x8] sm:$0x1f]
      %v1195 = vsel %vm438, %v1188, %v1194
      %1196 = vst [vmem:[%s1190 + $0x8] sm:$0x1f] %v1195
      %v1197 = vpack.c.b16 %v1178, %v1178
      %v1198 = vpack.c.b16 %v1179, %v1179
      %1199 = vrot.lane.b32.xlu0 %v1197, 4
      %v1200 = vpop.permute.xlu0 %1199
      %1201 = vrot.lane.b32.xlu0 %v1198, 4
      %v1202 = vpop.permute.xlu0 %1201
      %1205 = vst.msk [vmem:[%s1190] sm:$0xf0] %vm450, %v1200
      %1206 = vst.msk [vmem:[%s1190 + $0x8] sm:$0xf] %vm452, %v1202
      %v1207 = vrot.slane %v1182, 4
      %v1208 = vrot.slane %v1185, 5
      %v1209 = vor.u32 %v1207, %v1208
      %1210 = vrot.lane.b32.xlu0 %v1209, 8
      %v1211 = vpop.permute.xlu0 %1210
      %v1213 = vld [vmem:[%s1190] sm:$0xf8]
      %v1214 = vsel %vm461, %v1211, %v1213
      %1215 = vst [vmem:[%s1190] sm:$0xf8] %v1214
      %v1216 = vld [vmem:[%s1190 + $0x8] sm:$0xf]
      %v1217 = vsel %vm467, %v1211, %v1216
      %1218 = vst [vmem:[%s1190 + $0x8] sm:$0xf] %v1217
      %s1219 = sadd.s32 %s305, 9
      %p1220 = scmp.gt.s32.totalorder %s1219, 0
      %s1221 = scalar_select %p1220, %s1219, 0
      %p1222 = scmp.lt.s32.totalorder %s1221, 15
      %s1223 = scalar_select %p1222, %s1221, 15
      %p1224 = scmp.ge.s32.totalorder %s1219, 0
      %p1225 = scmp.lt.s32.totalorder %s1219, 16
      %p1226 = pnand %p1224, %p1225
      %p1227 = pneg %p1226
      %s1228 = scalar_select %p1227, 1, 0
      %s1229 = scvt.s32.f32 %s1228
      %p1231 = scmp.ne.f32.partialorder %s1229, %s1229
      %s1232 = sshrl.u32 %s1229, 16
      %s1233 = sand.u32 %s1232, 1
      %s1234 = sadd.s32 32767, %s1233
      %s1235 = sadd.s32 %s1229, %s1234
      %s1236 = sand.u32 %s1235, 4294901760
      %s1237 = scalar_select %p1231, 2143289344, %s1236
      %s1239 = sshrl.u32 %s1237, 16
      %s1240 = smul.u32 %s1223, 2
      %s1241 = smul.addr %s1240, 4
      %s1242 = scalar_lea.vmem %s292, %s1241
      %v1243 = vld [vmem:[%s1242] sm:$0xf]
      %v1244 = vld [vmem:[%s1242 + $0x4] sm:$0xf]
      %s1245 = sshll.u32 %s1239, 16
      %s1246 = sor.u32 %s1239, %s1245
      %v1247 = vstv %s1246
      %v1249 = vmul.bf16 %v1243, %v1247
      %v1250 = vmul.bf16 %v1244, %v1247
      %v1253 = vunpack.c.l.b16 %v1249
      %v1254 = vunpack.c.l.b16 %v1250
      %v1255 = vpack.c.b16 %v1254, %v1253
      %v1257 = vshrl.u32 %v1255, 16
      %v1259 = vrot.slane %v1257, 3
      %v1260 = vshll.u32 %v1255, 16
      %v1262 = vrot.slane %v1260, 4
      %v1263 = vor.u32 %v1259, %v1262
      %s1265 = scalar_lea.vmem [#allocation2], 176
      %v1266 = vld [vmem:[%s1265] sm:$0xf0]
      %v1267 = vsel %vm433, %v1263, %v1266
      %1268 = vst [vmem:[%s1265] sm:$0xf0] %v1267
      %v1269 = vld [vmem:[%s1265 + $0x8] sm:$0x1f]
      %v1270 = vsel %vm438, %v1263, %v1269
      %1271 = vst [vmem:[%s1265 + $0x8] sm:$0x1f] %v1270
      %v1272 = vpack.c.b16 %v1253, %v1253
      %v1273 = vpack.c.b16 %v1254, %v1254
      %1274 = vrot.lane.b32.xlu0 %v1272, 4
      %v1275 = vpop.permute.xlu0 %1274
      %1276 = vrot.lane.b32.xlu0 %v1273, 4
      %v1277 = vpop.permute.xlu0 %1276
      %1280 = vst.msk [vmem:[%s1265] sm:$0xf0] %vm450, %v1275
      %1281 = vst.msk [vmem:[%s1265 + $0x8] sm:$0xf] %vm452, %v1277
      %v1282 = vrot.slane %v1257, 4
      %v1283 = vrot.slane %v1260, 5
      %v1284 = vor.u32 %v1282, %v1283
      %1285 = vrot.lane.b32.xlu0 %v1284, 8
      %v1286 = vpop.permute.xlu0 %1285
      %v1288 = vld [vmem:[%s1265] sm:$0xf8]
      %v1289 = vsel %vm461, %v1286, %v1288
      %1290 = vst [vmem:[%s1265] sm:$0xf8] %v1289
      %v1291 = vld [vmem:[%s1265 + $0x8] sm:$0xf]
      %v1292 = vsel %vm467, %v1286, %v1291
      %1293 = vst [vmem:[%s1265 + $0x8] sm:$0xf] %v1292
      %v1294 = vld [vmem:[#allocation2] sm:$0xf0]
      %v1295 = vld [vmem:[#allocation2 + $0x8] sm:$0xf]
      %v1296 = vld [vmem:[#allocation2 + $0x10] sm:$0xf0]
      %v1297 = vld [vmem:[#allocation2 + $0x18] sm:$0xf]
      %v1298 = vld [vmem:[#allocation2 + $0x20] sm:$0xf0]
      %v1299 = vld [vmem:[#allocation2 + $0x28] sm:$0xf]
      %v1300 = vld [vmem:[#allocation2 + $0x30] sm:$0xf0]
      %v1301 = vld [vmem:[#allocation2 + $0x38] sm:$0xf]
      %v1302 = vld [vmem:[#allocation2 + $0x40] sm:$0xf0]
      %v1303 = vld [vmem:[#allocation2 + $0x48] sm:$0xf]
      %v1304 = vld [vmem:[#allocation2 + $0x50] sm:$0xf0]
      %v1305 = vld [vmem:[#allocation2 + $0x58] sm:$0xf]
      %v1306 = vld [vmem:[#allocation2 + $0x60] sm:$0xf0]
      %v1307 = vld [vmem:[#allocation2 + $0x68] sm:$0xf]
      %v1308 = vld [vmem:[#allocation2 + $0x70] sm:$0xf0]
      %v1309 = vld [vmem:[#allocation2 + $0x78] sm:$0xf]
      %v1310 = vld [vmem:[#allocation2 + $0x80] sm:$0xf0]
      %v1311 = vld [vmem:[#allocation2 + $0x88] sm:$0xf]
      %v1312 = vld [vmem:[#allocation2 + $0x90] sm:$0xf0]
      %v1313 = vld [vmem:[#allocation2 + $0x98] sm:$0xf]
      %vm1334 = vcmask 1043456
      %v1335 = vrot.slane %v1294, 4
      %v1336 = vrot.slane %v1295, 4
      %v1337 = vsel %vm1334, %v1335, %v1336
      %v1338 = vrot.slane %v1296, 4
      %v1339 = vrot.slane %v1297, 4
      %v1340 = vsel %vm1334, %v1338, %v1339
      %v1341 = vrot.slane %v1298, 4
      %v1342 = vrot.slane %v1299, 4
      %v1343 = vsel %vm1334, %v1341, %v1342
      %v1344 = vrot.slane %v1300, 4
      %v1345 = vrot.slane %v1301, 4
      %v1346 = vsel %vm1334, %v1344, %v1345
      %v1347 = vrot.slane %v1302, 4
      %v1348 = vrot.slane %v1303, 4
      %v1349 = vsel %vm1334, %v1347, %v1348
      %v1350 = vrot.slane %v1304, 4
      %v1351 = vrot.slane %v1305, 4
      %v1352 = vsel %vm1334, %v1350, %v1351
      %v1353 = vrot.slane %v1306, 4
      %v1354 = vrot.slane %v1307, 4
      %v1355 = vsel %vm1334, %v1353, %v1354
      %v1356 = vrot.slane %v1308, 4
      %v1357 = vrot.slane %v1309, 4
      %v1358 = vsel %vm1334, %v1356, %v1357
      %v1359 = vrot.slane %v1310, 4
      %v1360 = vrot.slane %v1311, 4
      %v1361 = vsel %vm1334, %v1359, %v1360
      %v1362 = vrot.slane %v1312, 4
      %v1363 = vrot.slane %v1313, 4
      %v1364 = vsel %vm1334, %v1362, %v1363
      %v1365 = vld [vmem:[%s1] sm:$0xf]
      %v1366 = vld [vmem:[%s1 + $0x4] sm:$0x3]
      %v1367 = vld [vmem:[%s516] sm:$0xf0]
      %v1368 = vld [vmem:[%s516 + $0x8] sm:$0xf]
      %v1369 = vld [vmem:[%s516 + $0x10] sm:$0xf0]
      %v1370 = vld [vmem:[%s516 + $0x18] sm:$0xf]
      %v1371 = vld [vmem:[%s516 + $0x20] sm:$0xf0]
      %v1372 = vld [vmem:[%s516 + $0x28] sm:$0xf]
      %v1373 = vld [vmem:[%s516 + $0x30] sm:$0xf0]
      %v1374 = vld [vmem:[%s516 + $0x38] sm:$0xf]
      %v1375 = vld [vmem:[%s516 + $0x40] sm:$0xf0]
      %v1376 = vld [vmem:[%s516 + $0x48] sm:$0xf]
      %v1377 = vld [vmem:[%s516 + $0x50] sm:$0xf0]
      %v1378 = vld [vmem:[%s516 + $0x58] sm:$0xf]
      %v1379 = vld [vmem:[%s516 + $0x60] sm:$0xf0]
      %v1380 = vld [vmem:[%s516 + $0x68] sm:$0xf]
      %v1381 = vld [vmem:[%s516 + $0x70] sm:$0xf0]
      %v1382 = vld [vmem:[%s516 + $0x78] sm:$0xf]
      %v1383 = vld [vmem:[%s516 + $0x80] sm:$0xf0]
      %v1384 = vld [vmem:[%s516 + $0x88] sm:$0xf]
      %v1385 = vld [vmem:[%s516 + $0x90] sm:$0xf0]
      %v1386 = vld [vmem:[%s516 + $0x98] sm:$0xf]
      %v1407 = vrot.slane %v1367, 4
      %v1408 = vrot.slane %v1368, 4
      %v1409 = vsel %vm1334, %v1407, %v1408
      %v1410 = vrot.slane %v1369, 4
      %v1411 = vrot.slane %v1370, 4
      %v1412 = vsel %vm1334, %v1410, %v1411
      %v1413 = vrot.slane %v1371, 4
      %v1414 = vrot.slane %v1372, 4
      %v1415 = vsel %vm1334, %v1413, %v1414
      %v1416 = vrot.slane %v1373, 4
      %v1417 = vrot.slane %v1374, 4
      %v1418 = vsel %vm1334, %v1416, %v1417
      %v1419 = vrot.slane %v1375, 4
      %v1420 = vrot.slane %v1376, 4
      %v1421 = vsel %vm1334, %v1419, %v1420
      %v1422 = vrot.slane %v1377, 4
      %v1423 = vrot.slane %v1378, 4
      %v1424 = vsel %vm1334, %v1422, %v1423
      %v1425 = vrot.slane %v1379, 4
      %v1426 = vrot.slane %v1380, 4
      %v1427 = vsel %vm1334, %v1425, %v1426
      %v1428 = vrot.slane %v1381, 4
      %v1429 = vrot.slane %v1382, 4
      %v1430 = vsel %vm1334, %v1428, %v1429
      %v1431 = vrot.slane %v1383, 4
      %v1432 = vrot.slane %v1384, 4
      %v1433 = vsel %vm1334, %v1431, %v1432
      %v1434 = vrot.slane %v1385, 4
      %v1435 = vrot.slane %v1386, 4
      %v1436 = vsel %vm1334, %v1434, %v1435
      %s1437 = scalar_lea.vmem %s1, 8
      %v1438 = vld [vmem:[%s1437] sm:$0xf]
      %v1439 = vld [vmem:[%s1437 + $0x4] sm:$0x3]
      %v1442 = vunpack.c.l.b16 %v1438
      %v1443 = vunpack.c.l.b16 %v1439
      %v1444 = vpack.c.b16 %v1443, %v1442
      %vm1445 = vcmask 97280
      %v1447 = vsel %vm1445, %v1409, 0
      %v1450 = vsel %vm1445, %v1412, 0
      %v1453 = vsel %vm1445, %v1415, 0
      %v1456 = vsel %vm1445, %v1418, 0
      %v1459 = vsel %vm1445, %v1421, 0
      %v1462 = vsel %vm1445, %v1424, 0
      %v1465 = vsel %vm1445, %v1427, 0
      %v1468 = vsel %vm1445, %v1430, 0
      %v1471 = vsel %vm1445, %v1433, 0
      %v1474 = vsel %vm1445, %v1436, 0
      %vm1476 = vcmask 1045504
      %v1478 = vsel %vm1476, %v1444, 0
      %1480 = vmatprep.subr.bf16.mxu0 0
      %1481 = vmatpush1.bf16.msra.mxu0 %v1478
      %1482 = vmatprep.subr.bf16.mxu0 0
      %1483 = vmatpush1.bf16.msra.mxu0 0
      %1484 = vmatprep.subr.bf16.mxu0 0
      %1485 = vmatpush1.bf16.msra.mxu0 0
      %1486 = vmatprep.subr.bf16.mxu0 0
      %1487 = vmatpush1.bf16.msra.mxu0 0
      %1488 = vmatprep.subr.bf16.mxu0 0
      %1489 = vmatpush1.bf16.msra.mxu0 0
      %1490 = vmatprep.subr.bf16.mxu0 0
      %1491 = vmatpush1.bf16.msra.mxu0 0
      %1492 = vmatprep.subr.bf16.mxu0 0
      %1493 = vmatpush1.bf16.msra.mxu0 0
      %1494 = vmatprep.subr.bf16.mxu0 0
      %1495 = vmatpush1.bf16.msra.mxu0 0
      %1496 = vmatprep.subr.bf16.mxu0 0
      %1497 = vmatpush1.bf16.msra.mxu0 0
      %1498 = vmatprep.subr.bf16.mxu0 0
      %1499 = vmatpush1.bf16.msra.mxu0 0
      %1500 = vmatprep.subr.bf16.mxu0 0
      %1501 = vmatpush1.bf16.msra.mxu0 0
      %1502 = vmatprep.subr.bf16.mxu0 0
      %1503 = vmatpush1.bf16.msra.mxu0 0
      %1504 = vmatprep.subr.bf16.mxu0 0
      %1505 = vmatpush1.bf16.msra.mxu0 0
      %1506 = vmatprep.subr.bf16.mxu0 0
      %1507 = vmatpush1.bf16.msra.mxu0 0
      %1508 = vmatprep.subr.bf16.mxu0 0
      %1509 = vmatpush1.bf16.msra.mxu0 0
      %1510 = vmatprep.subr.bf16.mxu0 0
      %1511 = vmatpush1.bf16.msra.mxu0 0
      %1512 = vmatprep.mubr.bf16.mxu0 0
      %1513 = vmatmul.mubr.bf16.gmra.mrb[0].mxu0 %v1447
      %v1514 = vpop.f32.mrb[0].mxu0
      %v1515 = vadd.f32 0.0, %v1514
      %v1516 = vpop.f32.mrb[0].mxu0
      %v1517 = vpop.f32.mrb[0].mxu0
      %v1518 = vadd.f32 0.0, %v1517
      %v1519 = vpop.f32.mrb[0].mxu0
      %1520 = vmatprep.mubr.bf16.mxu0 0
      %1521 = vmatmul.mubr.bf16.gmra.mrb[0].mxu0 %v1450
      %v1522 = vpop.f32.mrb[0].mxu0
      %v1523 = vadd.f32 0.0, %v1522
      %v1524 = vpop.f32.mrb[0].mxu0
      %v1525 = vpop.f32.mrb[0].mxu0
      %v1526 = vadd.f32 0.0, %v1525
      %v1527 = vpop.f32.mrb[0].mxu0
      %1528 = vmatprep.mubr.bf16.mxu0 0
      %1529 = vmatmul.mubr.bf16.gmra.mrb[0].mxu0 %v1453
      %v1530 = vpop.f32.mrb[0].mxu0
      %v1531 = vadd.f32 0.0, %v1530
      %v1532 = vpop.f32.mrb[0].mxu0
      %v1533 = vpop.f32.mrb[0].mxu0
      %v1534 = vadd.f32 0.0, %v1533
      %v1535 = vpop.f32.mrb[0].mxu0
      %1536 = vmatprep.mubr.bf16.mxu0 0
      %1537 = vmatmul.mubr.bf16.gmra.mrb[0].mxu0 %v1456
      %v1538 = vpop.f32.mrb[0].mxu0
      %v1539 = vadd.f32 0.0, %v1538
      %v1540 = vpop.f32.mrb[0].mxu0
      %v1541 = vpop.f32.mrb[0].mxu0
      %v1542 = vadd.f32 0.0, %v1541
      %v1543 = vpop.f32.mrb[0].mxu0
      %1544 = vmatprep.mubr.bf16.mxu0 0
      %1545 = vmatmul.mubr.bf16.gmra.mrb[0].mxu0 %v1459
      %v1546 = vpop.f32.mrb[0].mxu0
      %v1547 = vadd.f32 0.0, %v1546
      %v1548 = vpop.f32.mrb[0].mxu0
      %v1549 = vpop.f32.mrb[0].mxu0
      %v1550 = vadd.f32 0.0, %v1549
      %v1551 = vpop.f32.mrb[0].mxu0
      %1552 = vmatprep.mubr.bf16.mxu0 0
      %1553 = vmatmul.mubr.bf16.gmra.mrb[0].mxu0 %v1462
      %v1554 = vpop.f32.mrb[0].mxu0
      %v1555 = vadd.f32 0.0, %v1554
      %v1556 = vpop.f32.mrb[0].mxu0
      %v1557 = vpop.f32.mrb[0].mxu0
      %v1558 = vadd.f32 0.0, %v1557
      %v1559 = vpop.f32.mrb[0].mxu0
      %1560 = vmatprep.mubr.bf16.mxu0 0
      %1561 = vmatmul.mubr.bf16.gmra.mrb[0].mxu0 %v1465
      %v1562 = vpop.f32.mrb[0].mxu0
      %v1563 = vadd.f32 0.0, %v1562
      %v1564 = vpop.f32.mrb[0].mxu0
      %v1565 = vpop.f32.mrb[0].mxu0
      %v1566 = vadd.f32 0.0, %v1565
      %v1567 = vpop.f32.mrb[0].mxu0
      %1568 = vmatprep.mubr.bf16.mxu0 0
      %1569 = vmatmul.mubr.bf16.gmra.mrb[0].mxu0 %v1468
      %v1570 = vpop.f32.mrb[0].mxu0
      %v1571 = vadd.f32 0.0, %v1570
      %v1572 = vpop.f32.mrb[0].mxu0
      %v1573 = vpop.f32.mrb[0].mxu0
      %v1574 = vadd.f32 0.0, %v1573
      %v1575 = vpop.f32.mrb[0].mxu0
      %1576 = vmatprep.mubr.bf16.mxu0 0
      %1577 = vmatmul.mubr.bf16.gmra.mrb[0].mxu0 %v1471
      %v1578 = vpop.f32.mrb[0].mxu0
      %v1579 = vadd.f32 0.0, %v1578
      %v1580 = vpop.f32.mrb[0].mxu0
      %v1581 = vpop.f32.mrb[0].mxu0
      %v1582 = vadd.f32 0.0, %v1581
      %v1583 = vpop.f32.mrb[0].mxu0
      %1584 = vmatprep.mubr.bf16.mxu0 0
      %1585 = vmatmul.mubr.bf16.gmra.mrb[0].mxu0 %v1474
      %v1586 = vpop.f32.mrb[0].mxu0
      %v1587 = vadd.f32 0.0, %v1586
      %v1588 = vpop.f32.mrb[0].mxu0
      %v1589 = vpop.f32.mrb[0].mxu0
      %v1590 = vadd.f32 0.0, %v1589
      %v1591 = vpop.f32.mrb[0].mxu0
      %1592 = vdwg.mxu0
      %v1595 = vunpack.c.l.b16 %v1365
      %v1596 = vunpack.c.l.b16 %v1366
      %v1597 = vpack.c.b16 %v1596, %v1595
      %v1599 = vsel %vm1445, %v1337, 0
      %v1602 = vsel %vm1445, %v1340, 0
      %v1605 = vsel %vm1445, %v1343, 0
      %v1608 = vsel %vm1445, %v1346, 0
      %v1611 = vsel %vm1445, %v1349, 0
      %v1614 = vsel %vm1445, %v1352, 0
      %v1617 = vsel %vm1445, %v1355, 0
      %v1620 = vsel %vm1445, %v1358, 0
      %v1623 = vsel %vm1445, %v1361, 0
      %v1626 = vsel %vm1445, %v1364, 0
      %v1629 = vsel %vm1476, %v1597, 0
      %1631 = vmatprep.subr.bf16.mxu0 0
      %1632 = vmatpush1.bf16.msra.mxu0 %v1629
      %1633 = vmatprep.subr.bf16.mxu0 0
      %1634 = vmatpush1.bf16.msra.mxu0 0
      %1635 = vmatprep.subr.bf16.mxu0 0
      %1636 = vmatpush1.bf16.msra.mxu0 0
      %1637 = vmatprep.subr.bf16.mxu0 0
      %1638 = vmatpush1.bf16.msra.mxu0 0
      %1639 = vmatprep.subr.bf16.mxu0 0
      %1640 = vmatpush1.bf16.msra.mxu0 0
      %1641 = vmatprep.subr.bf16.mxu0 0
      %1642 = vmatpush1.bf16.msra.mxu0 0
      %1643 = vmatprep.subr.bf16.mxu0 0
      %1644 = vmatpush1.bf16.msra.mxu0 0
      %1645 = vmatprep.subr.bf16.mxu0 0
      %1646 = vmatpush1.bf16.msra.mxu0 0
      %1647 = vmatprep.subr.bf16.mxu0 0
      %1648 = vmatpush1.bf16.msra.mxu0 0
      %1649 = vmatprep.subr.bf16.mxu0 0
      %1650 = vmatpush1.bf16.msra.mxu0 0
      %1651 = vmatprep.subr.bf16.mxu0 0
      %1652 = vmatpush1.bf16.msra.mxu0 0
      %1653 = vmatprep.subr.bf16.mxu0 0
      %1654 = vmatpush1.bf16.msra.mxu0 0
      %1655 = vmatprep.subr.bf16.mxu0 0
      %1656 = vmatpush1.bf16.msra.mxu0 0
      %1657 = vmatprep.subr.bf16.mxu0 0
      %1658 = vmatpush1.bf16.msra.mxu0 0
      %1659 = vmatprep.subr.bf16.mxu0 0
      %1660 = vmatpush1.bf16.msra.mxu0 0
      %1661 = vmatprep.subr.bf16.mxu0 0
      %1662 = vmatpush1.bf16.msra.mxu0 0
      %1663 = vmatprep.mubr.bf16.mxu0 0
      %1664 = vmatmul.mubr.bf16.gmra.mrb[0].mxu0 %v1599
      %v1665 = vpop.f32.mrb[0].mxu0
      %v1666 = vadd.f32 %v1515, %v1665
      %v1667 = vpop.f32.mrb[0].mxu0
      %v1668 = vpop.f32.mrb[0].mxu0
      %v1669 = vadd.f32 %v1518, %v1668
      %v1670 = vpop.f32.mrb[0].mxu0
      %1671 = vmatprep.mubr.bf16.mxu0 0
      %1672 = vmatmul.mubr.bf16.gmra.mrb[0].mxu0 %v1602
      %v1673 = vpop.f32.mrb[0].mxu0
      %v1674 = vadd.f32 %v1523, %v1673
      %v1675 = vpop.f32.mrb[0].mxu0
      %v1676 = vpop.f32.mrb[0].mxu0
      %v1677 = vadd.f32 %v1526, %v1676
      %v1678 = vpop.f32.mrb[0].mxu0
      %1679 = vmatprep.mubr.bf16.mxu0 0
      %1680 = vmatmul.mubr.bf16.gmra.mrb[0].mxu0 %v1605
      %v1681 = vpop.f32.mrb[0].mxu0
      %v1682 = vadd.f32 %v1531, %v1681
      %v1683 = vpop.f32.mrb[0].mxu0
      %v1684 = vpop.f32.mrb[0].mxu0
      %v1685 = vadd.f32 %v1534, %v1684
      %v1686 = vpop.f32.mrb[0].mxu0
      %1687 = vmatprep.mubr.bf16.mxu0 0
      %1688 = vmatmul.mubr.bf16.gmra.mrb[0].mxu0 %v1608
      %v1689 = vpop.f32.mrb[0].mxu0
      %v1690 = vadd.f32 %v1539, %v1689
      %v1691 = vpop.f32.mrb[0].mxu0
      %v1692 = vpop.f32.mrb[0].mxu0
      %v1693 = vadd.f32 %v1542, %v1692
      %v1694 = vpop.f32.mrb[0].mxu0
      %1695 = vmatprep.mubr.bf16.mxu0 0
      %1696 = vmatmul.mubr.bf16.gmra.mrb[0].mxu0 %v1611
      %v1697 = vpop.f32.mrb[0].mxu0
      %v1698 = vadd.f32 %v1547, %v1697
      %v1699 = vpop.f32.mrb[0].mxu0
      %v1700 = vpop.f32.mrb[0].mxu0
      %v1701 = vadd.f32 %v1550, %v1700
      %v1702 = vpop.f32.mrb[0].mxu0
      %1703 = vmatprep.mubr.bf16.mxu0 0
      %1704 = vmatmul.mubr.bf16.gmra.mrb[0].mxu0 %v1614
      %v1705 = vpop.f32.mrb[0].mxu0
      %v1706 = vadd.f32 %v1555, %v1705
      %v1707 = vpop.f32.mrb[0].mxu0
      %v1708 = vpop.f32.mrb[0].mxu0
      %v1709 = vadd.f32 %v1558, %v1708
      %v1710 = vpop.f32.mrb[0].mxu0
      %1711 = vmatprep.mubr.bf16.mxu0 0
      %1712 = vmatmul.mubr.bf16.gmra.mrb[0].mxu0 %v1617
      %v1713 = vpop.f32.mrb[0].mxu0
      %v1714 = vadd.f32 %v1563, %v1713
      %v1715 = vpop.f32.mrb[0].mxu0
      %v1716 = vpop.f32.mrb[0].mxu0
      %v1717 = vadd.f32 %v1566, %v1716
      %v1718 = vpop.f32.mrb[0].mxu0
      %1719 = vmatprep.mubr.bf16.mxu0 0
      %1720 = vmatmul.mubr.bf16.gmra.mrb[0].mxu0 %v1620
      %v1721 = vpop.f32.mrb[0].mxu0
      %v1722 = vadd.f32 %v1571, %v1721
      %v1723 = vpop.f32.mrb[0].mxu0
      %v1724 = vpop.f32.mrb[0].mxu0
      %v1725 = vadd.f32 %v1574, %v1724
      %v1726 = vpop.f32.mrb[0].mxu0
      %1727 = vmatprep.mubr.bf16.mxu0 0
      %1728 = vmatmul.mubr.bf16.gmra.mrb[0].mxu0 %v1623
      %v1729 = vpop.f32.mrb[0].mxu0
      %v1730 = vadd.f32 %v1579, %v1729
      %v1731 = vpop.f32.mrb[0].mxu0
      %v1732 = vpop.f32.mrb[0].mxu0
      %v1733 = vadd.f32 %v1582, %v1732
      %v1734 = vpop.f32.mrb[0].mxu0
      %1735 = vmatprep.mubr.bf16.mxu0 0
      %1736 = vmatmul.mubr.bf16.gmra.mrb[0].mxu0 %v1626
      %v1737 = vpop.f32.mrb[0].mxu0
      %v1738 = vadd.f32 %v1587, %v1737
      %v1739 = vpop.f32.mrb[0].mxu0
      %v1740 = vpop.f32.mrb[0].mxu0
      %v1741 = vadd.f32 %v1590, %v1740
      %v1742 = vpop.f32.mrb[0].mxu0
      %1743 = vdwg.mxu0
      %v1744 = vld [vmem:[%s590] sm:$0xf0]
      %v1745 = vld [vmem:[%s590 + $0x8] sm:$0xf]
      %v1746 = vld [vmem:[%s590 + $0x10] sm:$0xf0]
      %v1747 = vld [vmem:[%s590 + $0x18] sm:$0xf]
      %v1748 = vld [vmem:[%s590 + $0x20] sm:$0xf0]
      %v1749 = vld [vmem:[%s590 + $0x28] sm:$0xf]
      %v1750 = vld [vmem:[%s590 + $0x30] sm:$0xf0]
      %v1751 = vld [vmem:[%s590 + $0x38] sm:$0xf]
      %v1752 = vld [vmem:[%s590 + $0x40] sm:$0xf0]
      %v1753 = vld [vmem:[%s590 + $0x48] sm:$0xf]
      %v1754 = vld [vmem:[%s590 + $0x50] sm:$0xf0]
      %v1755 = vld [vmem:[%s590 + $0x58] sm:$0xf]
      %v1756 = vld [vmem:[%s590 + $0x60] sm:$0xf0]
      %v1757 = vld [vmem:[%s590 + $0x68] sm:$0xf]
      %v1758 = vld [vmem:[%s590 + $0x70] sm:$0xf0]
      %v1759 = vld [vmem:[%s590 + $0x78] sm:$0xf]
      %v1760 = vld [vmem:[%s590 + $0x80] sm:$0xf0]
      %v1761 = vld [vmem:[%s590 + $0x88] sm:$0xf]
      %v1762 = vld [vmem:[%s590 + $0x90] sm:$0xf0]
      %v1763 = vld [vmem:[%s590 + $0x98] sm:$0xf]
      %v1784 = vrot.slane %v1744, 4
      %v1785 = vrot.slane %v1745, 4
      %v1786 = vsel %vm1334, %v1784, %v1785
      %v1787 = vrot.slane %v1746, 4
      %v1788 = vrot.slane %v1747, 4
      %v1789 = vsel %vm1334, %v1787, %v1788
      %v1790 = vrot.slane %v1748, 4
      %v1791 = vrot.slane %v1749, 4
      %v1792 = vsel %vm1334, %v1790, %v1791
      %v1793 = vrot.slane %v1750, 4
      %v1794 = vrot.slane %v1751, 4
      %v1795 = vsel %vm1334, %v1793, %v1794
      %v1796 = vrot.slane %v1752, 4
      %v1797 = vrot.slane %v1753, 4
      %v1798 = vsel %vm1334, %v1796, %v1797
      %v1799 = vrot.slane %v1754, 4
      %v1800 = vrot.slane %v1755, 4
      %v1801 = vsel %vm1334, %v1799, %v1800
      %v1802 = vrot.slane %v1756, 4
      %v1803 = vrot.slane %v1757, 4
      %v1804 = vsel %vm1334, %v1802, %v1803
      %v1805 = vrot.slane %v1758, 4
      %v1806 = vrot.slane %v1759, 4
      %v1807 = vsel %vm1334, %v1805, %v1806
      %v1808 = vrot.slane %v1760, 4
      %v1809 = vrot.slane %v1761, 4
      %v1810 = vsel %vm1334, %v1808, %v1809
      %v1811 = vrot.slane %v1762, 4
      %v1812 = vrot.slane %v1763, 4
      %v1813 = vsel %vm1334, %v1811, %v1812
      %s1814 = scalar_lea.vmem %s1, 16
      %v1815 = vld [vmem:[%s1814] sm:$0xf]
      %v1816 = vld [vmem:[%s1814 + $0x4] sm:$0x3]
      %v1819 = vunpack.c.l.b16 %v1815
      %v1820 = vunpack.c.l.b16 %v1816
      %v1821 = vpack.c.b16 %v1820, %v1819
      %v1823 = vsel %vm1445, %v1786, 0
      %v1826 = vsel %vm1445, %v1789, 0
      %v1829 = vsel %vm1445, %v1792, 0
      %v1832 = vsel %vm1445, %v1795, 0
      %v1835 = vsel %vm1445, %v1798, 0
      %v1838 = vsel %vm1445, %v1801, 0
      %v1841 = vsel %vm1445, %v1804, 0
      %v1844 = vsel %vm1445, %v1807, 0
      %v1847 = vsel %vm1445, %v1810, 0
      %v1850 = vsel %vm1445, %v1813, 0
      %v1853 = vsel %vm1476, %v1821, 0
      %1855 = vmatprep.subr.bf16.mxu0 0
      %1856 = vmatpush1.bf16.msra.mxu0 %v1853
      %1857 = vmatprep.subr.bf16.mxu0 0
      %1858 = vmatpush1.bf16.msra.mxu0 0
      %1859 = vmatprep.subr.bf16.mxu0 0
      %1860 = vmatpush1.bf16.msra.mxu0 0
      %1861 = vmatprep.subr.bf16.mxu0 0
      %1862 = vmatpush1.bf16.msra.mxu0 0
      %1863 = vmatprep.subr.bf16.mxu0 0
      %1864 = vmatpush1.bf16.msra.mxu0 0
      %1865 = vmatprep.subr.bf16.mxu0 0
      %1866 = vmatpush1.bf16.msra.mxu0 0
      %1867 = vmatprep.subr.bf16.mxu0 0
      %1868 = vmatpush1.bf16.msra.mxu0 0
      %1869 = vmatprep.subr.bf16.mxu0 0
      %1870 = vmatpush1.bf16.msra.mxu0 0
      %1871 = vmatprep.subr.bf16.mxu0 0
      %1872 = vmatpush1.bf16.msra.mxu0 0
      %1873 = vmatprep.subr.bf16.mxu0 0
      %1874 = vmatpush1.bf16.msra.mxu0 0
      %1875 = vmatprep.subr.bf16.mxu0 0
      %1876 = vmatpush1.bf16.msra.mxu0 0
      %1877 = vmatprep.subr.bf16.mxu0 0
      %1878 = vmatpush1.bf16.msra.mxu0 0
      %1879 = vmatprep.subr.bf16.mxu0 0
      %1880 = vmatpush1.bf16.msra.mxu0 0
      %1881 = vmatprep.subr.bf16.mxu0 0
      %1882 = vmatpush1.bf16.msra.mxu0 0
      %1883 = vmatprep.subr.bf16.mxu0 0
      %1884 = vmatpush1.bf16.msra.mxu0 0
      %1885 = vmatprep.subr.bf16.mxu0 0
      %1886 = vmatpush1.bf16.msra.mxu0 0
      %1887 = vmatprep.mubr.bf16.mxu0 0
      %1888 = vmatmul.mubr.bf16.gmra.mrb[0].mxu0 %v1823
      %v1889 = vpop.f32.mrb[0].mxu0
      %v1890 = vadd.f32 0.0, %v1889
      %v1891 = vpop.f32.mrb[0].mxu0
      %v1892 = vpop.f32.mrb[0].mxu0
      %v1893 = vadd.f32 0.0, %v1892
      %v1894 = vpop.f32.mrb[0].mxu0
      %1895 = vmatprep.mubr.bf16.mxu0 0
      %1896 = vmatmul.mubr.bf16.gmra.mrb[0].mxu0 %v1826
      %v1897 = vpop.f32.mrb[0].mxu0
      %v1898 = vadd.f32 0.0, %v1897
      %v1899 = vpop.f32.mrb[0].mxu0
      %v1900 = vpop.f32.mrb[0].mxu0
      %v1901 = vadd.f32 0.0, %v1900
      %v1902 = vpop.f32.mrb[0].mxu0
      %1903 = vmatprep.mubr.bf16.mxu0 0
      %1904 = vmatmul.mubr.bf16.gmra.mrb[0].mxu0 %v1829
      %v1905 = vpop.f32.mrb[0].mxu0
      %v1906 = vadd.f32 0.0, %v1905
      %v1907 = vpop.f32.mrb[0].mxu0
      %v1908 = vpop.f32.mrb[0].mxu0
      %v1909 = vadd.f32 0.0, %v1908
      %v1910 = vpop.f32.mrb[0].mxu0
      %1911 = vmatprep.mubr.bf16.mxu0 0
      %1912 = vmatmul.mubr.bf16.gmra.mrb[0].mxu0 %v1832
      %v1913 = vpop.f32.mrb[0].mxu0
      %v1914 = vadd.f32 0.0, %v1913
      %v1915 = vpop.f32.mrb[0].mxu0
      %v1916 = vpop.f32.mrb[0].mxu0
      %v1917 = vadd.f32 0.0, %v1916
      %v1918 = vpop.f32.mrb[0].mxu0
      %1919 = vmatprep.mubr.bf16.mxu0 0
      %1920 = vmatmul.mubr.bf16.gmra.mrb[0].mxu0 %v1835
      %v1921 = vpop.f32.mrb[0].mxu0
      %v1922 = vadd.f32 0.0, %v1921
      %v1923 = vpop.f32.mrb[0].mxu0
      %v1924 = vpop.f32.mrb[0].mxu0
      %v1925 = vadd.f32 0.0, %v1924
      %v1926 = vpop.f32.mrb[0].mxu0
      %1927 = vmatprep.mubr.bf16.mxu0 0
      %1928 = vmatmul.mubr.bf16.gmra.mrb[0].mxu0 %v1838
      %v1929 = vpop.f32.mrb[0].mxu0
      %v1930 = vadd.f32 0.0, %v1929
      %v1931 = vpop.f32.mrb[0].mxu0
      %v1932 = vpop.f32.mrb[0].mxu0
      %v1933 = vadd.f32 0.0, %v1932
      %v1934 = vpop.f32.mrb[0].mxu0
      %1935 = vmatprep.mubr.bf16.mxu0 0
      %1936 = vmatmul.mubr.bf16.gmra.mrb[0].mxu0 %v1841
      %v1937 = vpop.f32.mrb[0].mxu0
      %v1938 = vadd.f32 0.0, %v1937
      %v1939 = vpop.f32.mrb[0].mxu0
      %v1940 = vpop.f32.mrb[0].mxu0
      %v1941 = vadd.f32 0.0, %v1940
      %v1942 = vpop.f32.mrb[0].mxu0
      %1943 = vmatprep.mubr.bf16.mxu0 0
      %1944 = vmatmul.mubr.bf16.gmra.mrb[0].mxu0 %v1844
      %v1945 = vpop.f32.mrb[0].mxu0
      %v1946 = vadd.f32 0.0, %v1945
      %v1947 = vpop.f32.mrb[0].mxu0
      %v1948 = vpop.f32.mrb[0].mxu0
      %v1949 = vadd.f32 0.0, %v1948
      %v1950 = vpop.f32.mrb[0].mxu0
      %1951 = vmatprep.mubr.bf16.mxu0 0
      %1952 = vmatmul.mubr.bf16.gmra.mrb[0].mxu0 %v1847
      %v1953 = vpop.f32.mrb[0].mxu0
      %v1954 = vadd.f32 0.0, %v1953
      %v1955 = vpop.f32.mrb[0].mxu0
      %v1956 = vpop.f32.mrb[0].mxu0
      %v1957 = vadd.f32 0.0, %v1956
      %v1958 = vpop.f32.mrb[0].mxu0
      %1959 = vmatprep.mubr.bf16.mxu0 0
      %1960 = vmatmul.mubr.bf16.gmra.mrb[0].mxu0 %v1850
      %v1961 = vpop.f32.mrb[0].mxu0
      %v1962 = vadd.f32 0.0, %v1961
      %v1963 = vpop.f32.mrb[0].mxu0
      %v1964 = vpop.f32.mrb[0].mxu0
      %v1965 = vadd.f32 0.0, %v1964
      %v1966 = vpop.f32.mrb[0].mxu0
      %1967 = vdwg.mxu0
      %v1968 = vadd.f32 %v1666, %v1890
      %v1969 = vadd.f32 %v1669, %v1893
      %v1970 = vadd.f32 %v1674, %v1898
      %v1971 = vadd.f32 %v1677, %v1901
      %v1972 = vadd.f32 %v1682, %v1906
      %v1973 = vadd.f32 %v1685, %v1909
      %v1974 = vadd.f32 %v1690, %v1914
      %v1975 = vadd.f32 %v1693, %v1917
      %v1976 = vadd.f32 %v1698, %v1922
      %v1977 = vadd.f32 %v1701, %v1925
      %v1978 = vadd.f32 %v1706, %v1930
      %v1979 = vadd.f32 %v1709, %v1933
      %v1980 = vadd.f32 %v1714, %v1938
      %v1981 = vadd.f32 %v1717, %v1941
      %v1982 = vadd.f32 %v1722, %v1946
      %v1983 = vadd.f32 %v1725, %v1949
      %v1984 = vadd.f32 %v1730, %v1954
      %v1985 = vadd.f32 %v1733, %v1957
      %v1986 = vadd.f32 %v1738, %v1962
      %v1987 = vadd.f32 %v1741, %v1965
      %v1988 = vld [vmem:[%s2] sm:$0x1]
      %v1990 = vlaneseq
      %v1991 = vshrl.u32 %v1990, 7
      %v1992 = vsub.s32 0, %v1991
      %v1993 = vrot.slane %v1988, %v1992
      %v1995 = vadd.f32 %v1968, %v1993
      %v1996 = vadd.f32 %v1969, %v1993
      %v1997 = vadd.f32 %v1970, %v1993
      %v1998 = vadd.f32 %v1971, %v1993
      %v1999 = vadd.f32 %v1972, %v1993
      %v2000 = vadd.f32 %v1973, %v1993
      %v2001 = vadd.f32 %v1974, %v1993
      %v2002 = vadd.f32 %v1975, %v1993
      %v2003 = vadd.f32 %v1976, %v1993
      %v2004 = vadd.f32 %v1977, %v1993
      %v2005 = vadd.f32 %v1978, %v1993
      %v2006 = vadd.f32 %v1979, %v1993
      %v2007 = vadd.f32 %v1980, %v1993
      %v2008 = vadd.f32 %v1981, %v1993
      %v2009 = vadd.f32 %v1982, %v1993
      %v2010 = vadd.f32 %v1983, %v1993
      %v2011 = vadd.f32 %v1984, %v1993
      %v2012 = vadd.f32 %v1985, %v1993
      %v2013 = vadd.f32 %v1986, %v1993
      %v2014 = vadd.f32 %v1987, %v1993
      %v2015 = vmax.f32 %v1995, 0.0
      %v2016 = vmax.f32 %v1996, 0.0
      %v2017 = vmax.f32 %v1997, 0.0
      %v2018 = vmax.f32 %v1998, 0.0
      %v2019 = vmax.f32 %v1999, 0.0
      %v2020 = vmax.f32 %v2000, 0.0
      %v2021 = vmax.f32 %v2001, 0.0
      %v2022 = vmax.f32 %v2002, 0.0
      %v2023 = vmax.f32 %v2003, 0.0
      %v2024 = vmax.f32 %v2004, 0.0
      %v2025 = vmax.f32 %v2005, 0.0
      %v2026 = vmax.f32 %v2006, 0.0
      %v2027 = vmax.f32 %v2007, 0.0
      %v2028 = vmax.f32 %v2008, 0.0
      %v2029 = vmax.f32 %v2009, 0.0
      %v2030 = vmax.f32 %v2010, 0.0
      %v2031 = vmax.f32 %v2011, 0.0
      %v2032 = vmax.f32 %v2012, 0.0
      %v2033 = vmax.f32 %v2013, 0.0
      %v2034 = vmax.f32 %v2014, 0.0
      %v2035 = vpack.c.bf16 %v2016, %v2015
      %v2036 = vpack.c.bf16 %v2018, %v2017
      %v2037 = vpack.c.bf16 %v2020, %v2019
      %v2038 = vpack.c.bf16 %v2022, %v2021
      %v2039 = vpack.c.bf16 %v2024, %v2023
      %v2040 = vpack.c.bf16 %v2026, %v2025
      %v2041 = vpack.c.bf16 %v2028, %v2027
      %v2042 = vpack.c.bf16 %v2030, %v2029
      %v2043 = vpack.c.bf16 %v2032, %v2031
      %v2044 = vpack.c.bf16 %v2034, %v2033
      %vm2045 = vcmask 61444
      %vm2046 = vmand %vm2045, %vm309
      %v2047 = vld [vmem:[#allocation3] sm:$0x10]
      %v2048 = vsel %vm2046, 0, %v2047
      %2049 = vst [vmem:[#allocation3] sm:$0x10] %v2048
      %v2050 = vld [vmem:[#allocation3 + $0x10] sm:$0x10]
      %v2051 = vsel %vm2046, 0, %v2050
      %2052 = vst [vmem:[#allocation3 + $0x10] sm:$0x10] %v2051
      %v2053 = vld [vmem:[#allocation3 + $0x20] sm:$0x10]
      %v2054 = vsel %vm2046, 0, %v2053
      %2055 = vst [vmem:[#allocation3 + $0x20] sm:$0x10] %v2054
      %v2056 = vld [vmem:[#allocation3 + $0x30] sm:$0x10]
      %v2057 = vsel %vm2046, 0, %v2056
      %2058 = vst [vmem:[#allocation3 + $0x30] sm:$0x10] %v2057
      %v2059 = vld [vmem:[#allocation3 + $0x40] sm:$0x10]
      %v2060 = vsel %vm2046, 0, %v2059
      %2061 = vst [vmem:[#allocation3 + $0x40] sm:$0x10] %v2060
      %v2062 = vld [vmem:[#allocation3 + $0x50] sm:$0x10]
      %v2063 = vsel %vm2046, 0, %v2062
      %2064 = vst [vmem:[#allocation3 + $0x50] sm:$0x10] %v2063
      %v2065 = vld [vmem:[#allocation3 + $0x60] sm:$0x10]
      %v2066 = vsel %vm2046, 0, %v2065
      %2067 = vst [vmem:[#allocation3 + $0x60] sm:$0x10] %v2066
      %v2068 = vld [vmem:[#allocation3 + $0x70] sm:$0x10]
      %v2069 = vsel %vm2046, 0, %v2068
      %2070 = vst [vmem:[#allocation3 + $0x70] sm:$0x10] %v2069
      %v2071 = vld [vmem:[#allocation3 + $0x80] sm:$0x10]
      %v2072 = vsel %vm2046, 0, %v2071
      %2073 = vst [vmem:[#allocation3 + $0x80] sm:$0x10] %v2072
      %v2074 = vld [vmem:[#allocation3 + $0x90] sm:$0x10]
      %v2075 = vsel %vm2046, 0, %v2074
      %2076 = vst [vmem:[#allocation3 + $0x90] sm:$0x10] %v2075
      %vm2077 = vcmask 191619
      %vm2078 = vmand %vm2077, %vm348
      %v2079 = vld [vmem:[#allocation3 + $0x8] sm:$0x8]
      %v2080 = vsel %vm2078, 0, %v2079
      %2081 = vst [vmem:[#allocation3 + $0x8] sm:$0x8] %v2080
      %v2082 = vld [vmem:[#allocation3 + $0x18] sm:$0x8]
      %v2083 = vsel %vm2078, 0, %v2082
      %2084 = vst [vmem:[#allocation3 + $0x18] sm:$0x8] %v2083
      %v2085 = vld [vmem:[#allocation3 + $0x28] sm:$0x8]
      %v2086 = vsel %vm2078, 0, %v2085
      %2087 = vst [vmem:[#allocation3 + $0x28] sm:$0x8] %v2086
      %v2088 = vld [vmem:[#allocation3 + $0x38] sm:$0x8]
      %v2089 = vsel %vm2078, 0, %v2088
      %2090 = vst [vmem:[#allocation3 + $0x38] sm:$0x8] %v2089
      %v2091 = vld [vmem:[#allocation3 + $0x48] sm:$0x8]
      %v2092 = vsel %vm2078, 0, %v2091
      %2093 = vst [vmem:[#allocation3 + $0x48] sm:$0x8] %v2092
      %v2094 = vld [vmem:[#allocation3 + $0x58] sm:$0x8]
      %v2095 = vsel %vm2078, 0, %v2094
      %2096 = vst [vmem:[#allocation3 + $0x58] sm:$0x8] %v2095
      %v2097 = vld [vmem:[#allocation3 + $0x68] sm:$0x8]
      %v2098 = vsel %vm2078, 0, %v2097
      %2099 = vst [vmem:[#allocation3 + $0x68] sm:$0x8] %v2098
      %v2100 = vld [vmem:[#allocation3 + $0x78] sm:$0x8]
      %v2101 = vsel %vm2078, 0, %v2100
      %2102 = vst [vmem:[#allocation3 + $0x78] sm:$0x8] %v2101
      %v2103 = vld [vmem:[#allocation3 + $0x88] sm:$0x8]
      %v2104 = vsel %vm2078, 0, %v2103
      %2105 = vst [vmem:[#allocation3 + $0x88] sm:$0x8] %v2104
      %v2106 = vld [vmem:[#allocation3 + $0x98] sm:$0x8]
      %v2107 = vsel %vm2078, 0, %v2106
      %2108 = vst [vmem:[#allocation3 + $0x98] sm:$0x8] %v2107
      %v2110 = vshrl.u32 %v2035, 16
      %v2112 = vrot.slane %v2110, 3
      %v2113 = vshll.u32 %v2035, 16
      %v2115 = vrot.slane %v2113, 4
      %v2116 = vor.u32 %v2112, %v2115
      %v2118 = vshrl.u32 %v2036, 16
      %v2120 = vrot.slane %v2118, 3
      %v2121 = vshll.u32 %v2036, 16
      %v2123 = vrot.slane %v2121, 4
      %v2124 = vor.u32 %v2120, %v2123
      %v2126 = vshrl.u32 %v2037, 16
      %v2128 = vrot.slane %v2126, 3
      %v2129 = vshll.u32 %v2037, 16
      %v2131 = vrot.slane %v2129, 4
      %v2132 = vor.u32 %v2128, %v2131
      %v2134 = vshrl.u32 %v2038, 16
      %v2136 = vrot.slane %v2134, 3
      %v2137 = vshll.u32 %v2038, 16
      %v2139 = vrot.slane %v2137, 4
      %v2140 = vor.u32 %v2136, %v2139
      %v2142 = vshrl.u32 %v2039, 16
      %v2144 = vrot.slane %v2142, 3
      %v2145 = vshll.u32 %v2039, 16
      %v2147 = vrot.slane %v2145, 4
      %v2148 = vor.u32 %v2144, %v2147
      %v2150 = vshrl.u32 %v2040, 16
      %v2152 = vrot.slane %v2150, 3
      %v2153 = vshll.u32 %v2040, 16
      %v2155 = vrot.slane %v2153, 4
      %v2156 = vor.u32 %v2152, %v2155
      %v2158 = vshrl.u32 %v2041, 16
      %v2160 = vrot.slane %v2158, 3
      %v2161 = vshll.u32 %v2041, 16
      %v2163 = vrot.slane %v2161, 4
      %v2164 = vor.u32 %v2160, %v2163
      %v2166 = vshrl.u32 %v2042, 16
      %v2168 = vrot.slane %v2166, 3
      %v2169 = vshll.u32 %v2042, 16
      %v2171 = vrot.slane %v2169, 4
      %v2172 = vor.u32 %v2168, %v2171
      %v2174 = vshrl.u32 %v2043, 16
      %v2176 = vrot.slane %v2174, 3
      %v2177 = vshll.u32 %v2043, 16
      %v2179 = vrot.slane %v2177, 4
      %v2180 = vor.u32 %v2176, %v2179
      %v2182 = vshrl.u32 %v2044, 16
      %v2184 = vrot.slane %v2182, 3
      %v2185 = vshll.u32 %v2044, 16
      %v2187 = vrot.slane %v2185, 4
      %v2188 = vor.u32 %v2184, %v2187
      %vm2199 = vcmask 64516
      %vm2200 = vmand %vm2199, %vm432
      %v2201 = vld [vmem:[#allocation3] sm:$0xf0]
      %v2202 = vsel %vm2200, %v2116, %v2201
      %2203 = vst [vmem:[#allocation3] sm:$0xf0] %v2202
      %vm2204 = vcmask 61440
      %vm2205 = vmand %vm2204, %vm309
      %v2206 = vld [vmem:[#allocation3 + $0x8] sm:$0x1f]
      %v2207 = vsel %vm2205, %v2116, %v2206
      %2208 = vst [vmem:[#allocation3 + $0x8] sm:$0x1f] %v2207
      %v2209 = vld [vmem:[#allocation3 + $0x10] sm:$0xf0]
      %v2210 = vsel %vm2200, %v2124, %v2209
      %2211 = vst [vmem:[#allocation3 + $0x10] sm:$0xf0] %v2210
      %v2212 = vld [vmem:[#allocation3 + $0x18] sm:$0x1f]
      %v2213 = vsel %vm2205, %v2124, %v2212
      %2214 = vst [vmem:[#allocation3 + $0x18] sm:$0x1f] %v2213
      %v2215 = vld [vmem:[#allocation3 + $0x20] sm:$0xf0]
      %v2216 = vsel %vm2200, %v2132, %v2215
      %2217 = vst [vmem:[#allocation3 + $0x20] sm:$0xf0] %v2216
      %v2218 = vld [vmem:[#allocation3 + $0x28] sm:$0x1f]
      %v2219 = vsel %vm2205, %v2132, %v2218
      %2220 = vst [vmem:[#allocation3 + $0x28] sm:$0x1f] %v2219
      %v2221 = vld [vmem:[#allocation3 + $0x30] sm:$0xf0]
      %v2222 = vsel %vm2200, %v2140, %v2221
      %2223 = vst [vmem:[#allocation3 + $0x30] sm:$0xf0] %v2222
      %v2224 = vld [vmem:[#allocation3 + $0x38] sm:$0x1f]
      %v2225 = vsel %vm2205, %v2140, %v2224
      %2226 = vst [vmem:[#allocation3 + $0x38] sm:$0x1f] %v2225
      %v2227 = vld [vmem:[#allocation3 + $0x40] sm:$0xf0]
      %v2228 = vsel %vm2200, %v2148, %v2227
      %2229 = vst [vmem:[#allocation3 + $0x40] sm:$0xf0] %v2228
      %v2230 = vld [vmem:[#allocation3 + $0x48] sm:$0x1f]
      %v2231 = vsel %vm2205, %v2148, %v2230
      %2232 = vst [vmem:[#allocation3 + $0x48] sm:$0x1f] %v2231
      %v2233 = vld [vmem:[#allocation3 + $0x50] sm:$0xf0]
      %v2234 = vsel %vm2200, %v2156, %v2233
      %2235 = vst [vmem:[#allocation3 + $0x50] sm:$0xf0] %v2234
      %v2236 = vld [vmem:[#allocation3 + $0x58] sm:$0x1f]
      %v2237 = vsel %vm2205, %v2156, %v2236
      %2238 = vst [vmem:[#allocation3 + $0x58] sm:$0x1f] %v2237
      %v2239 = vld [vmem:[#allocation3 + $0x60] sm:$0xf0]
      %v2240 = vsel %vm2200, %v2164, %v2239
      %2241 = vst [vmem:[#allocation3 + $0x60] sm:$0xf0] %v2240
      %v2242 = vld [vmem:[#allocation3 + $0x68] sm:$0x1f]
      %v2243 = vsel %vm2205, %v2164, %v2242
      %2244 = vst [vmem:[#allocation3 + $0x68] sm:$0x1f] %v2243
      %v2245 = vld [vmem:[#allocation3 + $0x70] sm:$0xf0]
      %v2246 = vsel %vm2200, %v2172, %v2245
      %2247 = vst [vmem:[#allocation3 + $0x70] sm:$0xf0] %v2246
      %v2248 = vld [vmem:[#allocation3 + $0x78] sm:$0x1f]
      %v2249 = vsel %vm2205, %v2172, %v2248
      %2250 = vst [vmem:[#allocation3 + $0x78] sm:$0x1f] %v2249
      %v2251 = vld [vmem:[#allocation3 + $0x80] sm:$0xf0]
      %v2252 = vsel %vm2200, %v2180, %v2251
      %2253 = vst [vmem:[#allocation3 + $0x80] sm:$0xf0] %v2252
      %v2254 = vld [vmem:[#allocation3 + $0x88] sm:$0x1f]
      %v2255 = vsel %vm2205, %v2180, %v2254
      %2256 = vst [vmem:[#allocation3 + $0x88] sm:$0x1f] %v2255
      %v2257 = vld [vmem:[#allocation3 + $0x90] sm:$0xf0]
      %v2258 = vsel %vm2200, %v2188, %v2257
      %2259 = vst [vmem:[#allocation3 + $0x90] sm:$0xf0] %v2258
      %v2260 = vld [vmem:[#allocation3 + $0x98] sm:$0x1f]
      %v2261 = vsel %vm2205, %v2188, %v2260
      %2262 = vst [vmem:[#allocation3 + $0x98] sm:$0x1f] %v2261
      %v2273 = vrot.slane %v2035, 4
      %v2274 = vrot.slane %v2036, 4
      %v2275 = vrot.slane %v2037, 4
      %v2276 = vrot.slane %v2038, 4
      %v2277 = vrot.slane %v2039, 4
      %v2278 = vrot.slane %v2040, 4
      %v2279 = vrot.slane %v2041, 4
      %v2280 = vrot.slane %v2042, 4
      %v2281 = vrot.slane %v2043, 4
      %v2282 = vrot.slane %v2044, 4
      %2283 = vrot.lane.b32.xlu0 %v2273, 8
      %v2284 = vpop.permute.xlu0 %2283
      %2285 = vrot.lane.b32.xlu0 %v2274, 8
      %v2286 = vpop.permute.xlu0 %2285
      %2287 = vrot.lane.b32.xlu0 %v2275, 8
      %v2288 = vpop.permute.xlu0 %2287
      %2289 = vrot.lane.b32.xlu0 %v2276, 8
      %v2290 = vpop.permute.xlu0 %2289
      %2291 = vrot.lane.b32.xlu0 %v2277, 8
      %v2292 = vpop.permute.xlu0 %2291
      %2293 = vrot.lane.b32.xlu0 %v2278, 8
      %v2294 = vpop.permute.xlu0 %2293
      %2295 = vrot.lane.b32.xlu0 %v2279, 8
      %v2296 = vpop.permute.xlu0 %2295
      %2297 = vrot.lane.b32.xlu0 %v2280, 8
      %v2298 = vpop.permute.xlu0 %2297
      %2299 = vrot.lane.b32.xlu0 %v2281, 8
      %v2300 = vpop.permute.xlu0 %2299
      %2301 = vrot.lane.b32.xlu0 %v2282, 8
      %v2302 = vpop.permute.xlu0 %2301
      %vm2313 = vcmask 130116
      %2314 = vst.msk [vmem:[#allocation3] sm:$0xf0] %vm2313, %v2284
      %vm2315 = vcmask 126016
      %2316 = vst.msk [vmem:[#allocation3 + $0x8] sm:$0xf] %vm2315, %v2284
      %2317 = vst.msk [vmem:[#allocation3 + $0x10] sm:$0xf0] %vm2313, %v2286
      %2318 = vst.msk [vmem:[#allocation3 + $0x18] sm:$0xf] %vm2315, %v2286
      %2319 = vst.msk [vmem:[#allocation3 + $0x20] sm:$0xf0] %vm2313, %v2288
      %2320 = vst.msk [vmem:[#allocation3 + $0x28] sm:$0xf] %vm2315, %v2288
      %2321 = vst.msk [vmem:[#allocation3 + $0x30] sm:$0xf0] %vm2313, %v2290
      %2322 = vst.msk [vmem:[#allocation3 + $0x38] sm:$0xf] %vm2315, %v2290
      %2323 = vst.msk [vmem:[#allocation3 + $0x40] sm:$0xf0] %vm2313, %v2292
      %2324 = vst.msk [vmem:[#allocation3 + $0x48] sm:$0xf] %vm2315, %v2292
      %2325 = vst.msk [vmem:[#allocation3 + $0x50] sm:$0xf0] %vm2313, %v2294
      %2326 = vst.msk [vmem:[#allocation3 + $0x58] sm:$0xf] %vm2315, %v2294
      %2327 = vst.msk [vmem:[#allocation3 + $0x60] sm:$0xf0] %vm2313, %v2296
      %2328 = vst.msk [vmem:[#allocation3 + $0x68] sm:$0xf] %vm2315, %v2296
      %2329 = vst.msk [vmem:[#allocation3 + $0x70] sm:$0xf0] %vm2313, %v2298
      %2330 = vst.msk [vmem:[#allocation3 + $0x78] sm:$0xf] %vm2315, %v2298
      %2331 = vst.msk [vmem:[#allocation3 + $0x80] sm:$0xf0] %vm2313, %v2300
      %2332 = vst.msk [vmem:[#allocation3 + $0x88] sm:$0xf] %vm2315, %v2300
      %2333 = vst.msk [vmem:[#allocation3 + $0x90] sm:$0xf0] %vm2313, %v2302
      %2334 = vst.msk [vmem:[#allocation3 + $0x98] sm:$0xf] %vm2315, %v2302
      %v2335 = vrot.slane %v2110, 4
      %v2336 = vrot.slane %v2113, 5
      %v2337 = vor.u32 %v2335, %v2336
      %v2338 = vrot.slane %v2118, 4
      %v2339 = vrot.slane %v2121, 5
      %v2340 = vor.u32 %v2338, %v2339
      %v2341 = vrot.slane %v2126, 4
      %v2342 = vrot.slane %v2129, 5
      %v2343 = vor.u32 %v2341, %v2342
      %v2344 = vrot.slane %v2134, 4
      %v2345 = vrot.slane %v2137, 5
      %v2346 = vor.u32 %v2344, %v2345
      %v2347 = vrot.slane %v2142, 4
      %v2348 = vrot.slane %v2145, 5
      %v2349 = vor.u32 %v2347, %v2348
      %v2350 = vrot.slane %v2150, 4
      %v2351 = vrot.slane %v2153, 5
      %v2352 = vor.u32 %v2350, %v2351
      %v2353 = vrot.slane %v2158, 4
      %v2354 = vrot.slane %v2161, 5
      %v2355 = vor.u32 %v2353, %v2354
      %v2356 = vrot.slane %v2166, 4
      %v2357 = vrot.slane %v2169, 5
      %v2358 = vor.u32 %v2356, %v2357
      %v2359 = vrot.slane %v2174, 4
      %v2360 = vrot.slane %v2177, 5
      %v2361 = vor.u32 %v2359, %v2360
      %v2362 = vrot.slane %v2182, 4
      %v2363 = vrot.slane %v2185, 5
      %v2364 = vor.u32 %v2362, %v2363
      %2365 = vrot.lane.b32.xlu0 %v2337, 16
      %v2366 = vpop.permute.xlu0 %2365
      %2367 = vrot.lane.b32.xlu0 %v2340, 16
      %v2368 = vpop.permute.xlu0 %2367
      %2369 = vrot.lane.b32.xlu0 %v2343, 16
      %v2370 = vpop.permute.xlu0 %2369
      %2371 = vrot.lane.b32.xlu0 %v2346, 16
      %v2372 = vpop.permute.xlu0 %2371
      %2373 = vrot.lane.b32.xlu0 %v2349, 16
      %v2374 = vpop.permute.xlu0 %2373
      %2375 = vrot.lane.b32.xlu0 %v2352, 16
      %v2376 = vpop.permute.xlu0 %2375
      %2377 = vrot.lane.b32.xlu0 %v2355, 16
      %v2378 = vpop.permute.xlu0 %2377
      %2379 = vrot.lane.b32.xlu0 %v2358, 16
      %v2380 = vpop.permute.xlu0 %2379
      %2381 = vrot.lane.b32.xlu0 %v2361, 16
      %v2382 = vpop.permute.xlu0 %2381
      %2383 = vrot.lane.b32.xlu0 %v2364, 16
      %v2384 = vpop.permute.xlu0 %2383
      %vm2395 = vcmask 195715
      %vm2396 = vmand %vm2395, %vm348
      %v2397 = vld [vmem:[#allocation3] sm:$0xf8]
      %v2398 = vsel %vm2396, %v2366, %v2397
      %2399 = vst [vmem:[#allocation3] sm:$0xf8] %v2398
      %vm2400 = vcmask 191616
      %vm2401 = vmand %vm2400, %vm466
      %v2402 = vld [vmem:[#allocation3 + $0x8] sm:$0xf]
      %v2403 = vsel %vm2401, %v2366, %v2402
      %2404 = vst [vmem:[#allocation3 + $0x8] sm:$0xf] %v2403
      %v2405 = vld [vmem:[#allocation3 + $0x10] sm:$0xf8]
      %v2406 = vsel %vm2396, %v2368, %v2405
      %2407 = vst [vmem:[#allocation3 + $0x10] sm:$0xf8] %v2406
      %v2408 = vld [vmem:[#allocation3 + $0x18] sm:$0xf]
      %v2409 = vsel %vm2401, %v2368, %v2408
      %2410 = vst [vmem:[#allocation3 + $0x18] sm:$0xf] %v2409
      %v2411 = vld [vmem:[#allocation3 + $0x20] sm:$0xf8]
      %v2412 = vsel %vm2396, %v2370, %v2411
      %2413 = vst [vmem:[#allocation3 + $0x20] sm:$0xf8] %v2412
      %v2414 = vld [vmem:[#allocation3 + $0x28] sm:$0xf]
      %v2415 = vsel %vm2401, %v2370, %v2414
      %2416 = vst [vmem:[#allocation3 + $0x28] sm:$0xf] %v2415
      %v2417 = vld [vmem:[#allocation3 + $0x30] sm:$0xf8]
      %v2418 = vsel %vm2396, %v2372, %v2417
      %2419 = vst [vmem:[#allocation3 + $0x30] sm:$0xf8] %v2418
      %v2420 = vld [vmem:[#allocation3 + $0x38] sm:$0xf]
      %v2421 = vsel %vm2401, %v2372, %v2420
      %2422 = vst [vmem:[#allocation3 + $0x38] sm:$0xf] %v2421
      %v2423 = vld [vmem:[#allocation3 + $0x40] sm:$0xf8]
      %v2424 = vsel %vm2396, %v2374, %v2423
      %2425 = vst [vmem:[#allocation3 + $0x40] sm:$0xf8] %v2424
      %v2426 = vld [vmem:[#allocation3 + $0x48] sm:$0xf]
      %v2427 = vsel %vm2401, %v2374, %v2426
      %2428 = vst [vmem:[#allocation3 + $0x48] sm:$0xf] %v2427
      %v2429 = vld [vmem:[#allocation3 + $0x50] sm:$0xf8]
      %v2430 = vsel %vm2396, %v2376, %v2429
      %2431 = vst [vmem:[#allocation3 + $0x50] sm:$0xf8] %v2430
      %v2432 = vld [vmem:[#allocation3 + $0x58] sm:$0xf]
      %v2433 = vsel %vm2401, %v2376, %v2432
      %2434 = vst [vmem:[#allocation3 + $0x58] sm:$0xf] %v2433
      %v2435 = vld [vmem:[#allocation3 + $0x60] sm:$0xf8]
      %v2436 = vsel %vm2396, %v2378, %v2435
      %2437 = vst [vmem:[#allocation3 + $0x60] sm:$0xf8] %v2436
      %v2438 = vld [vmem:[#allocation3 + $0x68] sm:$0xf]
      %v2439 = vsel %vm2401, %v2378, %v2438
      %2440 = vst [vmem:[#allocation3 + $0x68] sm:$0xf] %v2439
      %v2441 = vld [vmem:[#allocation3 + $0x70] sm:$0xf8]
      %v2442 = vsel %vm2396, %v2380, %v2441
      %2443 = vst [vmem:[#allocation3 + $0x70] sm:$0xf8] %v2442
      %v2444 = vld [vmem:[#allocation3 + $0x78] sm:$0xf]
      %v2445 = vsel %vm2401, %v2380, %v2444
      %2446 = vst [vmem:[#allocation3 + $0x78] sm:$0xf] %v2445
      %v2447 = vld [vmem:[#allocation3 + $0x80] sm:$0xf8]
      %v2448 = vsel %vm2396, %v2382, %v2447
      %2449 = vst [vmem:[#allocation3 + $0x80] sm:$0xf8] %v2448
      %v2450 = vld [vmem:[#allocation3 + $0x88] sm:$0xf]
      %v2451 = vsel %vm2401, %v2382, %v2450
      %2452 = vst [vmem:[#allocation3 + $0x88] sm:$0xf] %v2451
      %v2453 = vld [vmem:[#allocation3 + $0x90] sm:$0xf8]
      %v2454 = vsel %vm2396, %v2384, %v2453
      %2455 = vst [vmem:[#allocation3 + $0x90] sm:$0xf8] %v2454
      %v2456 = vld [vmem:[#allocation3 + $0x98] sm:$0xf]
      %v2457 = vsel %vm2401, %v2384, %v2456
      %2458 = vst [vmem:[#allocation3 + $0x98] sm:$0xf] %v2457
      %p2459 = scmp.eq.s32.totalorder %s23, 0
      // Predicated region
      $region49: #{tpu_custom_call.1} parent=47 // pred_check
        %p2460 = pneg %p2459
      $region50: #{tpu_custom_call.1} parent=47 // pred_check_branch
        %2462 = sbr.rel (%p2460) target = $region52
      $region51: #{tpu_custom_call.1} parent=47 // pred_region
        %vm2463 = vcmask 195584
        %2464 = vst.msk [vmem:[#allocation3] sm:$0xff] %vm2463, 0
        %2465 = vst.msk [vmem:[#allocation3 + $0x8] sm:$0xff] %vm2463, 0
      $region52: #{tpu_custom_call.1} parent=47 // pred_fallthru
        _
      %p2466 = scmp.eq.s32.totalorder %s23, 1
      // Predicated region
      $region53: #{tpu_custom_call.1} parent=47 // pred_check
        %p2467 = pneg %p2466
      $region54: #{tpu_custom_call.1} parent=47 // pred_check_branch
        %2469 = sbr.rel (%p2467) target = $region56
      $region55: #{tpu_custom_call.1} parent=47 // pred_region
        %s2470 = scalar_lea.vmem [#allocation3], 144
        %vm2471 = vcmask 195584
        %2472 = vst.msk [vmem:[%s2470] sm:$0xff] %vm2471, 0
        %2473 = vst.msk [vmem:[%s2470 + $0x8] sm:$0xff] %vm2471, 0
      $region56: #{tpu_custom_call.1} parent=47 // pred_fallthru
        _
      %v2474 = vld [vmem:[#allocation3] sm:$0xf0]
      %v2475 = vld [vmem:[#allocation3 + $0x8] sm:$0xf]
      %v2476 = vld [vmem:[#allocation3 + $0x10] sm:$0xf0]
      %v2477 = vld [vmem:[#allocation3 + $0x18] sm:$0xf]
      %v2478 = vld [vmem:[#allocation3 + $0x20] sm:$0xf0]
      %v2479 = vld [vmem:[#allocation3 + $0x28] sm:$0xf]
      %v2480 = vld [vmem:[#allocation3 + $0x30] sm:$0xf0]
      %v2481 = vld [vmem:[#allocation3 + $0x38] sm:$0xf]
      %v2482 = vld [vmem:[#allocation3 + $0x40] sm:$0xf0]
      %v2483 = vld [vmem:[#allocation3 + $0x48] sm:$0xf]
      %v2484 = vld [vmem:[#allocation3 + $0x50] sm:$0xf0]
      %v2485 = vld [vmem:[#allocation3 + $0x58] sm:$0xf]
      %v2486 = vld [vmem:[#allocation3 + $0x60] sm:$0xf0]
      %v2487 = vld [vmem:[#allocation3 + $0x68] sm:$0xf]
      %v2488 = vld [vmem:[#allocation3 + $0x70] sm:$0xf0]
      %v2489 = vld [vmem:[#allocation3 + $0x78] sm:$0xf]
      %v2506 = vrot.slane %v2474, 4
      %v2507 = vrot.slane %v2475, 4
      %v2508 = vsel %vm1334, %v2506, %v2507
      %v2509 = vrot.slane %v2476, 4
      %v2510 = vrot.slane %v2477, 4
      %v2511 = vsel %vm1334, %v2509, %v2510
      %v2512 = vrot.slane %v2478, 4
      %v2513 = vrot.slane %v2479, 4
      %v2514 = vsel %vm1334, %v2512, %v2513
      %v2515 = vrot.slane %v2480, 4
      %v2516 = vrot.slane %v2481, 4
      %v2517 = vsel %vm1334, %v2515, %v2516
      %v2518 = vrot.slane %v2482, 4
      %v2519 = vrot.slane %v2483, 4
      %v2520 = vsel %vm1334, %v2518, %v2519
      %v2521 = vrot.slane %v2484, 4
      %v2522 = vrot.slane %v2485, 4
      %v2523 = vsel %vm1334, %v2521, %v2522
      %v2524 = vrot.slane %v2486, 4
      %v2525 = vrot.slane %v2487, 4
      %v2526 = vsel %vm1334, %v2524, %v2525
      %v2527 = vrot.slane %v2488, 4
      %v2528 = vrot.slane %v2489, 4
      %v2529 = vsel %vm1334, %v2527, %v2528
      %v2530 = vld [vmem:[%s3] sm:$0xf]
      %v2531 = vld [vmem:[%s3 + $0x4] sm:$0xf]
      %v2532 = vld [vmem:[%s3 + $0x8] sm:$0xf]
      %s2533 = scalar_lea.vmem [#allocation3], 16
      %v2534 = vld [vmem:[%s2533] sm:$0xf0]
      %v2535 = vld [vmem:[%s2533 + $0x8] sm:$0xf]
      %v2536 = vld [vmem:[%s2533 + $0x10] sm:$0xf0]
      %v2537 = vld [vmem:[%s2533 + $0x18] sm:$0xf]
      %v2538 = vld [vmem:[%s2533 + $0x20] sm:$0xf0]
      %v2539 = vld [vmem:[%s2533 + $0x28] sm:$0xf]
      %v2540 = vld [vmem:[%s2533 + $0x30] sm:$0xf0]
      %v2541 = vld [vmem:[%s2533 + $0x38] sm:$0xf]
      %v2542 = vld [vmem:[%s2533 + $0x40] sm:$0xf0]
      %v2543 = vld [vmem:[%s2533 + $0x48] sm:$0xf]
      %v2544 = vld [vmem:[%s2533 + $0x50] sm:$0xf0]
      %v2545 = vld [vmem:[%s2533 + $0x58] sm:$0xf]
      %v2546 = vld [vmem:[%s2533 + $0x60] sm:$0xf0]
      %v2547 = vld [vmem:[%s2533 + $0x68] sm:$0xf]
      %v2548 = vld [vmem:[%s2533 + $0x70] sm:$0xf0]
      %v2549 = vld [vmem:[%s2533 + $0x78] sm:$0xf]
      %v2566 = vrot.slane %v2534, 4
      %v2567 = vrot.slane %v2535, 4
      %v2568 = vsel %vm1334, %v2566, %v2567
      %v2569 = vrot.slane %v2536, 4
      %v2570 = vrot.slane %v2537, 4
      %v2571 = vsel %vm1334, %v2569, %v2570
      %v2572 = vrot.slane %v2538, 4
      %v2573 = vrot.slane %v2539, 4
      %v2574 = vsel %vm1334, %v2572, %v2573
      %v2575 = vrot.slane %v2540, 4
      %v2576 = vrot.slane %v2541, 4
      %v2577 = vsel %vm1334, %v2575, %v2576
      %v2578 = vrot.slane %v2542, 4
      %v2579 = vrot.slane %v2543, 4
      %v2580 = vsel %vm1334, %v2578, %v2579
      %v2581 = vrot.slane %v2544, 4
      %v2582 = vrot.slane %v2545, 4
      %v2583 = vsel %vm1334, %v2581, %v2582
      %v2584 = vrot.slane %v2546, 4
      %v2585 = vrot.slane %v2547, 4
      %v2586 = vsel %vm1334, %v2584, %v2585
      %v2587 = vrot.slane %v2548, 4
      %v2588 = vrot.slane %v2549, 4
      %v2589 = vsel %vm1334, %v2587, %v2588
      %s2590 = scalar_lea.vmem %s3, 12
      %v2591 = vld [vmem:[%s2590] sm:$0xf]
      %v2592 = vld [vmem:[%s2590 + $0x4] sm:$0xf]
      %v2593 = vld [vmem:[%s2590 + $0x8] sm:$0xf]
      %v2597 = vunpack.c.l.b16 %v2591
      %v2598 = vunpack.c.l.b16 %v2592
      %v2599 = vunpack.c.l.b16 %v2593
      %v2600 = vpack.c.b16 %v2598, %v2597
      %v2601 = vpack.c.b16 %v2599, %v2599
      %vm2603 = vcmask 195584
      %v2605 = vsel %vm2603, %v2568, 0
      %v2608 = vsel %vm2603, %v2571, 0
      %v2611 = vsel %vm2603, %v2574, 0
      %v2614 = vsel %vm2603, %v2577, 0
      %v2617 = vsel %vm2603, %v2580, 0
      %v2620 = vsel %vm2603, %v2583, 0
      %v2623 = vsel %vm2603, %v2586, 0
      %v2626 = vsel %vm2603, %v2589, 0
      %vm2628 = vcmask 1043456
      %v2630 = vsel %vm2628, %v2601, 0
      %2632 = vmatprep.subr.bf16.mxu0 0
      %2633 = vmatpush1.bf16.msra.mxu0 %v2600
      %2634 = vmatprep.subr.bf16.mxu0 0
      %2635 = vmatpush1.bf16.msra.mxu0 %v2630
      %2636 = vmatprep.subr.bf16.mxu0 0
      %2637 = vmatpush1.bf16.msra.mxu0 0
      %2638 = vmatprep.subr.bf16.mxu0 0
      %2639 = vmatpush1.bf16.msra.mxu0 0
      %2640 = vmatprep.subr.bf16.mxu0 0
      %2641 = vmatpush1.bf16.msra.mxu0 0
      %2642 = vmatprep.subr.bf16.mxu0 0
      %2643 = vmatpush1.bf16.msra.mxu0 0
      %2644 = vmatprep.subr.bf16.mxu0 0
      %2645 = vmatpush1.bf16.msra.mxu0 0
      %2646 = vmatprep.subr.bf16.mxu0 0
      %2647 = vmatpush1.bf16.msra.mxu0 0
      %2648 = vmatprep.subr.bf16.mxu0 0
      %2649 = vmatpush1.bf16.msra.mxu0 0
      %2650 = vmatprep.subr.bf16.mxu0 0
      %2651 = vmatpush1.bf16.msra.mxu0 0
      %2652 = vmatprep.subr.bf16.mxu0 0
      %2653 = vmatpush1.bf16.msra.mxu0 0
      %2654 = vmatprep.subr.bf16.mxu0 0
      %2655 = vmatpush1.bf16.msra.mxu0 0
      %2656 = vmatprep.subr.bf16.mxu0 0
      %2657 = vmatpush1.bf16.msra.mxu0 0
      %2658 = vmatprep.subr.bf16.mxu0 0
      %2659 = vmatpush1.bf16.msra.mxu0 0
      %2660 = vmatprep.subr.bf16.mxu0 0
      %2661 = vmatpush1.bf16.msra.mxu0 0
      %2662 = vmatprep.subr.bf16.mxu0 0
      %2663 = vmatpush1.bf16.msra.mxu0 0
      %2664 = vmatprep.mubr.bf16.mxu0 0
      %2665 = vmatmul.mubr.bf16.gmra.mrb[0].mxu0 %v2605
      %v2666 = vpop.f32.mrb[0].mxu0
      %v2667 = vadd.f32 0.0, %v2666
      %v2668 = vpop.f32.mrb[0].mxu0
      %v2669 = vpop.f32.mrb[0].mxu0
      %v2670 = vadd.f32 0.0, %v2669
      %v2671 = vpop.f32.mrb[0].mxu0
      %2672 = vmatprep.mubr.bf16.mxu0 0
      %2673 = vmatmul.mubr.bf16.gmra.mrb[0].mxu0 %v2608
      %v2674 = vpop.f32.mrb[0].mxu0
      %v2675 = vadd.f32 0.0, %v2674
      %v2676 = vpop.f32.mrb[0].mxu0
      %v2677 = vpop.f32.mrb[0].mxu0
      %v2678 = vadd.f32 0.0, %v2677
      %v2679 = vpop.f32.mrb[0].mxu0
      %2680 = vmatprep.mubr.bf16.mxu0 0
      %2681 = vmatmul.mubr.bf16.gmra.mrb[0].mxu0 %v2611
      %v2682 = vpop.f32.mrb[0].mxu0
      %v2683 = vadd.f32 0.0, %v2682
      %v2684 = vpop.f32.mrb[0].mxu0
      %v2685 = vpop.f32.mrb[0].mxu0
      %v2686 = vadd.f32 0.0, %v2685
      %v2687 = vpop.f32.mrb[0].mxu0
      %2688 = vmatprep.mubr.bf16.mxu0 0
      %2689 = vmatmul.mubr.bf16.gmra.mrb[0].mxu0 %v2614
      %v2690 = vpop.f32.mrb[0].mxu0
      %v2691 = vadd.f32 0.0, %v2690
      %v2692 = vpop.f32.mrb[0].mxu0
      %v2693 = vpop.f32.mrb[0].mxu0
      %v2694 = vadd.f32 0.0, %v2693
      %v2695 = vpop.f32.mrb[0].mxu0
      %2696 = vmatprep.mubr.bf16.mxu0 0
      %2697 = vmatmul.mubr.bf16.gmra.mrb[0].mxu0 %v2617
      %v2698 = vpop.f32.mrb[0].mxu0
      %v2699 = vadd.f32 0.0, %v2698
      %v2700 = vpop.f32.mrb[0].mxu0
      %v2701 = vpop.f32.mrb[0].mxu0
      %v2702 = vadd.f32 0.0, %v2701
      %v2703 = vpop.f32.mrb[0].mxu0
      %2704 = vmatprep.mubr.bf16.mxu0 0
      %2705 = vmatmul.mubr.bf16.gmra.mrb[0].mxu0 %v2620
      %v2706 = vpop.f32.mrb[0].mxu0
      %v2707 = vadd.f32 0.0, %v2706
      %v2708 = vpop.f32.mrb[0].mxu0
      %v2709 = vpop.f32.mrb[0].mxu0
      %v2710 = vadd.f32 0.0, %v2709
      %v2711 = vpop.f32.mrb[0].mxu0
      %2712 = vmatprep.mubr.bf16.mxu0 0
      %2713 = vmatmul.mubr.bf16.gmra.mrb[0].mxu0 %v2623
      %v2714 = vpop.f32.mrb[0].mxu0
      %v2715 = vadd.f32 0.0, %v2714
      %v2716 = vpop.f32.mrb[0].mxu0
      %v2717 = vpop.f32.mrb[0].mxu0
      %v2718 = vadd.f32 0.0, %v2717
      %v2719 = vpop.f32.mrb[0].mxu0
      %2720 = vmatprep.mubr.bf16.mxu0 0
      %2721 = vmatmul.mubr.bf16.gmra.mrb[0].mxu0 %v2626
      %v2722 = vpop.f32.mrb[0].mxu0
      %v2723 = vadd.f32 0.0, %v2722
      %v2724 = vpop.f32.mrb[0].mxu0
      %v2725 = vpop.f32.mrb[0].mxu0
      %v2726 = vadd.f32 0.0, %v2725
      %v2727 = vpop.f32.mrb[0].mxu0
      %2728 = vdwg.mxu0
      %v2732 = vunpack.c.l.b16 %v2530
      %v2733 = vunpack.c.l.b16 %v2531
      %v2734 = vunpack.c.l.b16 %v2532
      %v2735 = vpack.c.b16 %v2733, %v2732
      %v2736 = vpack.c.b16 %v2734, %v2734
      %v2739 = vsel %vm2603, %v2508, 0
      %v2742 = vsel %vm2603, %v2511, 0
      %v2745 = vsel %vm2603, %v2514, 0
      %v2748 = vsel %vm2603, %v2517, 0
      %v2751 = vsel %vm2603, %v2520, 0
      %v2754 = vsel %vm2603, %v2523, 0
      %v2757 = vsel %vm2603, %v2526, 0
      %v2760 = vsel %vm2603, %v2529, 0
      %v2763 = vsel %vm2628, %v2736, 0
      %2765 = vmatprep.subr.bf16.mxu0 0
      %2766 = vmatpush1.bf16.msra.mxu0 %v2735
      %2767 = vmatprep.subr.bf16.mxu0 0
      %2768 = vmatpush1.bf16.msra.mxu0 %v2763
      %2769 = vmatprep.subr.bf16.mxu0 0
      %2770 = vmatpush1.bf16.msra.mxu0 0
      %2771 = vmatprep.subr.bf16.mxu0 0
      %2772 = vmatpush1.bf16.msra.mxu0 0
      %2773 = vmatprep.subr.bf16.mxu0 0
      %2774 = vmatpush1.bf16.msra.mxu0 0
      %2775 = vmatprep.subr.bf16.mxu0 0
      %2776 = vmatpush1.bf16.msra.mxu0 0
      %2777 = vmatprep.subr.bf16.mxu0 0
      %2778 = vmatpush1.bf16.msra.mxu0 0
      %2779 = vmatprep.subr.bf16.mxu0 0
      %2780 = vmatpush1.bf16.msra.mxu0 0
      %2781 = vmatprep.subr.bf16.mxu0 0
      %2782 = vmatpush1.bf16.msra.mxu0 0
      %2783 = vmatprep.subr.bf16.mxu0 0
      %2784 = vmatpush1.bf16.msra.mxu0 0
      %2785 = vmatprep.subr.bf16.mxu0 0
      %2786 = vmatpush1.bf16.msra.mxu0 0
      %2787 = vmatprep.subr.bf16.mxu0 0
      %2788 = vmatpush1.bf16.msra.mxu0 0
      %2789 = vmatprep.subr.bf16.mxu0 0
      %2790 = vmatpush1.bf16.msra.mxu0 0
      %2791 = vmatprep.subr.bf16.mxu0 0
      %2792 = vmatpush1.bf16.msra.mxu0 0
      %2793 = vmatprep.subr.bf16.mxu0 0
      %2794 = vmatpush1.bf16.msra.mxu0 0
      %2795 = vmatprep.subr.bf16.mxu0 0
      %2796 = vmatpush1.bf16.msra.mxu0 0
      %2797 = vmatprep.mubr.bf16.mxu0 0
      %2798 = vmatmul.mubr.bf16.gmra.mrb[0].mxu0 %v2739
      %v2799 = vpop.f32.mrb[0].mxu0
      %v2800 = vadd.f32 %v2667, %v2799
      %v2801 = vpop.f32.mrb[0].mxu0
      %v2802 = vpop.f32.mrb[0].mxu0
      %v2803 = vadd.f32 %v2670, %v2802
      %v2804 = vpop.f32.mrb[0].mxu0
      %2805 = vmatprep.mubr.bf16.mxu0 0
      %2806 = vmatmul.mubr.bf16.gmra.mrb[0].mxu0 %v2742
      %v2807 = vpop.f32.mrb[0].mxu0
      %v2808 = vadd.f32 %v2675, %v2807
      %v2809 = vpop.f32.mrb[0].mxu0
      %v2810 = vpop.f32.mrb[0].mxu0
      %v2811 = vadd.f32 %v2678, %v2810
      %v2812 = vpop.f32.mrb[0].mxu0
      %2813 = vmatprep.mubr.bf16.mxu0 0
      %2814 = vmatmul.mubr.bf16.gmra.mrb[0].mxu0 %v2745
      %v2815 = vpop.f32.mrb[0].mxu0
      %v2816 = vadd.f32 %v2683, %v2815
      %v2817 = vpop.f32.mrb[0].mxu0
      %v2818 = vpop.f32.mrb[0].mxu0
      %v2819 = vadd.f32 %v2686, %v2818
      %v2820 = vpop.f32.mrb[0].mxu0
      %2821 = vmatprep.mubr.bf16.mxu0 0
      %2822 = vmatmul.mubr.bf16.gmra.mrb[0].mxu0 %v2748
      %v2823 = vpop.f32.mrb[0].mxu0
      %v2824 = vadd.f32 %v2691, %v2823
      %v2825 = vpop.f32.mrb[0].mxu0
      %v2826 = vpop.f32.mrb[0].mxu0
      %v2827 = vadd.f32 %v2694, %v2826
      %v2828 = vpop.f32.mrb[0].mxu0
      %2829 = vmatprep.mubr.bf16.mxu0 0
      %2830 = vmatmul.mubr.bf16.gmra.mrb[0].mxu0 %v2751
      %v2831 = vpop.f32.mrb[0].mxu0
      %v2832 = vadd.f32 %v2699, %v2831
      %v2833 = vpop.f32.mrb[0].mxu0
      %v2834 = vpop.f32.mrb[0].mxu0
      %v2835 = vadd.f32 %v2702, %v2834
      %v2836 = vpop.f32.mrb[0].mxu0
      %2837 = vmatprep.mubr.bf16.mxu0 0
      %2838 = vmatmul.mubr.bf16.gmra.mrb[0].mxu0 %v2754
      %v2839 = vpop.f32.mrb[0].mxu0
      %v2840 = vadd.f32 %v2707, %v2839
      %v2841 = vpop.f32.mrb[0].mxu0
      %v2842 = vpop.f32.mrb[0].mxu0
      %v2843 = vadd.f32 %v2710, %v2842
      %v2844 = vpop.f32.mrb[0].mxu0
      %2845 = vmatprep.mubr.bf16.mxu0 0
      %2846 = vmatmul.mubr.bf16.gmra.mrb[0].mxu0 %v2757
      %v2847 = vpop.f32.mrb[0].mxu0
      %v2848 = vadd.f32 %v2715, %v2847
      %v2849 = vpop.f32.mrb[0].mxu0
      %v2850 = vpop.f32.mrb[0].mxu0
      %v2851 = vadd.f32 %v2718, %v2850
      %v2852 = vpop.f32.mrb[0].mxu0
      %2853 = vmatprep.mubr.bf16.mxu0 0
      %2854 = vmatmul.mubr.bf16.gmra.mrb[0].mxu0 %v2760
      %v2855 = vpop.f32.mrb[0].mxu0
      %v2856 = vadd.f32 %v2723, %v2855
      %v2857 = vpop.f32.mrb[0].mxu0
      %v2858 = vpop.f32.mrb[0].mxu0
      %v2859 = vadd.f32 %v2726, %v2858
      %v2860 = vpop.f32.mrb[0].mxu0
      %2861 = vdwg.mxu0
      %s2862 = scalar_lea.vmem [#allocation3], 32
      %v2863 = vld [vmem:[%s2862] sm:$0xf0]
      %v2864 = vld [vmem:[%s2862 + $0x8] sm:$0xf]
      %v2865 = vld [vmem:[%s2862 + $0x10] sm:$0xf0]
      %v2866 = vld [vmem:[%s2862 + $0x18] sm:$0xf]
      %v2867 = vld [vmem:[%s2862 + $0x20] sm:$0xf0]
      %v2868 = vld [vmem:[%s2862 + $0x28] sm:$0xf]
      %v2869 = vld [vmem:[%s2862 + $0x30] sm:$0xf0]
      %v2870 = vld [vmem:[%s2862 + $0x38] sm:$0xf]
      %v2871 = vld [vmem:[%s2862 + $0x40] sm:$0xf0]
      %v2872 = vld [vmem:[%s2862 + $0x48] sm:$0xf]
      %v2873 = vld [vmem:[%s2862 + $0x50] sm:$0xf0]
      %v2874 = vld [vmem:[%s2862 + $0x58] sm:$0xf]
      %v2875 = vld [vmem:[%s2862 + $0x60] sm:$0xf0]
      %v2876 = vld [vmem:[%s2862 + $0x68] sm:$0xf]
      %v2877 = vld [vmem:[%s2862 + $0x70] sm:$0xf0]
      %v2878 = vld [vmem:[%s2862 + $0x78] sm:$0xf]
      %v2895 = vrot.slane %v2863, 4
      %v2896 = vrot.slane %v2864, 4
      %v2897 = vsel %vm1334, %v2895, %v2896
      %v2898 = vrot.slane %v2865, 4
      %v2899 = vrot.slane %v2866, 4
      %v2900 = vsel %vm1334, %v2898, %v2899
      %v2901 = vrot.slane %v2867, 4
      %v2902 = vrot.slane %v2868, 4
      %v2903 = vsel %vm1334, %v2901, %v2902
      %v2904 = vrot.slane %v2869, 4
      %v2905 = vrot.slane %v2870, 4
      %v2906 = vsel %vm1334, %v2904, %v2905
      %v2907 = vrot.slane %v2871, 4
      %v2908 = vrot.slane %v2872, 4
      %v2909 = vsel %vm1334, %v2907, %v2908
      %v2910 = vrot.slane %v2873, 4
      %v2911 = vrot.slane %v2874, 4
      %v2912 = vsel %vm1334, %v2910, %v2911
      %v2913 = vrot.slane %v2875, 4
      %v2914 = vrot.slane %v2876, 4
      %v2915 = vsel %vm1334, %v2913, %v2914
      %v2916 = vrot.slane %v2877, 4
      %v2917 = vrot.slane %v2878, 4
      %v2918 = vsel %vm1334, %v2916, %v2917
      %s2919 = scalar_lea.vmem %s3, 24
      %v2920 = vld [vmem:[%s2919] sm:$0xf]
      %v2921 = vld [vmem:[%s2919 + $0x4] sm:$0xf]
      %v2922 = vld [vmem:[%s2919 + $0x8] sm:$0xf]
      %v2926 = vunpack.c.l.b16 %v2920
      %v2927 = vunpack.c.l.b16 %v2921
      %v2928 = vunpack.c.l.b16 %v2922
      %v2929 = vpack.c.b16 %v2927, %v2926
      %v2930 = vpack.c.b16 %v2928, %v2928
      %v2933 = vsel %vm2603, %v2897, 0
      %v2936 = vsel %vm2603, %v2900, 0
      %v2939 = vsel %vm2603, %v2903, 0
      %v2942 = vsel %vm2603, %v2906, 0
      %v2945 = vsel %vm2603, %v2909, 0
      %v2948 = vsel %vm2603, %v2912, 0
      %v2951 = vsel %vm2603, %v2915, 0
      %v2954 = vsel %vm2603, %v2918, 0
      %v2957 = vsel %vm2628, %v2930, 0
      %2959 = vmatprep.subr.bf16.mxu0 0
      %2960 = vmatpush1.bf16.msra.mxu0 %v2929
      %2961 = vmatprep.subr.bf16.mxu0 0
      %2962 = vmatpush1.bf16.msra.mxu0 %v2957
      %2963 = vmatprep.subr.bf16.mxu0 0
      %2964 = vmatpush1.bf16.msra.mxu0 0
      %2965 = vmatprep.subr.bf16.mxu0 0
      %2966 = vmatpush1.bf16.msra.mxu0 0
      %2967 = vmatprep.subr.bf16.mxu0 0
      %2968 = vmatpush1.bf16.msra.mxu0 0
      %2969 = vmatprep.subr.bf16.mxu0 0
      %2970 = vmatpush1.bf16.msra.mxu0 0
      %2971 = vmatprep.subr.bf16.mxu0 0
      %2972 = vmatpush1.bf16.msra.mxu0 0
      %2973 = vmatprep.subr.bf16.mxu0 0
      %2974 = vmatpush1.bf16.msra.mxu0 0
      %2975 = vmatprep.subr.bf16.mxu0 0
      %2976 = vmatpush1.bf16.msra.mxu0 0
      %2977 = vmatprep.subr.bf16.mxu0 0
      %2978 = vmatpush1.bf16.msra.mxu0 0
      %2979 = vmatprep.subr.bf16.mxu0 0
      %2980 = vmatpush1.bf16.msra.mxu0 0
      %2981 = vmatprep.subr.bf16.mxu0 0
      %2982 = vmatpush1.bf16.msra.mxu0 0
      %2983 = vmatprep.subr.bf16.mxu0 0
      %2984 = vmatpush1.bf16.msra.mxu0 0
      %2985 = vmatprep.subr.bf16.mxu0 0
      %2986 = vmatpush1.bf16.msra.mxu0 0
      %2987 = vmatprep.subr.bf16.mxu0 0
      %2988 = vmatpush1.bf16.msra.mxu0 0
      %2989 = vmatprep.subr.bf16.mxu0 0
      %2990 = vmatpush1.bf16.msra.mxu0 0
      %2991 = vmatprep.mubr.bf16.mxu0 0
      %2992 = vmatmul.mubr.bf16.gmra.mrb[0].mxu0 %v2933
      %v2993 = vpop.f32.mrb[0].mxu0
      %v2994 = vadd.f32 0.0, %v2993
      %v2995 = vpop.f32.mrb[0].mxu0
      %v2996 = vpop.f32.mrb[0].mxu0
      %v2997 = vadd.f32 0.0, %v2996
      %v2998 = vpop.f32.mrb[0].mxu0
      %2999 = vmatprep.mubr.bf16.mxu0 0
      %3000 = vmatmul.mubr.bf16.gmra.mrb[0].mxu0 %v2936
      %v3001 = vpop.f32.mrb[0].mxu0
      %v3002 = vadd.f32 0.0, %v3001
      %v3003 = vpop.f32.mrb[0].mxu0
      %v3004 = vpop.f32.mrb[0].mxu0
      %v3005 = vadd.f32 0.0, %v3004
      %v3006 = vpop.f32.mrb[0].mxu0
      %3007 = vmatprep.mubr.bf16.mxu0 0
      %3008 = vmatmul.mubr.bf16.gmra.mrb[0].mxu0 %v2939
      %v3009 = vpop.f32.mrb[0].mxu0
      %v3010 = vadd.f32 0.0, %v3009
      %v3011 = vpop.f32.mrb[0].mxu0
      %v3012 = vpop.f32.mrb[0].mxu0
      %v3013 = vadd.f32 0.0, %v3012
      %v3014 = vpop.f32.mrb[0].mxu0
      %3015 = vmatprep.mubr.bf16.mxu0 0
      %3016 = vmatmul.mubr.bf16.gmra.mrb[0].mxu0 %v2942
      %v3017 = vpop.f32.mrb[0].mxu0
      %v3018 = vadd.f32 0.0, %v3017
      %v3019 = vpop.f32.mrb[0].mxu0
      %v3020 = vpop.f32.mrb[0].mxu0
      %v3021 = vadd.f32 0.0, %v3020
      %v3022 = vpop.f32.mrb[0].mxu0
      %3023 = vmatprep.mubr.bf16.mxu0 0
      %3024 = vmatmul.mubr.bf16.gmra.mrb[0].mxu0 %v2945
      %v3025 = vpop.f32.mrb[0].mxu0
      %v3026 = vadd.f32 0.0, %v3025
      %v3027 = vpop.f32.mrb[0].mxu0
      %v3028 = vpop.f32.mrb[0].mxu0
      %v3029 = vadd.f32 0.0, %v3028
      %v3030 = vpop.f32.mrb[0].mxu0
      %3031 = vmatprep.mubr.bf16.mxu0 0
      %3032 = vmatmul.mubr.bf16.gmra.mrb[0].mxu0 %v2948
      %v3033 = vpop.f32.mrb[0].mxu0
      %v3034 = vadd.f32 0.0, %v3033
      %v3035 = vpop.f32.mrb[0].mxu0
      %v3036 = vpop.f32.mrb[0].mxu0
      %v3037 = vadd.f32 0.0, %v3036
      %v3038 = vpop.f32.mrb[0].mxu0
      %3039 = vmatprep.mubr.bf16.mxu0 0
      %3040 = vmatmul.mubr.bf16.gmra.mrb[0].mxu0 %v2951
      %v3041 = vpop.f32.mrb[0].mxu0
      %v3042 = vadd.f32 0.0, %v3041
      %v3043 = vpop.f32.mrb[0].mxu0
      %v3044 = vpop.f32.mrb[0].mxu0
      %v3045 = vadd.f32 0.0, %v3044
      %v3046 = vpop.f32.mrb[0].mxu0
      %3047 = vmatprep.mubr.bf16.mxu0 0
      %3048 = vmatmul.mubr.bf16.gmra.mrb[0].mxu0 %v2954
      %v3049 = vpop.f32.mrb[0].mxu0
      %v3050 = vadd.f32 0.0, %v3049
      %v3051 = vpop.f32.mrb[0].mxu0
      %v3052 = vpop.f32.mrb[0].mxu0
      %v3053 = vadd.f32 0.0, %v3052
      %v3054 = vpop.f32.mrb[0].mxu0
      %3055 = vdwg.mxu0
      %v3056 = vadd.f32 %v2800, %v2994
      %v3057 = vadd.f32 %v2803, %v2997
      %v3058 = vadd.f32 %v2808, %v3002
      %v3059 = vadd.f32 %v2811, %v3005
      %v3060 = vadd.f32 %v2816, %v3010
      %v3061 = vadd.f32 %v2819, %v3013
      %v3062 = vadd.f32 %v2824, %v3018
      %v3063 = vadd.f32 %v2827, %v3021
      %v3064 = vadd.f32 %v2832, %v3026
      %v3065 = vadd.f32 %v2835, %v3029
      %v3066 = vadd.f32 %v2840, %v3034
      %v3067 = vadd.f32 %v2843, %v3037
      %v3068 = vadd.f32 %v2848, %v3042
      %v3069 = vadd.f32 %v2851, %v3045
      %v3070 = vadd.f32 %v2856, %v3050
      %v3071 = vadd.f32 %v2859, %v3053
      %v3072 = vld [vmem:[%s4] sm:$0x1]
      %v3074 = vlaneseq
      %v3075 = vshrl.u32 %v3074, 7
      %v3076 = vsub.s32 0, %v3075
      %v3077 = vrot.slane %v3072, %v3076
      %v3079 = vadd.f32 %v3056, %v3077
      %v3080 = vadd.f32 %v3057, %v3077
      %v3081 = vadd.f32 %v3058, %v3077
      %v3082 = vadd.f32 %v3059, %v3077
      %v3083 = vadd.f32 %v3060, %v3077
      %v3084 = vadd.f32 %v3061, %v3077
      %v3085 = vadd.f32 %v3062, %v3077
      %v3086 = vadd.f32 %v3063, %v3077
      %v3087 = vadd.f32 %v3064, %v3077
      %v3088 = vadd.f32 %v3065, %v3077
      %v3089 = vadd.f32 %v3066, %v3077
      %v3090 = vadd.f32 %v3067, %v3077
      %v3091 = vadd.f32 %v3068, %v3077
      %v3092 = vadd.f32 %v3069, %v3077
      %v3093 = vadd.f32 %v3070, %v3077
      %v3094 = vadd.f32 %v3071, %v3077
      %v3095 = vld [vmem:[%s590] sm:$0xf0]
      %v3096 = vld [vmem:[%s590 + $0x8] sm:$0xf]
      %v3097 = vld [vmem:[%s590 + $0x10] sm:$0xf0]
      %v3098 = vld [vmem:[%s590 + $0x18] sm:$0xf]
      %v3099 = vld [vmem:[%s590 + $0x20] sm:$0xf0]
      %v3100 = vld [vmem:[%s590 + $0x28] sm:$0xf]
      %v3101 = vld [vmem:[%s590 + $0x30] sm:$0xf0]
      %v3102 = vld [vmem:[%s590 + $0x38] sm:$0xf]
      %v3103 = vld [vmem:[%s590 + $0x40] sm:$0xf0]
      %v3104 = vld [vmem:[%s590 + $0x48] sm:$0xf]
      %v3105 = vld [vmem:[%s590 + $0x50] sm:$0xf0]
      %v3106 = vld [vmem:[%s590 + $0x58] sm:$0xf]
      %v3107 = vld [vmem:[%s590 + $0x60] sm:$0xf0]
      %v3108 = vld [vmem:[%s590 + $0x68] sm:$0xf]
      %v3109 = vld [vmem:[%s590 + $0x70] sm:$0xf0]
      %v3110 = vld [vmem:[%s590 + $0x78] sm:$0xf]
      %v3127 = vrot.slane %v3095, 4
      %v3128 = vrot.slane %v3096, 4
      %v3129 = vsel %vm1334, %v3127, %v3128
      %v3130 = vrot.slane %v3097, 4
      %v3131 = vrot.slane %v3098, 4
      %v3132 = vsel %vm1334, %v3130, %v3131
      %v3133 = vrot.slane %v3099, 4
      %v3134 = vrot.slane %v3100, 4
      %v3135 = vsel %vm1334, %v3133, %v3134
      %v3136 = vrot.slane %v3101, 4
      %v3137 = vrot.slane %v3102, 4
      %v3138 = vsel %vm1334, %v3136, %v3137
      %v3139 = vrot.slane %v3103, 4
      %v3140 = vrot.slane %v3104, 4
      %v3141 = vsel %vm1334, %v3139, %v3140
      %v3142 = vrot.slane %v3105, 4
      %v3143 = vrot.slane %v3106, 4
      %v3144 = vsel %vm1334, %v3142, %v3143
      %v3145 = vrot.slane %v3107, 4
      %v3146 = vrot.slane %v3108, 4
      %v3147 = vsel %vm1334, %v3145, %v3146
      %v3148 = vrot.slane %v3109, 4
      %v3149 = vrot.slane %v3110, 4
      %v3150 = vsel %vm1334, %v3148, %v3149
      %v3151 = vld [vmem:[%s5] sm:$0x3]
      %v3152 = vld [vmem:[%s6] sm:$0x1]
      %v3154 = vlaneseq
      %v3155 = vshrl.u32 %v3154, 7
      %v3156 = vsub.s32 0, %v3155
      %v3157 = vrot.slane %v3152, %v3156
      %3159 = vrot.lane.b32.xlu0 %v3129, 124
      %v3160 = vpop.permute.xlu0 %3159
      %3161 = vrot.lane.b32.xlu0 %v3132, 124
      %v3162 = vpop.permute.xlu0 %3161
      %3163 = vrot.lane.b32.xlu0 %v3135, 124
      %v3164 = vpop.permute.xlu0 %3163
      %3165 = vrot.lane.b32.xlu0 %v3138, 124
      %v3166 = vpop.permute.xlu0 %3165
      %3167 = vrot.lane.b32.xlu0 %v3141, 124
      %v3168 = vpop.permute.xlu0 %3167
      %3169 = vrot.lane.b32.xlu0 %v3144, 124
      %v3170 = vpop.permute.xlu0 %3169
      %3171 = vrot.lane.b32.xlu0 %v3147, 124
      %v3172 = vpop.permute.xlu0 %3171
      %3173 = vrot.lane.b32.xlu0 %v3150, 124
      %v3174 = vpop.permute.xlu0 %3173
      %vm3175 = vcmask 31744
      %v3177 = vsel %vm3175, %v3160, 0
      %v3180 = vsel %vm3175, %v3162, 0
      %v3183 = vsel %vm3175, %v3164, 0
      %v3186 = vsel %vm3175, %v3166, 0
      %v3189 = vsel %vm3175, %v3168, 0
      %v3192 = vsel %vm3175, %v3170, 0
      %v3195 = vsel %vm3175, %v3172, 0
      %v3198 = vsel %vm3175, %v3174, 0
      %vm3200 = vcmask 1041408
      %v3202 = vsel %vm3200, %v3151, 0
      %3204 = vmatprep.subr.bf16.mxu0 0
      %3205 = vmatpush1.bf16.msra.mxu0 %v3202
      %3206 = vmatprep.subr.bf16.mxu0 0
      %3207 = vmatpush1.bf16.msra.mxu0 0
      %3208 = vmatprep.subr.bf16.mxu0 0
      %3209 = vmatpush1.bf16.msra.mxu0 0
      %3210 = vmatprep.subr.bf16.mxu0 0
      %3211 = vmatpush1.bf16.msra.mxu0 0
      %3212 = vmatprep.subr.bf16.mxu0 0
      %3213 = vmatpush1.bf16.msra.mxu0 0
      %3214 = vmatprep.subr.bf16.mxu0 0
      %3215 = vmatpush1.bf16.msra.mxu0 0
      %3216 = vmatprep.subr.bf16.mxu0 0
      %3217 = vmatpush1.bf16.msra.mxu0 0
      %3218 = vmatprep.subr.bf16.mxu0 0
      %3219 = vmatpush1.bf16.msra.mxu0 0
      %3220 = vmatprep.subr.bf16.mxu0 0
      %3221 = vmatpush1.bf16.msra.mxu0 0
      %3222 = vmatprep.subr.bf16.mxu0 0
      %3223 = vmatpush1.bf16.msra.mxu0 0
      %3224 = vmatprep.subr.bf16.mxu0 0
      %3225 = vmatpush1.bf16.msra.mxu0 0
      %3226 = vmatprep.subr.bf16.mxu0 0
      %3227 = vmatpush1.bf16.msra.mxu0 0
      %3228 = vmatprep.subr.bf16.mxu0 0
      %3229 = vmatpush1.bf16.msra.mxu0 0
      %3230 = vmatprep.subr.bf16.mxu0 0
      %3231 = vmatpush1.bf16.msra.mxu0 0
      %3232 = vmatprep.subr.bf16.mxu0 0
      %3233 = vmatpush1.bf16.msra.mxu0 0
      %3234 = vmatprep.subr.bf16.mxu0 0
      %3235 = vmatpush1.bf16.msra.mxu0 0
      %3236 = vmatprep.mubr.bf16.mxu0 0
      %3237 = vmatmul.mubr.bf16.gmra.mrb[0].mxu0 %v3177
      %v3238 = vpop.f32.mrb[0].mxu0
      %v3239 = vadd.f32 %v3157, %v3238
      %v3240 = vpop.f32.mrb[0].mxu0
      %v3241 = vpop.f32.mrb[0].mxu0
      %v3242 = vadd.f32 %v3157, %v3241
      %v3243 = vpop.f32.mrb[0].mxu0
      %3244 = vmatprep.mubr.bf16.mxu0 0
      %3245 = vmatmul.mubr.bf16.gmra.mrb[0].mxu0 %v3180
      %v3246 = vpop.f32.mrb[0].mxu0
      %v3247 = vadd.f32 %v3157, %v3246
      %v3248 = vpop.f32.mrb[0].mxu0
      %v3249 = vpop.f32.mrb[0].mxu0
      %v3250 = vadd.f32 %v3157, %v3249
      %v3251 = vpop.f32.mrb[0].mxu0
      %3252 = vmatprep.mubr.bf16.mxu0 0
      %3253 = vmatmul.mubr.bf16.gmra.mrb[0].mxu0 %v3183
      %v3254 = vpop.f32.mrb[0].mxu0
      %v3255 = vadd.f32 %v3157, %v3254
      %v3256 = vpop.f32.mrb[0].mxu0
      %v3257 = vpop.f32.mrb[0].mxu0
      %v3258 = vadd.f32 %v3157, %v3257
      %v3259 = vpop.f32.mrb[0].mxu0
      %3260 = vmatprep.mubr.bf16.mxu0 0
      %3261 = vmatmul.mubr.bf16.gmra.mrb[0].mxu0 %v3186
      %v3262 = vpop.f32.mrb[0].mxu0
      %v3263 = vadd.f32 %v3157, %v3262
      %v3264 = vpop.f32.mrb[0].mxu0
      %v3265 = vpop.f32.mrb[0].mxu0
      %v3266 = vadd.f32 %v3157, %v3265
      %v3267 = vpop.f32.mrb[0].mxu0
      %3268 = vmatprep.mubr.bf16.mxu0 0
      %3269 = vmatmul.mubr.bf16.gmra.mrb[0].mxu0 %v3189
      %v3270 = vpop.f32.mrb[0].mxu0
      %v3271 = vadd.f32 %v3157, %v3270
      %v3272 = vpop.f32.mrb[0].mxu0
      %v3273 = vpop.f32.mrb[0].mxu0
      %v3274 = vadd.f32 %v3157, %v3273
      %v3275 = vpop.f32.mrb[0].mxu0
      %3276 = vmatprep.mubr.bf16.mxu0 0
      %3277 = vmatmul.mubr.bf16.gmra.mrb[0].mxu0 %v3192
      %v3278 = vpop.f32.mrb[0].mxu0
      %v3279 = vadd.f32 %v3157, %v3278
      %v3280 = vpop.f32.mrb[0].mxu0
      %v3281 = vpop.f32.mrb[0].mxu0
      %v3282 = vadd.f32 %v3157, %v3281
      %v3283 = vpop.f32.mrb[0].mxu0
      %3284 = vmatprep.mubr.bf16.mxu0 0
      %3285 = vmatmul.mubr.bf16.gmra.mrb[0].mxu0 %v3195
      %v3286 = vpop.f32.mrb[0].mxu0
      %v3287 = vadd.f32 %v3157, %v3286
      %v3288 = vpop.f32.mrb[0].mxu0
      %v3289 = vpop.f32.mrb[0].mxu0
      %v3290 = vadd.f32 %v3157, %v3289
      %v3291 = vpop.f32.mrb[0].mxu0
      %3292 = vmatprep.mubr.bf16.mxu0 0
      %3293 = vmatmul.mubr.bf16.gmra.mrb[0].mxu0 %v3198
      %v3294 = vpop.f32.mrb[0].mxu0
      %v3295 = vadd.f32 %v3157, %v3294
      %v3296 = vpop.f32.mrb[0].mxu0
      %v3297 = vpop.f32.mrb[0].mxu0
      %v3298 = vadd.f32 %v3157, %v3297
      %v3299 = vpop.f32.mrb[0].mxu0
      %3300 = vdwg.mxu0
      %v3301 = vadd.f32 %v3079, %v3239
      %v3302 = vadd.f32 %v3080, %v3242
      %v3303 = vadd.f32 %v3081, %v3247
      %v3304 = vadd.f32 %v3082, %v3250
      %v3305 = vadd.f32 %v3083, %v3255
      %v3306 = vadd.f32 %v3084, %v3258
      %v3307 = vadd.f32 %v3085, %v3263
      %v3308 = vadd.f32 %v3086, %v3266
      %v3309 = vadd.f32 %v3087, %v3271
      %v3310 = vadd.f32 %v3088, %v3274
      %v3311 = vadd.f32 %v3089, %v3279
      %v3312 = vadd.f32 %v3090, %v3282
      %v3313 = vadd.f32 %v3091, %v3287
      %v3314 = vadd.f32 %v3092, %v3290
      %v3315 = vadd.f32 %v3093, %v3295
      %v3316 = vadd.f32 %v3094, %v3298
      %v3317 = vmax.f32 %v3301, 0.0
      %v3318 = vmax.f32 %v3302, 0.0
      %v3319 = vmax.f32 %v3303, 0.0
      %v3320 = vmax.f32 %v3304, 0.0
      %v3321 = vmax.f32 %v3305, 0.0
      %v3322 = vmax.f32 %v3306, 0.0
      %v3323 = vmax.f32 %v3307, 0.0
      %v3324 = vmax.f32 %v3308, 0.0
      %v3325 = vmax.f32 %v3309, 0.0
      %v3326 = vmax.f32 %v3310, 0.0
      %v3327 = vmax.f32 %v3311, 0.0
      %v3328 = vmax.f32 %v3312, 0.0
      %v3329 = vmax.f32 %v3313, 0.0
      %v3330 = vmax.f32 %v3314, 0.0
      %v3331 = vmax.f32 %v3315, 0.0
      %v3332 = vmax.f32 %v3316, 0.0
      %vm3333 = vcmask 64512
      %3334 = vst.msk [vmem:[%s302] sm:$0xff] %vm3333, %v3317
      %3335 = vst.msk [vmem:[%s302 + $0x8] sm:$0xff] %vm3333, %v3318
      %3336 = vst.msk [vmem:[%s302 + $0x10] sm:$0xff] %vm3333, %v3319
      %3337 = vst.msk [vmem:[%s302 + $0x18] sm:$0xff] %vm3333, %v3320
      %3338 = vst.msk [vmem:[%s302 + $0x20] sm:$0xff] %vm3333, %v3321
      %3339 = vst.msk [vmem:[%s302 + $0x28] sm:$0xff] %vm3333, %v3322
      %3340 = vst.msk [vmem:[%s302 + $0x30] sm:$0xff] %vm3333, %v3323
      %3341 = vst.msk [vmem:[%s302 + $0x38] sm:$0xff] %vm3333, %v3324
      %3342 = vst.msk [vmem:[%s302 + $0x40] sm:$0xff] %vm3333, %v3325
      %3343 = vst.msk [vmem:[%s302 + $0x48] sm:$0xff] %vm3333, %v3326
      %3344 = vst.msk [vmem:[%s302 + $0x50] sm:$0xff] %vm3333, %v3327
      %3345 = vst.msk [vmem:[%s302 + $0x58] sm:$0xff] %vm3333, %v3328
      %3346 = vst.msk [vmem:[%s302 + $0x60] sm:$0xff] %vm3333, %v3329
      %3347 = vst.msk [vmem:[%s302 + $0x68] sm:$0xff] %vm3333, %v3330
      %3348 = vst.msk [vmem:[%s302 + $0x70] sm:$0xff] %vm3333, %v3331
      %3349 = vst.msk [vmem:[%s302 + $0x78] sm:$0xff] %vm3333, %v3332
      %s3350 = smul.u32 8, %s23
      %p3351 = scmp.lt.s32.totalorder %s22, 1
      %s3352 = scalar_select %p3351, %s22, 1
      %p3353 = scmp.lt.s32.totalorder %s3350, 15
      %s3354 = scalar_select %p3353, %s3350, 15
      %s3355 = smul.addr %s3354, 2
      %s3356 = smul.addr %s3352, 32
      %s3357 = sadd.s32 %s3355, %s3356
      %s3358 = smul.addr %s3357, 8
      %s3359 = scalar_lea.vmem %s7, %s3358
      // Predicated region
      $region57: #{tpu_custom_call.1} parent=47 // pred_check
        %p3360 = pneg %p202
      $region58: #{tpu_custom_call.1} parent=47 // pred_check_branch
        %3362 = sbr.rel (%p3360) target = $region60
      $region59: #{tpu_custom_call.1} parent=47 // pred_region
        %s3363 = smul.u32 8, %s23
      $region60: #{tpu_custom_call.1} parent=47 // pred_fallthru
        _
    $region48: #{tpu_custom_call.1} parent=5 // pred_fallthru
      _
    %p3364 = scmp.le.s32.totalorder 2, %s13
    // Predicated region
    $region61: #{tpu_custom_call.1} parent=5 // pred_check
      %p3365 = pneg %p3364
    $region62: #{tpu_custom_call.1} parent=5 // pred_check_branch
      %3367 = sbr.rel (%p3365) target = $region64
    $region63: #{tpu_custom_call.1} parent=5 // pred_region
      %s3368 = ssub.s32 %s13, 2
      // Predicated region
      $region65: #{tpu_custom_call.1} parent=63 // pred_check
        %p3369 = pneg %p208
      $region66: #{tpu_custom_call.1} parent=63 // pred_check_branch
        %3371 = sbr.rel (%p3369) target = $region68
      $region67: #{tpu_custom_call.1} parent=63 // pred_region
        %s3372 = smul.u32 8, %s25
        %p3373 = scmp.lt.s32.totalorder %s24, 1
        %s3374 = scalar_select %p3373, %s24, 1
        %p3375 = scmp.lt.s32.totalorder %s3372, 15
        %s3376 = scalar_select %p3375, %s3372, 15
        %s3377 = smul.addr %s3376, 2
        %s3378 = smul.addr %s3374, 32
        %s3379 = sadd.s32 %s3377, %s3378
        %s3380 = smul.addr %s3379, 8
        %s3381 = scalar_lea.vmem %s7, %s3380
      $region68: #{tpu_custom_call.1} parent=63 // pred_fallthru
        _
    $region64: #{tpu_custom_call.1} parent=5 // pred_fallthru
      _
  $region6: #{tpu_custom_call.1} parent=0 // loop_footer
    %s17 = sadd.s32 1, %s13
  $region7: #{tpu_custom_call.1} parent=0 // loop_footer_branch
    %12 = sbr.rel target = $region3
  $region8: #{tpu_custom_call.1} parent=0 // loop_exit
    _

</llo_original>
